<compile_context>
chip_gen: v7x
topology: tpu7x:2x2x1
jax: 0.10.0
libtpu: 0.0.40
codegen_flags: <defaults>
</compile_context>

<pallas_src>
import math

import numpy as np

import jax
import jax.numpy as jnp
from jax.experimental import pallas as pl
from jax.experimental.pallas import tpu as pltpu

F32 = jnp.float32
BF16 = jnp.bfloat16
EPS_BN = 1e-5


def _pick_tile(n, candidates=(1024, 512, 256, 128)):
    # largest candidate dividing n; all candidates are multiples of (16, 128) so blocks
    # satisfy the TPU tiling constraint for f32 and bf16 operands.
    for c in candidates:
        if n >= c and n % c == 0:
            return c
    return n  # full extent (always legal)


# --------------------------- graph preparation (glue) ------------------------

def _build_block_schedule(dst, src, n, tm, tk):
    """Per row tile: which adjacency column tiles contain at least one edge.

    Exploits the block-diagonal structure of the batched-graph adjacency so the GIN
    kernel only DMAs / multiplies nonzero tiles (scalar-prefetched schedule)."""
    nrt, nct = n // tm, n // tk
    nz = np.zeros((nrt, nct), dtype=bool)
    nz[dst // tm, src // tk] = True
    cols = [np.nonzero(nz[i])[0] for i in range(nrt)]
    kmax = max(1, max((len(c) for c in cols), default=1))
    col_idx = np.zeros((nrt, kmax), dtype=np.int32)
    nk = np.zeros((nrt,), dtype=np.int32)
    for i, c in enumerate(cols):
        nk[i] = len(c)
        col_idx[i, : len(c)] = c
    return jnp.asarray(col_idx), jnp.asarray(nk), int(kmax)


def prepare_graph(edge_index, batch, num_nodes, num_graphs,
                  row_tile=None, col_tile=None, pool_tile=None):
    src, dst = edge_index[0], edge_index[1]
    adj = jnp.zeros((num_nodes, num_nodes), F32).at[dst, src].add(1.0)  # A[dst, src]
    # bf16 represents integers exactly up to 256 -> edge multiplicities must stay below.
    assert float(jnp.max(adj)) <= 256.0, "edge multiplicity too large for bf16 adjacency"
    pool = jax.nn.one_hot(batch, num_graphs, dtype=F32).T               # (G, N) add-pool
    tm = row_tile or _pick_tile(num_nodes)
    tk = col_tile or _pick_tile(num_nodes)
    ptk = pool_tile or _pick_tile(num_nodes)
    col_idx, nk, kmax = _build_block_schedule(np.asarray(dst), np.asarray(src),
                                              num_nodes, tm, tk)
    return dict(adj_bf16=adj.astype(BF16), pool_bf16=pool.astype(BF16),
                adj_f32=adj, pool_f32=pool,
                col_idx=col_idx, nk=nk, kmax=kmax,
                tm=tm, tk=tk, pool_tk=ptk, n=num_nodes, g=num_graphs)


# ------------------- GIN layer (aggregation + MLP, fused prev-BN) -------------

def _gin_kernel(ci_ref, nk_ref, adj_ref, xk_ref, xi_ref, st_ref,
                w1_ref, b1_ref, w2_ref, b2_ref, h_ref, so_ref, acc_ref):
    i = pl.program_id(0)
    k = pl.program_id(1)

    @pl.when(k == 0)
    def _():
        acc_ref[...] = jnp.zeros_like(acc_ref)

    # Neighbour-sum over the scalar-prefetched nonzero adjacency column tiles only.
    # The previous layer's BatchNorm is fused in (normalize the gathered rows) and the
    # MXU is fed bf16 x bf16: adjacency is already bf16, only the small activation
    # tile is cast; accumulation stays f32.
    @pl.when(k < nk_ref[i])
    def _():
        xk = (xk_ref[...] - st_ref[0:1, :]) * st_ref[1:2, :]
        acc_ref[...] += jnp.dot(adj_ref[...], xk.astype(BF16),
                                preferred_element_type=F32)

    @pl.when(k == pl.num_programs(1) - 1)
    def _():
        xi = (xi_ref[...] - st_ref[0:1, :]) * st_ref[1:2, :]   # fused prev-BN, self term
        z = xi + acc_ref[...]                                   # GINConv, eps = 0
        h = jnp.maximum(jnp.dot(z, w1_ref[...], preferred_element_type=F32)
                        + b1_ref[...], 0.0)
        h = jnp.maximum(jnp.dot(h, w2_ref[...], preferred_element_type=F32)
                        + b2_ref[...], 0.0)
        h_ref[...] = h
        # Per-row-tile BatchNorm partials (sum / sum-of-squares), written exactly once:
        # no cross-row-tile accumulation, so the row axis can be 'parallel' (v7x megacore).
        so_ref[0] = jnp.concatenate(
            [jnp.sum(h, axis=0, keepdims=True),
             jnp.sum(h * h, axis=0, keepdims=True)], axis=0)


def gin_layer(x, graph, stats_in, w1, b1, w2, b2):
    n, fin = x.shape
    hdim = w2.shape[1]
    tm, tk, kmax = graph["tm"], graph["tk"], graph["kmax"]
    nrt = n // tm
    return pl.pallas_call(
        _gin_kernel,
        out_shape=(jax.ShapeDtypeStruct((n, hdim), F32),          # pre-BN activations
                   jax.ShapeDtypeStruct((nrt, 2, hdim), F32)),     # BN partial stats
        grid_spec=pltpu.PrefetchScalarGridSpec(
            num_scalar_prefetch=2,                                 # col schedule + counts
            grid=(nrt, kmax),
            in_specs=[
                pl.BlockSpec((tm, tk), lambda i, k, ci, nk: (i, ci[i, k])),   # adjacency
                pl.BlockSpec((tk, fin), lambda i, k, ci, nk: (ci[i, k], 0)),  # gathered rows
                pl.BlockSpec((tm, fin), lambda i, k, ci, nk: (i, 0)),         # self rows
                pl.BlockSpec((2, fin), lambda i, k, ci, nk: (0, 0)),          # prev-BN stats
                pl.BlockSpec((fin, hdim), lambda i, k, ci, nk: (0, 0)),
                pl.BlockSpec((1, hdim), lambda i, k, ci, nk: (0, 0)),
                pl.BlockSpec((hdim, hdim), lambda i, k, ci, nk: (0, 0)),
                pl.BlockSpec((1, hdim), lambda i, k, ci, nk: (0, 0)),
            ],
            out_specs=[
                pl.BlockSpec((tm, hdim), lambda i, k, ci, nk: (i, 0)),
                pl.BlockSpec((1, 2, hdim), lambda i, k, ci, nk: (i, 0, 0)),
            ],
            scratch_shapes=[pltpu.VMEM((tm, fin), F32)],
        ),
        compiler_params=pltpu.CompilerParams(
            dimension_semantics=("parallel", "arbitrary")),
    )(graph["col_idx"], graph["nk"], graph["adj_bf16"], x, x, stats_in, w1, b1, w2, b2)


def _finalize_stats(partial, n_nodes):
    # (nrt, 2, H) partial [sum, sumsq] -> (2, H) [mean, inv_std].  Tiny glue.
    s = jnp.sum(partial, axis=0)
    mean = s[0:1, :] / n_nodes
    var = jnp.maximum(s[1:2, :] / n_nodes - mean * mean, 0.0)     # biased var (torch BN)
    return jnp.concatenate([mean, jax.lax.rsqrt(var + EPS_BN)], axis=0)


# ---------------- fused BN-apply + global add-pool over all layers ------------

def _make_pool_kernel(num_layers):
    def kernel(*refs):
        pool_ref = refs[0]
        h_refs = refs[1:1 + num_layers]
        st_refs = refs[1 + num_layers:1 + 2 * num_layers]
        out_ref = refs[1 + 2 * num_layers]
        acc_ref = refs[2 + 2 * num_layers]

        k = pl.program_id(0)

        @pl.when(k == 0)
        def _():
            acc_ref[...] = jnp.zeros_like(acc_ref)

        p = pool_ref[...]                                         # bf16 0/1 pooling tile
        for l in range(num_layers):
            st = st_refs[l]
            xn = (h_refs[l][...] - st[0:1, :]) * st[1:2, :]       # fused BatchNorm apply
            acc_ref[l] += jnp.dot(p, xn.astype(BF16), preferred_element_type=F32)

        @pl.when(k == pl.num_programs(0) - 1)
        def _():
            out_ref[...] = acc_ref[...]

    return kernel


def pool_layers(graph, hs, stats_list):
    pool_b = graph["pool_bf16"]
    g, n = pool_b.shape
    num_layers = len(hs)
    hdim = hs[0].shape[1]
    tk = graph["pool_tk"]
    in_specs = [pl.BlockSpec((g, tk), lambda k: (0, k))]
    in_specs += [pl.BlockSpec((tk, hdim), lambda k: (k, 0)) for _ in range(num_layers)]
    in_specs += [pl.BlockSpec((2, hdim), lambda k: (0, 0)) for _ in range(num_layers)]
    return pl.pallas_call(
        _make_pool_kernel(num_layers),
        out_shape=jax.ShapeDtypeStruct((num_layers, g, hdim), F32),
        grid_spec=pltpu.PrefetchScalarGridSpec(
            num_scalar_prefetch=0,
            grid=(n // tk,),
            in_specs=in_specs,
            out_specs=pl.BlockSpec((num_layers, g, hdim), lambda k: (0, 0, 0)),
            scratch_shapes=[pltpu.VMEM((num_layers, g, hdim), F32)],
        ),
        compiler_params=pltpu.CompilerParams(dimension_semantics=("arbitrary",)),
    )(pool_b, *hs, *stats_list)


# ------------------------------ projection head ------------------------------

def _proj_kernel(y_ref, w1_ref, b1_ref, w2_ref, b2_ref, o_ref):
    h = jnp.maximum(jnp.dot(y_ref[...], w1_ref[...], preferred_element_type=F32)
                    + b1_ref[...], 0.0)
    o_ref[...] = jnp.dot(h, w2_ref[...], preferred_element_type=F32) + b2_ref[...]


def proj_head(y, proj):
    m, emb = y.shape
    return pl.pallas_call(
        _proj_kernel,
        out_shape=jax.ShapeDtypeStruct((m, emb), F32),
        grid_spec=pltpu.PrefetchScalarGridSpec(
            num_scalar_prefetch=0,
            grid=(1,),
            in_specs=[pl.BlockSpec((m, emb), lambda i: (0, 0)),
                      pl.BlockSpec((emb, emb), lambda i: (0, 0)),
                      pl.BlockSpec((1, emb), lambda i: (0, 0)),
                      pl.BlockSpec((emb, emb), lambda i: (0, 0)),
                      pl.BlockSpec((1, emb), lambda i: (0, 0))],
            out_specs=pl.BlockSpec((m, emb), lambda i: (0, 0)),
        ),
    )(y, proj["w1"], proj["b1"], proj["w2"], proj["b2"])


# ------------------------------- loss_cal kernel ------------------------------

def _make_loss_kernel(temperature, tg, g_total):
    inv_t = 1.0 / temperature

    def kernel(y1_ref, y2_ref, o_ref, y2n_ref):
        i = pl.program_id(0)

        @pl.when(i == 0)
        def _():
            y2 = y2_ref[...]
            y2n_ref[...] = y2 * jax.lax.rsqrt(jnp.sum(y2 * y2, axis=1, keepdims=True))
            o_ref[0, 0] = 0.0

        x = y1_ref[...]
        xn = x * jax.lax.rsqrt(jnp.sum(x * x, axis=1, keepdims=True))
        sim = jax.lax.dot_general(xn, y2n_ref[...], (((1,), (1,)), ((), ())),
                                  preferred_element_type=F32)          # (tg, G) cosine sim
        # exp without max-subtraction is safe: cosine-normalized, |sim| <= 1, T = 0.2
        e = jnp.exp(sim * inv_t)
        row = jax.lax.broadcasted_iota(jnp.int32, e.shape, 0) + i * tg
        col = jax.lax.broadcasted_iota(jnp.int32, e.shape, 1)
        pos = jnp.sum(e * (row == col).astype(F32), axis=1, keepdims=True)
        tot = jnp.sum(e, axis=1, keepdims=True)
        o_ref[0, 0] += jnp.sum(jnp.log(pos) - jnp.log(tot - pos))

        @pl.when(i == pl.num_programs(0) - 1)
        def _():
            o_ref[0, 0] = o_ref[0, 0] * (-1.0 / g_total)

    return kernel


def loss_cal(y1, y2, temperature=0.2):
    g, emb = y1.shape
    tg = _pick_tile(g, (128, 64, 32, 16, 8))
    out = pl.pallas_call(
        _make_loss_kernel(temperature, tg, g),
        out_shape=jax.ShapeDtypeStruct((1, 1), F32),
        grid_spec=pltpu.PrefetchScalarGridSpec(
            num_scalar_prefetch=0,
            grid=(g // tg,),
            in_specs=[pl.BlockSpec((tg, emb), lambda i: (i, 0)),
                      pl.BlockSpec((g, emb), lambda i: (0, 0))],
            out_specs=pl.BlockSpec(memory_space=pltpu.MemorySpace.SMEM),
            scratch_shapes=[pltpu.VMEM((g, emb), F32)],
        ),
        compiler_params=pltpu.CompilerParams(dimension_semantics=("arbitrary",)),
    )(y1, y2)
    return out[0, 0]


# ----------------------------- parameters & forward ---------------------------

def xavier_uniform(key, fan_in, fan_out):
    limit = math.sqrt(6.0 / (fan_in + fan_out))
    return jax.random.uniform(key, (fan_in, fan_out), F32, -limit, limit)


def init_params(key, num_features, hidden_dim, num_gc_layers):
    emb = hidden_dim * num_gc_layers
    keys = iter(jax.random.split(key, 2 * num_gc_layers + 2))
    params = {"encoder": []}
    in_dim = num_features
    for _ in range(num_gc_layers):
        w1 = xavier_uniform(next(keys), in_dim, hidden_dim)
        w2 = xavier_uniform(next(keys), hidden_dim, hidden_dim)
        params["encoder"].append((w1, jnp.zeros((1, hidden_dim), F32),
                                  w2, jnp.zeros((1, hidden_dim), F32)))
        in_dim = hidden_dim
    params["proj"] = {
        "w1": xavier_uniform(next(keys), emb, emb), "b1": jnp.zeros((1, emb), F32),
        "w2": xavier_uniform(next(keys), emb, emb), "b2": jnp.zeros((1, emb), F32),
    }
    return params


def _block_diag2(w):
    z = jnp.zeros_like(w)
    return jnp.concatenate([jnp.concatenate([w, z], axis=1),
                            jnp.concatenate([z, w], axis=1)], axis=0)


def simclr_forward_pair(params, x, x_aug, graph):
    """Both SimCLR views through one fused encoder pass.

    The views are batched on the feature (lane) axis; GIN/projection weights are applied
    per view via exact block-diagonal embedding, so each view's result is identical to a
    standalone forward() call (BatchNorm stats are per-column and views occupy disjoint
    column blocks)."""
    n = x.shape[0]
    hid = params["encoder"][0][2].shape[1]          # per-view hidden width
    num_layers = len(params["encoder"])

    h = jnp.concatenate([x, x_aug], axis=1)          # (N, 2*fin)
    stats = jnp.concatenate([jnp.zeros((1, h.shape[1]), F32),
                             jnp.ones((1, h.shape[1]), F32)], axis=0)  # identity BN (layer 0)
    hs, stats_list = [], []
    for (w1, b1, w2, b2) in params["encoder"]:
        w1b, w2b = _block_diag2(w1), _block_diag2(w2)
        b1b = jnp.concatenate([b1, b1], axis=1)
        b2b = jnp.concatenate([b2, b2], axis=1)
        h, partial = gin_layer(h, graph, stats, w1b, b1b, w2b, b2b)
        stats = _finalize_stats(partial, n)          # next consumer normalizes with these
        hs.append(h)
        stats_list.append(stats)

    pooled = pool_layers(graph, hs, stats_list)      # (L, G, 2*hid), BN fused into pooling
    g = pooled.shape[1]
    # de-interleave views and stack them along rows (tiny glue), then shared proj head
    y_pool = jnp.concatenate(
        [jnp.concatenate([pooled[l, :, v * hid:(v + 1) * hid] for l in range(num_layers)],
                         axis=1) for v in range(2)], axis=0)           # (2G, emb)
    y = proj_head(y_pool, params["proj"])
    return y[:g], y[g:]


# -------------------------------- pure-JAX refs --------------------------------

def _ref_forward(params, x, adj, pool):
    h = x
    pooled = []
    for (w1, b1, w2, b2) in params["encoder"]:
        z = h + adj @ h
        z = jnp.maximum(z @ w1 + b1, 0.0)
        z = jnp.maximum(z @ w2 + b2, 0.0)
        mean = jnp.mean(z, axis=0, keepdims=True)
        var = jnp.maximum(jnp.mean(z * z, axis=0, keepdims=True) - mean * mean, 0.0)
        h = (z - mean) * jax.lax.rsqrt(var + EPS_BN)
        pooled.append(pool @ h)
    y = jnp.concatenate(pooled, axis=1)
    p = params["proj"]
    return jnp.maximum(y @ p["w1"] + p["b1"], 0.0) @ p["w2"] + p["b2"]


def _ref_loss(y1, y2, temperature=0.2):
    n1 = jnp.sqrt(jnp.sum(y1 * y1, axis=1))
    n2 = jnp.sqrt(jnp.sum(y2 * y2, axis=1))
    sim = jnp.exp((y1 @ y2.T) / (n1[:, None] * n2[None, :]) / temperature)
    pos = jnp.diag(sim)
    return jnp.mean(-jnp.log(pos / (jnp.sum(sim, axis=1) - pos)))


if __name__ == "__main__":
    # small but tile-able shapes: emb = hidden * layers = 128 (lane-dense proj / loss)
    num_features, hidden_dim, num_gc_layers = 16, 32, 4
    nodes_per_graph, num_graphs, edges_per_graph = 32, 48, 64
    n = nodes_per_graph * num_graphs                 # 1536 nodes

    root = jax.random.PRNGKey(0)
    k_param, k_x, k_e, k_aug = jax.random.split(root, 4)

    params = init_params(k_param, num_features, hidden_dim, num_gc_layers)
    x = jax.random.normal(k_x, (n, num_features), F32)
    # second "augmented" view: deterministic feature perturbation (shared edge_index)
    x_aug = x + 0.1 * jax.random.normal(k_aug, (n, num_features), F32)

    # deterministic random intra-graph edges
    srcs, dsts = [], []
    for gi in range(num_graphs):
        ks, kd = jax.random.split(jax.random.fold_in(k_e, gi))
        s = jax.random.randint(ks, (edges_per_graph,), 0, nodes_per_graph) + gi * nodes_per_graph
        d = jax.random.randint(kd, (edges_per_graph,), 0, nodes_per_graph) + gi * nodes_per_graph
        srcs.append(s)
        dsts.append(d)
    edge_index = jnp.stack([jnp.concatenate(srcs), jnp.concatenate(dsts)], 0).astype(jnp.int32)
    batch = jnp.repeat(jnp.arange(num_graphs, dtype=jnp.int32), nodes_per_graph)

    # small explicit tiles so the demo exercises multiple row tiles and a multi-step
    # adjacency reduction (defaults are the larger _pick_tile candidates)
    graph = prepare_graph(edge_index, batch, n, num_graphs,
                          row_tile=512, col_tile=256, pool_tile=512)

    y1, y2 = simclr_forward_pair(params, x, x_aug, graph)
    loss = loss_cal(y1, y2)
    loss = jax.block_until_ready(loss)

    # verify against pure-JAX f32 references
    y1_ref = _ref_forward(params, x, graph["adj_f32"], graph["pool_f32"])
    y2_ref = _ref_forward(params, x_aug, graph["adj_f32"], graph["pool_f32"])
    loss_on_kernel_y = _ref_loss(y1, y2)             # isolates the loss kernel (same inputs)

    assert bool(jnp.isfinite(loss)), "non-finite loss"
    rel1 = float(jnp.linalg.norm(y1 - y1_ref) / jnp.linalg.norm(y1_ref))
    rel2 = float(jnp.linalg.norm(y2 - y2_ref) / jnp.linalg.norm(y2_ref))
    assert rel1 < 3e-2 and rel2 < 3e-2, (rel1, rel2)           # bf16 MXU operand tolerance
    assert abs(float(loss) - float(loss_on_kernel_y)) < 2e-3, \
        (float(loss), float(loss_on_kernel_y))
    print("KERNEL_OK")
</pallas_src>

<mosaic_0001>
module attributes {stable_mosaic.version = 11 : i64} {
  func.func @_gin_kernel(%arg0: i32, %arg1: i32, %arg2: memref<3x2xi32, #tpu.memory_space<smem>>, %arg3: memref<3xi32, #tpu.memory_space<smem>>, %arg4: memref<512x256xbf16, #tpu.memory_space<vmem>>, %arg5: memref<256x32xf32, #tpu.memory_space<vmem>>, %arg6: memref<512x32xf32, #tpu.memory_space<vmem>>, %arg7: memref<2x32xf32, #tpu.memory_space<vmem>>, %arg8: memref<32x64xf32, #tpu.memory_space<vmem>>, %arg9: memref<1x64xf32, #tpu.memory_space<vmem>>, %arg10: memref<64x64xf32, #tpu.memory_space<vmem>>, %arg11: memref<1x64xf32, #tpu.memory_space<vmem>>, %arg12: memref<512x64xf32, #tpu.memory_space<vmem>>, %arg13: memref<1x2x64xf32, #tpu.memory_space<vmem>>, %arg14: memref<512x32xf32, #tpu.memory_space<vmem>>) attributes {dimension_semantics = [#tpu.dimension_semantics<parallel>, #tpu.dimension_semantics<arbitrary>], iteration_bounds = array<i64: 3, 2>, scalar_prefetch = 2 : i64, scratch_operands = 1 : i64, tpu.core_type = #tpu.core_type<tc>, window_params = [{transform_indices = @transform_0, window_bounds = array<i64: 512, 256>}, {transform_indices = @transform_1, window_bounds = array<i64: 256, 32>}, {transform_indices = @transform_2, window_bounds = array<i64: 512, 32>}, {pipeline_mode = #tpu.pipeline_mode<synchronous>, transform_indices = @transform_3, window_bounds = array<i64: 2, 32>}, {pipeline_mode = #tpu.pipeline_mode<synchronous>, transform_indices = @transform_4, window_bounds = array<i64: 32, 64>}, {pipeline_mode = #tpu.pipeline_mode<synchronous>, transform_indices = @transform_5, window_bounds = array<i64: 1, 64>}, {pipeline_mode = #tpu.pipeline_mode<synchronous>, transform_indices = @transform_6, window_bounds = array<i64: 64, 64>}, {pipeline_mode = #tpu.pipeline_mode<synchronous>, transform_indices = @transform_7, window_bounds = array<i64: 1, 64>}, {transform_indices = @transform_8, window_bounds = array<i64: 512, 64>}, {transform_indices = @transform_9, window_bounds = array<i64: 1, 2, 64>}]} {
    %c0_i32 = arith.constant 0 : i32
    %0 = arith.cmpi eq, %arg1, %c0_i32 : i32
    %1 = arith.extui %0 : i1 to i32
    %c0_i32_0 = arith.constant 0 : i32
    %2 = arith.cmpi ne, %1, %c0_i32_0 : i32
    scf.if %2 {
      %cst = arith.constant 0.000000e+00 : f32
      %11 = vector.broadcast %cst : f32 to vector<512x32xf32>
      %c0 = arith.constant 0 : index
      %c0_3 = arith.constant 0 : index
      %12 = vector.load %arg14[%c0, %c0_3] : memref<512x32xf32, #tpu.memory_space<vmem>>, vector<512x32xf32>
      tpu.vector_store %arg14[%c0, %c0_3], %11 {strides = array<i32>} : memref<512x32xf32, #tpu.memory_space<vmem>>, vector<512x32xf32>,
    } else {
    }
    %3 = arith.index_cast %arg0 : i32 to index
    %4 = memref.load %arg3[%3] : memref<3xi32, #tpu.memory_space<smem>>
    %5 = arith.cmpi slt, %arg1, %4 : i32
    %6 = arith.extui %5 : i1 to i32
    %c0_i32_1 = arith.constant 0 : i32
    %7 = arith.cmpi ne, %6, %c0_i32_1 : i32
    scf.if %7 {
      %c0 = arith.constant 0 : index
      %c0_3 = arith.constant 0 : index
      %11 = vector.load %arg5[%c0, %c0_3] : memref<256x32xf32, #tpu.memory_space<vmem>>, vector<256x32xf32>
      %c0_4 = arith.constant 0 : index
      %c0_5 = arith.constant 0 : index
      %12 = vector.load %arg7[%c0_4, %c0_5] : memref<2x32xf32, #tpu.memory_space<vmem>>, vector<1x32xf32>
      %13 = vector.broadcast %12 : vector<1x32xf32> to vector<256x32xf32>
      %14 = arith.subf %11, %13 : vector<256x32xf32>
      %c1 = arith.constant 1 : index
      %c0_6 = arith.constant 0 : index
      %15 = vector.load %arg7[%c1, %c0_6] : memref<2x32xf32, #tpu.memory_space<vmem>>, vector<1x32xf32>
      %16 = vector.broadcast %15 : vector<1x32xf32> to vector<256x32xf32>
      %17 = arith.mulf %14, %16 : vector<256x32xf32>
      %c0_7 = arith.constant 0 : index
      %c0_8 = arith.constant 0 : index
      %18 = vector.load %arg14[%c0_7, %c0_8] : memref<512x32xf32, #tpu.memory_space<vmem>>, vector<512x32xf32>
      %c0_9 = arith.constant 0 : index
      %c0_10 = arith.constant 0 : index
      %19 = vector.load %arg4[%c0_9, %c0_10] : memref<512x256xbf16, #tpu.memory_space<vmem>>, vector<512x256xbf16>
      %20 = arith.truncf %17 : vector<256x32xf32> to vector<256x32xbf16>
      %cst = arith.constant dense<0.000000e+00> : vector<512x32xf32>
      %21 = tpu.matmul %19, %20, %cst {dimension_numbers = #tpu.dot_dimension_numbers<[1], [0], [0], [1], [0, 0, 1, 1], [], []>} : vector<512x256xbf16>, vector<256x32xbf16>, vector<512x32xf32> -> vector<512x32xf32>
      %22 = arith.addf %18, %21 : vector<512x32xf32>
      %c0_11 = arith.constant 0 : index
      %c0_12 = arith.constant 0 : index
      %23 = vector.load %arg14[%c0_11, %c0_12] : memref<512x32xf32, #tpu.memory_space<vmem>>, vector<512x32xf32>
      tpu.vector_store %arg14[%c0_11, %c0_12], %22 {strides = array<i32>} : memref<512x32xf32, #tpu.memory_space<vmem>>, vector<512x32xf32>,
    } else {
    }
    %c1_i32 = arith.constant 1 : i32
    %8 = arith.cmpi eq, %arg1, %c1_i32 : i32
    %9 = arith.extui %8 : i1 to i32
    %c0_i32_2 = arith.constant 0 : i32
    %10 = arith.cmpi ne, %9, %c0_i32_2 : i32
    scf.if %10 {
      %c0 = arith.constant 0 : index
      %c0_3 = arith.constant 0 : index
      %11 = vector.load %arg6[%c0, %c0_3] : memref<512x32xf32, #tpu.memory_space<vmem>>, vector<512x32xf32>
      %c0_4 = arith.constant 0 : index
      %c0_5 = arith.constant 0 : index
      %12 = vector.load %arg7[%c0_4, %c0_5] : memref<2x32xf32, #tpu.memory_space<vmem>>, vector<1x32xf32>
      %13 = vector.broadcast %12 : vector<1x32xf32> to vector<512x32xf32>
      %14 = arith.subf %11, %13 : vector<512x32xf32>
      %c1 = arith.constant 1 : index
      %c0_6 = arith.constant 0 : index
      %15 = vector.load %arg7[%c1, %c0_6] : memref<2x32xf32, #tpu.memory_space<vmem>>, vector<1x32xf32>
      %16 = vector.broadcast %15 : vector<1x32xf32> to vector<512x32xf32>
      %17 = arith.mulf %14, %16 : vector<512x32xf32>
      %c0_7 = arith.constant 0 : index
      %c0_8 = arith.constant 0 : index
      %18 = vector.load %arg14[%c0_7, %c0_8] : memref<512x32xf32, #tpu.memory_space<vmem>>, vector<512x32xf32>
      %19 = arith.addf %17, %18 : vector<512x32xf32>
      %c0_9 = arith.constant 0 : index
      %c0_10 = arith.constant 0 : index
      %20 = vector.load %arg8[%c0_9, %c0_10] : memref<32x64xf32, #tpu.memory_space<vmem>>, vector<32x64xf32>
      %cst = arith.constant dense<0.000000e+00> : vector<512x64xf32>
      %21 = tpu.matmul %19, %20, %cst {dimension_numbers = #tpu.dot_dimension_numbers<[1], [0], [0], [1], [0, 0, 1, 1], [], []>} : vector<512x32xf32>, vector<32x64xf32>, vector<512x64xf32> -> vector<512x64xf32>
      %c0_11 = arith.constant 0 : index
      %c0_12 = arith.constant 0 : index
      %22 = vector.load %arg9[%c0_11, %c0_12] : memref<1x64xf32, #tpu.memory_space<vmem>>, vector<1x64xf32>
      %23 = vector.broadcast %22 : vector<1x64xf32> to vector<512x64xf32>
      %24 = arith.addf %21, %23 : vector<512x64xf32>
      %cst_13 = arith.constant 0.000000e+00 : f32
      %25 = vector.broadcast %cst_13 : f32 to vector<512x64xf32>
      %26 = arith.maximumf %24, %25 : vector<512x64xf32>
      %c0_14 = arith.constant 0 : index
      %c0_15 = arith.constant 0 : index
      %27 = vector.load %arg10[%c0_14, %c0_15] : memref<64x64xf32, #tpu.memory_space<vmem>>, vector<64x64xf32>
      %cst_16 = arith.constant dense<0.000000e+00> : vector<512x64xf32>
      %28 = tpu.matmul %26, %27, %cst_16 {dimension_numbers = #tpu.dot_dimension_numbers<[1], [0], [0], [1], [0, 0, 1, 1], [], []>} : vector<512x64xf32>, vector<64x64xf32>, vector<512x64xf32> -> vector<512x64xf32>
      %c0_17 = arith.constant 0 : index
      %c0_18 = arith.constant 0 : index
      %29 = vector.load %arg11[%c0_17, %c0_18] : memref<1x64xf32, #tpu.memory_space<vmem>>, vector<1x64xf32>
      %30 = vector.broadcast %29 : vector<1x64xf32> to vector<512x64xf32>
      %31 = arith.addf %28, %30 : vector<512x64xf32>
      %cst_19 = arith.constant 0.000000e+00 : f32
      %32 = vector.broadcast %cst_19 : f32 to vector<512x64xf32>
      %33 = arith.maximumf %31, %32 : vector<512x64xf32>
      %c0_20 = arith.constant 0 : index
      %c0_21 = arith.constant 0 : index
      %34 = vector.load %arg12[%c0_20, %c0_21] : memref<512x64xf32, #tpu.memory_space<vmem>>, vector<512x64xf32>
      tpu.vector_store %arg12[%c0_20, %c0_21], %33 {strides = array<i32>} : memref<512x64xf32, #tpu.memory_space<vmem>>, vector<512x64xf32>,
      %cst_22 = arith.constant dense<0.000000e+00> : vector<64xf32>
      %35 = vector.multi_reduction <add>, %33, %cst_22 [0] : vector<512x64xf32> to vector<64xf32>
      %36 = vector.shape_cast %35 : vector<64xf32> to vector<1x64xf32>
      %37 = arith.mulf %33, %33 : vector<512x64xf32>
      %cst_23 = arith.constant dense<0.000000e+00> : vector<64xf32>
      %38 = vector.multi_reduction <add>, %37, %cst_23 [0] : vector<512x64xf32> to vector<64xf32>
      %39 = vector.shape_cast %38 : vector<64xf32> to vector<1x64xf32>
      %40 = tpu.concatenate %36, %39 in 0 : vector<1x64xf32>, vector<1x64xf32> -> vector<2x64xf32>
      %c0_24 = arith.constant 0 : index
      %c0_25 = arith.constant 0 : index
      %c0_26 = arith.constant 0 : index
      %41 = vector.load %arg13[%c0_24, %c0_25, %c0_26] : memref<1x2x64xf32, #tpu.memory_space<vmem>>, vector<1x2x64xf32>
      %42 = vector.shape_cast %41 : vector<1x2x64xf32> to vector<2x64xf32>
      %43 = vector.shape_cast %40 : vector<2x64xf32> to vector<1x2x64xf32>
      tpu.vector_store %arg13[%c0_24, %c0_25, %c0_26], %43 {strides = array<i32>} : memref<1x2x64xf32, #tpu.memory_space<vmem>>, vector<1x2x64xf32>,
    } else {
    }
    return
  }
  func.func @transform_0(%arg0: i32, %arg1: i32, %arg2: memref<3x2xi32, #tpu.memory_space<smem>>, %arg3: memref<3xi32, #tpu.memory_space<smem>>) -> (i32, i32) {
    %0 = arith.index_cast %arg0 : i32 to index
    %1 = arith.index_cast %arg1 : i32 to index
    %2 = memref.load %arg2[%0, %1] : memref<3x2xi32, #tpu.memory_space<smem>>
    %c0_i32 = arith.constant 0 : i32
    return %arg0, %2 : i32, i32
  }
  func.func @transform_1(%arg0: i32, %arg1: i32, %arg2: memref<3x2xi32, #tpu.memory_space<smem>>, %arg3: memref<3xi32, #tpu.memory_space<smem>>) -> (i32, i32) {
    %0 = arith.index_cast %arg0 : i32 to index
    %1 = arith.index_cast %arg1 : i32 to index
    %2 = memref.load %arg2[%0, %1] : memref<3x2xi32, #tpu.memory_space<smem>>
    %c0_i32 = arith.constant 0 : i32
    %c0_i32_0 = arith.constant 0 : i32
    return %2, %c0_i32 : i32, i32
  }
  func.func @transform_2(%arg0: i32, %arg1: i32, %arg2: memref<3x2xi32, #tpu.memory_space<smem>>, %arg3: memref<3xi32, #tpu.memory_space<smem>>) -> (i32, i32) {
    %c0_i32 = arith.constant 0 : i32
    %c0_i32_0 = arith.constant 0 : i32
    return %arg0, %c0_i32 : i32, i32
  }
  func.func @transform_3(%arg0: i32, %arg1: i32, %arg2: memref<3x2xi32, #tpu.memory_space<smem>>, %arg3: memref<3xi32, #tpu.memory_space<smem>>) -> (i32, i32) {
    %c0_i32 = arith.constant 0 : i32
    %c0_i32_0 = arith.constant 0 : i32
    %c0_i32_1 = arith.constant 0 : i32
    return %c0_i32, %c0_i32_0 : i32, i32
  }
  func.func @transform_4(%arg0: i32, %arg1: i32, %arg2: memref<3x2xi32, #tpu.memory_space<smem>>, %arg3: memref<3xi32, #tpu.memory_space<smem>>) -> (i32, i32) {
    %c0_i32 = arith.constant 0 : i32
    %c0_i32_0 = arith.constant 0 : i32
    %c0_i32_1 = arith.constant 0 : i32
    return %c0_i32, %c0_i32_0 : i32, i32
  }
  func.func @transform_5(%arg0: i32, %arg1: i32, %arg2: memref<3x2xi32, #tpu.memory_space<smem>>, %arg3: memref<3xi32, #tpu.memory_space<smem>>) -> (i32, i32) {
    %c0_i32 = arith.constant 0 : i32
    %c0_i32_0 = arith.constant 0 : i32
    %c0_i32_1 = arith.constant 0 : i32
    return %c0_i32, %c0_i32_0 : i32, i32
  }
  func.func @transform_6(%arg0: i32, %arg1: i32, %arg2: memref<3x2xi32, #tpu.memory_space<smem>>, %arg3: memref<3xi32, #tpu.memory_space<smem>>) -> (i32, i32) {
    %c0_i32 = arith.constant 0 : i32
    %c0_i32_0 = arith.constant 0 : i32
    %c0_i32_1 = arith.constant 0 : i32
    return %c0_i32, %c0_i32_0 : i32, i32
  }
  func.func @transform_7(%arg0: i32, %arg1: i32, %arg2: memref<3x2xi32, #tpu.memory_space<smem>>, %arg3: memref<3xi32, #tpu.memory_space<smem>>) -> (i32, i32) {
    %c0_i32 = arith.constant 0 : i32
    %c0_i32_0 = arith.constant 0 : i32
    %c0_i32_1 = arith.constant 0 : i32
    return %c0_i32, %c0_i32_0 : i32, i32
  }
  func.func @transform_8(%arg0: i32, %arg1: i32, %arg2: memref<3x2xi32, #tpu.memory_space<smem>>, %arg3: memref<3xi32, #tpu.memory_space<smem>>) -> (i32, i32) {
    %c0_i32 = arith.constant 0 : i32
    %c0_i32_0 = arith.constant 0 : i32
    return %arg0, %c0_i32 : i32, i32
  }
  func.func @transform_9(%arg0: i32, %arg1: i32, %arg2: memref<3x2xi32, #tpu.memory_space<smem>>, %arg3: memref<3xi32, #tpu.memory_space<smem>>) -> (i32, i32, i32) {
    %c0_i32 = arith.constant 0 : i32
    %c0_i32_0 = arith.constant 0 : i32
    %c0_i32_1 = arith.constant 0 : i32
    return %arg0, %c0_i32, %c0_i32_0 : i32, i32, i32
  }
}

</mosaic_0001>

<llo_original>
// kernel: tpu_custom_call.1
$region0: #{tpu_custom_call.1}
  #allocation0 [shape = 'u32[]', space=smem, size = 0x4, offset = 0x4, fixed_abs, tag = 'smem constant byte address 0x4 - core index']
  #allocation1 [shape = 'u32[144,128]{1,0:T(1,128)}', space=vmem, size = 0x12000, scoped, tag = 'internal scratch']
  #allocation2 [shape = 'f32[512,32]{1,0:T(8,128)}', space=vmem, size = 0x40000, scoped, tag = 'scratch operand']
  #allocation3 [shape = 's32[1]{0}', space=sflag, size = 0x4, scoped, tag = 'scoped memory for tpu_custom_call.1']
  #allocation4 [shape = 'u8[2048]{0}', space=smem, size = 0x800, scoped, tag = 'prefetched SMEM operand 0']
  #allocation5 [shape = 'u8[512]{0}', space=smem, size = 0x200, scoped, tag = 'prefetched SMEM operand 1']
  %s0 = inlined_call_operand.vmem [shape: s32[3,2], index: 0, kind: input, shape index: {}]
  %s1 = inlined_call_operand.hbm [shape: s32[3], index: 1, kind: input, shape index: {}]
  %s2 = inlined_call_operand.hbm [shape: bf16[1536,1536], index: 2, kind: input, shape index: {}]
  %s3 = inlined_call_operand.vmem [shape: f32[1536,32], index: 3, kind: input, shape index: {}]
  %s4 = inlined_call_operand.vmem [shape: f32[1536,32], index: 4, kind: input, shape index: {}]
  %s5 = inlined_call_operand.hbm [shape: f32[2,32], index: 5, kind: input, shape index: {}]
  %s6 = inlined_call_operand.hbm [shape: f32[32,64], index: 6, kind: input, shape index: {}]
  %s7 = inlined_call_operand.hbm [shape: f32[1,64], index: 7, kind: input, shape index: {}]
  %s8 = inlined_call_operand.hbm [shape: f32[64,64], index: 8, kind: input, shape index: {}]
  %s9 = inlined_call_operand.hbm [shape: f32[1,64], index: 9, kind: input, shape index: {}]
  %s10 = inlined_call_operand.vmem [shape: f32[1536,64], index: 10, kind: output, shape index: {0}]
  %s11 = inlined_call_operand.hbm [shape: f32[3,2,64], index: 11, kind: output, shape index: {1}]
  %12 = xla_tuple %s10, %s11
  %s13 = sld [smem:[#allocation0]]
  $region109: #{tpu_custom_call.1} parent=0
    _
  %s15 = ssub.s32 1, %s13
  %s16 = scalar_select 0, %s15, %s13
  %s17 = sshll.u32 %s0, 4
  %s18 = int_to_ptr.vmem [resolvable:$true] %s17
  %20 = dma.vmem_to_smem %s18, 64, [#allocation4], [#allocation3]
  %22 = dma.hbm_to_smem %s1, 16, [#allocation5], [#allocation3]
  %23 = dma.done [#allocation3], 80
  %24 = sfence
  $region1: #{tpu_custom_call.1} parent=0
    #allocation6 [shape = 'u8[524288]{0}', space=vmem, size = 0x80000, scoped, tag = 'input window, operand 2']
    #allocation7 [shape = 's32[2]{0}', space=sflag, size = 0x8, scoped, tag = 'scoped memory for tpu_custom_call.1']
    #allocation8 [shape = 's32[2]{0}', space=sflag, size = 0x8, scoped, tag = 'scoped memory for tpu_custom_call.1']
    #allocation9 [shape = 'u8[1024]{0}', space=vmem, size = 0x400, scoped, tag = 'input window, operand 5, single buffered']
    #allocation10 [shape = 's32[1]{0}', space=sflag, size = 0x4, scoped, tag = 'scoped memory for tpu_custom_call.1']
    #allocation11 [shape = 'u8[16384]{0}', space=vmem, size = 0x4000, scoped, tag = 'input window, operand 6, single buffered']
    #allocation12 [shape = 'u8[512]{0}', space=vmem, size = 0x400, scoped, tag = 'input window, operand 7, single buffered']
    #allocation13 [shape = 's32[1]{0}', space=sflag, size = 0x4, scoped, tag = 'scoped memory for tpu_custom_call.1']
    #allocation14 [shape = 'u8[32768]{0}', space=vmem, size = 0x8000, scoped, tag = 'input window, operand 8, single buffered']
    #allocation15 [shape = 'u8[512]{0}', space=vmem, size = 0x400, scoped, tag = 'input window, operand 9, single buffered']
    #allocation16 [shape = 's32[1]{0}', space=sflag, size = 0x4, scoped, tag = 'scoped memory for tpu_custom_call.1']
    #allocation17 [shape = 'u8[2048]{0}', space=vmem, size = 0x800, scoped, tag = 'output window, operand 1']
    %25 = vsyncpa [#allocation7], 0
    %s26 = scalar_lea.sflag [#allocation7], 1
    %27 = vsyncpa %s26, 0
    %28 = vsyncpa [#allocation10], 0
    %29 = vsyncpa [#allocation13], 0
    %30 = vsyncpa [#allocation16], 0
    %31 = vsyncpa [#allocation8], 0
    %s32 = scalar_lea.sflag [#allocation8], 1
    %33 = vsyncpa %s32, 0
    loop: start=0, step=1, limit=8
    $region2: #{tpu_custom_call.1} parent=1 // loop_pre_header
      _
    $region3: #{tpu_custom_call.1} parent=1 // loop_header
      %s35 = sphi 0, %s39
      %p36 = scmp.ge.s32.totalorder %s35, 8
      %s42 = sphi 0, %s54
      %s43 = sphi 0, %s50
      %s44 = sphi 0, %s42
      %s45 = sphi 0, %s43
      %s46 = sphi 0, %s44
      %s47 = sphi 0, %s45
      %s75 = sphi 0, %s77
      %s78 = sphi 0, %s75
      %s79 = sphi 0, %s78
      %s95 = sphi 0, %s79
      %s117 = sphi 0, %s119
      %s120 = sphi 0, %s117
      %s121 = sphi 0, %s120
      %s137 = sphi 0, %s121
      %s143 = sphi 0, %s145
      %s146 = sphi 0, %s143
      %s147 = sphi 0, %s146
      %s163 = sphi 0, %s147
      %s167 = sphi 0, %s167
      %s169 = sphi 0, %s167
      %s170 = sphi 0, %s169
      %s184 = sphi 0, %s170
      %s188 = sphi 0, %s188
      %s190 = sphi 0, %s188
      %s191 = sphi 0, %s190
      %s205 = sphi 0, %s191
      %s209 = sphi 0, %s209
      %s211 = sphi 0, %s209
      %s212 = sphi 0, %s211
      %s226 = sphi 0, %s212
      %s230 = sphi 0, %s230
      %s232 = sphi 0, %s230
      %s233 = sphi 0, %s232
      %s247 = sphi 0, %s233
      %s251 = sphi 0, %s251
      %s253 = sphi 0, %s251
      %s254 = sphi 0, %s253
      %s268 = sphi 0, %s254
      %s274 = sphi 0, %s276
      %s277 = sphi 0, %s274
      %s278 = sphi 0, %s277
      %s294 = sphi 0, %s278
      %s300 = sphi 0, %s302
      %s303 = sphi 0, %s300
      %s304 = sphi 0, %s303
      %s320 = sphi 0, %s304
    $region4: #{tpu_custom_call.1} parent=1 // loop_header_branch
      %38 = sbr.rel (%p36) target = $region8
    $region5: #{tpu_custom_call.1} parent=1 // loop_body
      %s40 = ssub.s32 %s35, 1
      %s41 = ssub.s32 %s35, 2
      %s48 = sadd.s32 1, %s43
      %p49 = scmp.ge.s32.totalorder %s48, 2
      %s50 = scalar_select %p49, 0, %s48
      %s51 = sadd.s32 1, %s42
      %s52 = scalar_select %p49, %s51, %s42
      %p53 = scmp.ge.s32.totalorder %s52, 3
      %s54 = scalar_select %p53, 0, %s52
      %s55 = sshra.s32 %s43, 7
      %s56 = sand.u32 %s43, 127
      %s57 = sadd.s32 %s55, %s42
      %s58 = smul.u32 %s57, 128
      %s59 = sshra.s32 %s43, 7
      %s60 = sand.u32 %s43, 127
      %s61 = sadd.s32 %s58, %s60
      %s62 = sld [smem:[#allocation4 + %s61]]
      %s63 = sshra.s32 %s50, 7
      %s64 = sand.u32 %s50, 127
      %s65 = sadd.s32 %s63, %s54
      %s66 = smul.u32 %s65, 128
      %s67 = sshra.s32 %s50, 7
      %s68 = sand.u32 %s50, 127
      %s69 = sadd.s32 %s66, %s68
      %s70 = sld [smem:[#allocation4 + %s69]]
      %s71 = ssub.s32 %s42, %s54
      %s72 = ssub.s32 %s62, %s70
      %s73 = sor.u32 %s71, %s72
      %p74 = scmp.eq.s32.totalorder %s73, 0
      %s76 = sadd.s32 %s75, 1
      %s77 = scalar_select %p74, %s75, %s76
      %p80 = pneg %p74
      %p81 = scmp.eq.s32.totalorder %s35, 5
      %p82 = por %p80, %p81
      %p83 = scmp.ne.s32.totalorder %s75, %s78
      %p84 = scmp.eq.s32.totalorder %s35, 0
      %p85 = por %p83, %p84
      %p86 = scmp.ne.s32.totalorder %s75, %s78
      %p87 = scmp.eq.s32.totalorder %s40, 5
      %p88 = por %p86, %p87
      %p89 = scmp.ne.s32.totalorder %s78, %s79
      %p90 = scmp.eq.s32.totalorder %s40, 0
      %p91 = por %p89, %p90
      %p92 = scmp.ne.s32.totalorder %s78, %s79
      %p93 = scmp.eq.s32.totalorder %s41, 5
      %p94 = por %p92, %p93
      %p96 = scmp.ne.s32.totalorder %s79, %s95
      %p97 = scmp.eq.s32.totalorder %s41, 0
      %p98 = por %p96, %p97
      %s99 = sshra.s32 %s43, 7
      %s100 = sand.u32 %s43, 127
      %s101 = sadd.s32 %s99, %s42
      %s102 = smul.u32 %s101, 128
      %s103 = sshra.s32 %s43, 7
      %s104 = sand.u32 %s43, 127
      %s105 = sadd.s32 %s102, %s104
      %s106 = sld [smem:[#allocation4 + %s105]]
      %s107 = sshra.s32 %s50, 7
      %s108 = sand.u32 %s50, 127
      %s109 = sadd.s32 %s107, %s54
      %s110 = smul.u32 %s109, 128
      %s111 = sshra.s32 %s50, 7
      %s112 = sand.u32 %s50, 127
      %s113 = sadd.s32 %s110, %s112
      %s114 = sld [smem:[#allocation4 + %s113]]
      %s115 = ssub.s32 %s106, %s114
      %p116 = scmp.eq.s32.totalorder %s115, 0
      %s118 = sadd.s32 %s117, 1
      %s119 = scalar_select %p116, %s117, %s118
      %p122 = pneg %p116
      %p123 = scmp.eq.s32.totalorder %s35, 5
      %p124 = por %p122, %p123
      %p125 = scmp.ne.s32.totalorder %s117, %s120
      %p126 = scmp.eq.s32.totalorder %s35, 0
      %p127 = por %p125, %p126
      %p128 = scmp.ne.s32.totalorder %s117, %s120
      %p129 = scmp.eq.s32.totalorder %s40, 5
      %p130 = por %p128, %p129
      %p131 = scmp.ne.s32.totalorder %s120, %s121
      %p132 = scmp.eq.s32.totalorder %s40, 0
      %p133 = por %p131, %p132
      %p134 = scmp.ne.s32.totalorder %s120, %s121
      %p135 = scmp.eq.s32.totalorder %s41, 5
      %p136 = por %p134, %p135
      %p138 = scmp.ne.s32.totalorder %s121, %s137
      %p139 = scmp.eq.s32.totalorder %s41, 0
      %p140 = por %p138, %p139
      %s141 = ssub.s32 %s42, %s54
      %p142 = scmp.eq.s32.totalorder %s141, 0
      %s144 = sadd.s32 %s143, 1
      %s145 = scalar_select %p142, %s143, %s144
      %p148 = pneg %p142
      %p149 = scmp.eq.s32.totalorder %s35, 5
      %p150 = por %p148, %p149
      %p151 = scmp.ne.s32.totalorder %s143, %s146
      %p152 = scmp.eq.s32.totalorder %s35, 0
      %p153 = por %p151, %p152
      %p154 = scmp.ne.s32.totalorder %s143, %s146
      %p155 = scmp.eq.s32.totalorder %s40, 5
      %p156 = por %p154, %p155
      %p157 = scmp.ne.s32.totalorder %s146, %s147
      %p158 = scmp.eq.s32.totalorder %s40, 0
      %p159 = por %p157, %p158
      %p160 = scmp.ne.s32.totalorder %s146, %s147
      %p161 = scmp.eq.s32.totalorder %s41, 5
      %p162 = por %p160, %p161
      %p164 = scmp.ne.s32.totalorder %s147, %s163
      %p165 = scmp.eq.s32.totalorder %s41, 0
      %p166 = por %p164, %p165
      %s168 = sadd.s32 %s167, 1
      %p171 = scmp.eq.s32.totalorder %s35, 5
      %p172 = scmp.ne.s32.totalorder %s167, %s169
      %p173 = scmp.eq.s32.totalorder %s35, 0
      %p174 = por %p172, %p173
      %p175 = scmp.ne.s32.totalorder %s167, %s169
      %p176 = scmp.eq.s32.totalorder %s40, 5
      %p177 = por %p175, %p176
      %p178 = scmp.ne.s32.totalorder %s169, %s170
      %p179 = scmp.eq.s32.totalorder %s40, 0
      %p180 = por %p178, %p179
      %p181 = scmp.ne.s32.totalorder %s169, %s170
      %p182 = scmp.eq.s32.totalorder %s41, 5
      %p183 = por %p181, %p182
      %p185 = scmp.ne.s32.totalorder %s170, %s184
      %p186 = scmp.eq.s32.totalorder %s41, 0
      %p187 = por %p185, %p186
      %s189 = sadd.s32 %s188, 1
      %p192 = scmp.eq.s32.totalorder %s35, 5
      %p193 = scmp.ne.s32.totalorder %s188, %s190
      %p194 = scmp.eq.s32.totalorder %s35, 0
      %p195 = por %p193, %p194
      %p196 = scmp.ne.s32.totalorder %s188, %s190
      %p197 = scmp.eq.s32.totalorder %s40, 5
      %p198 = por %p196, %p197
      %p199 = scmp.ne.s32.totalorder %s190, %s191
      %p200 = scmp.eq.s32.totalorder %s40, 0
      %p201 = por %p199, %p200
      %p202 = scmp.ne.s32.totalorder %s190, %s191
      %p203 = scmp.eq.s32.totalorder %s41, 5
      %p204 = por %p202, %p203
      %p206 = scmp.ne.s32.totalorder %s191, %s205
      %p207 = scmp.eq.s32.totalorder %s41, 0
      %p208 = por %p206, %p207
      %s210 = sadd.s32 %s209, 1
      %p213 = scmp.eq.s32.totalorder %s35, 5
      %p214 = scmp.ne.s32.totalorder %s209, %s211
      %p215 = scmp.eq.s32.totalorder %s35, 0
      %p216 = por %p214, %p215
      %p217 = scmp.ne.s32.totalorder %s209, %s211
      %p218 = scmp.eq.s32.totalorder %s40, 5
      %p219 = por %p217, %p218
      %p220 = scmp.ne.s32.totalorder %s211, %s212
      %p221 = scmp.eq.s32.totalorder %s40, 0
      %p222 = por %p220, %p221
      %p223 = scmp.ne.s32.totalorder %s211, %s212
      %p224 = scmp.eq.s32.totalorder %s41, 5
      %p225 = por %p223, %p224
      %p227 = scmp.ne.s32.totalorder %s212, %s226
      %p228 = scmp.eq.s32.totalorder %s41, 0
      %p229 = por %p227, %p228
      %s231 = sadd.s32 %s230, 1
      %p234 = scmp.eq.s32.totalorder %s35, 5
      %p235 = scmp.ne.s32.totalorder %s230, %s232
      %p236 = scmp.eq.s32.totalorder %s35, 0
      %p237 = por %p235, %p236
      %p238 = scmp.ne.s32.totalorder %s230, %s232
      %p239 = scmp.eq.s32.totalorder %s40, 5
      %p240 = por %p238, %p239
      %p241 = scmp.ne.s32.totalorder %s232, %s233
      %p242 = scmp.eq.s32.totalorder %s40, 0
      %p243 = por %p241, %p242
      %p244 = scmp.ne.s32.totalorder %s232, %s233
      %p245 = scmp.eq.s32.totalorder %s41, 5
      %p246 = por %p244, %p245
      %p248 = scmp.ne.s32.totalorder %s233, %s247
      %p249 = scmp.eq.s32.totalorder %s41, 0
      %p250 = por %p248, %p249
      %s252 = sadd.s32 %s251, 1
      %p255 = scmp.eq.s32.totalorder %s35, 5
      %p256 = scmp.ne.s32.totalorder %s251, %s253
      %p257 = scmp.eq.s32.totalorder %s35, 0
      %p258 = por %p256, %p257
      %p259 = scmp.ne.s32.totalorder %s251, %s253
      %p260 = scmp.eq.s32.totalorder %s40, 5
      %p261 = por %p259, %p260
      %p262 = scmp.ne.s32.totalorder %s253, %s254
      %p263 = scmp.eq.s32.totalorder %s40, 0
      %p264 = por %p262, %p263
      %p265 = scmp.ne.s32.totalorder %s253, %s254
      %p266 = scmp.eq.s32.totalorder %s41, 5
      %p267 = por %p265, %p266
      %p269 = scmp.ne.s32.totalorder %s254, %s268
      %p270 = scmp.eq.s32.totalorder %s41, 0
      %p271 = por %p269, %p270
      %s272 = ssub.s32 %s42, %s54
      %p273 = scmp.eq.s32.totalorder %s272, 0
      %s275 = sadd.s32 %s274, 1
      %s276 = scalar_select %p273, %s274, %s275
      %p279 = pneg %p273
      %p280 = scmp.eq.s32.totalorder %s35, 5
      %p281 = por %p279, %p280
      %p282 = scmp.ne.s32.totalorder %s274, %s277
      %p283 = scmp.eq.s32.totalorder %s35, 0
      %p284 = por %p282, %p283
      %p285 = scmp.ne.s32.totalorder %s274, %s277
      %p286 = scmp.eq.s32.totalorder %s40, 5
      %p287 = por %p285, %p286
      %p288 = scmp.ne.s32.totalorder %s277, %s278
      %p289 = scmp.eq.s32.totalorder %s40, 0
      %p290 = por %p288, %p289
      %p291 = scmp.ne.s32.totalorder %s277, %s278
      %p292 = scmp.eq.s32.totalorder %s41, 5
      %p293 = por %p291, %p292
      %p295 = scmp.ne.s32.totalorder %s278, %s294
      %p296 = scmp.eq.s32.totalorder %s41, 0
      %p297 = por %p295, %p296
      %s298 = ssub.s32 %s42, %s54
      %p299 = scmp.eq.s32.totalorder %s298, 0
      %s301 = sadd.s32 %s300, 1
      %s302 = scalar_select %p299, %s300, %s301
      %p305 = pneg %p299
      %p306 = scmp.eq.s32.totalorder %s35, 5
      %p307 = por %p305, %p306
      %p308 = scmp.ne.s32.totalorder %s300, %s303
      %p309 = scmp.eq.s32.totalorder %s35, 0
      %p310 = por %p308, %p309
      %p311 = scmp.ne.s32.totalorder %s300, %s303
      %p312 = scmp.eq.s32.totalorder %s40, 5
      %p313 = por %p311, %p312
      %p314 = scmp.ne.s32.totalorder %s303, %s304
      %p315 = scmp.eq.s32.totalorder %s40, 0
      %p316 = por %p314, %p315
      %p317 = scmp.ne.s32.totalorder %s303, %s304
      %p318 = scmp.eq.s32.totalorder %s41, 5
      %p319 = por %p317, %p318
      %p321 = scmp.ne.s32.totalorder %s304, %s320
      %p322 = scmp.eq.s32.totalorder %s41, 0
      %p323 = por %p321, %p322
      %p324 = scmp.le.s32.totalorder 1, %s35
      %p325 = scmp.lt.s32.totalorder %s35, 7
      %p326 = pnand %p324, %p325
      %p327 = pneg %p326
      // Predicated region
      $region9: #{tpu_custom_call.1} parent=5 // pred_check
        _
      $region10: #{tpu_custom_call.1} parent=5 // pred_check_branch
        %329 = sbr.rel (%p326) target = $region12
      $region11: #{tpu_custom_call.1} parent=5 // pred_region
        %s330 = ssub.s32 %s35, 1
        // Predicated region
        $region13: #{tpu_custom_call.1} parent=11 // pred_check
          %p331 = pneg %p180
        $region14: #{tpu_custom_call.1} parent=11 // pred_check_branch
          %333 = sbr.rel (%p331) target = $region16
        $region15: #{tpu_custom_call.1} parent=11 // pred_region
          %s335 = ssub.s32 32, 32
          %336 = vsyncadd [#allocation10], %s335
          %s338 = sshll.u32 [#allocation9], 4
          %s339 = int_to_ptr.vmem [resolvable:$true] %s338
          %341 = dma.hbm_to_vmem [thread:$0]  %s5, 32, %s339, [#allocation10]
        $region16: #{tpu_custom_call.1} parent=11 // pred_fallthru
          _
        // Predicated region
        $region17: #{tpu_custom_call.1} parent=11 // pred_check
          %p342 = pneg %p201
        $region18: #{tpu_custom_call.1} parent=11 // pred_check_branch
          %344 = sbr.rel (%p342) target = $region20
        $region19: #{tpu_custom_call.1} parent=11 // pred_region
          %s346 = ssub.s32 512, 512
          %347 = vsyncadd [#allocation10], %s346
          %s348 = sshll.u32 [#allocation11], 4
          %s349 = int_to_ptr.vmem [resolvable:$true] %s348
          %354 = dma.hbm_to_vmem [thread:$0]  %s6, 512, %s349, [#allocation10], 128, 128, 8
        $region20: #{tpu_custom_call.1} parent=11 // pred_fallthru
          _
        // Predicated region
        $region21: #{tpu_custom_call.1} parent=11 // pred_check
          %p355 = pneg %p222
        $region22: #{tpu_custom_call.1} parent=11 // pred_check_branch
          %357 = sbr.rel (%p355) target = $region24
        $region23: #{tpu_custom_call.1} parent=11 // pred_region
          %s359 = ssub.s32 16, 16
          %360 = vsyncadd [#allocation13], %s359
          %s362 = sshll.u32 [#allocation12], 4
          %s363 = int_to_ptr.vmem [resolvable:$true] %s362
          %365 = dma.hbm_to_vmem [thread:$0]  %s7, 16, %s363, [#allocation13]
        $region24: #{tpu_custom_call.1} parent=11 // pred_fallthru
          _
        // Predicated region
        $region25: #{tpu_custom_call.1} parent=11 // pred_check
          %p366 = pneg %p243
        $region26: #{tpu_custom_call.1} parent=11 // pred_check_branch
          %368 = sbr.rel (%p366) target = $region28
        $region27: #{tpu_custom_call.1} parent=11 // pred_region
          %s370 = ssub.s32 1024, 1024
          %371 = vsyncadd [#allocation13], %s370
          %s372 = sshll.u32 [#allocation14], 4
          %s373 = int_to_ptr.vmem [resolvable:$true] %s372
          %378 = dma.hbm_to_vmem [thread:$0]  %s8, 1024, %s373, [#allocation13], 128, 128, 8
        $region28: #{tpu_custom_call.1} parent=11 // pred_fallthru
          _
        // Predicated region
        $region29: #{tpu_custom_call.1} parent=11 // pred_check
          %p379 = pneg %p264
        $region30: #{tpu_custom_call.1} parent=11 // pred_check_branch
          %381 = sbr.rel (%p379) target = $region32
        $region31: #{tpu_custom_call.1} parent=11 // pred_region
          %s383 = ssub.s32 16, 16
          %384 = vsyncadd [#allocation16], %s383
          %s386 = sshll.u32 [#allocation15], 4
          %s387 = int_to_ptr.vmem [resolvable:$true] %s386
          %389 = dma.hbm_to_vmem [thread:$0]  %s9, 16, %s387, [#allocation16]
        $region32: #{tpu_custom_call.1} parent=11 // pred_fallthru
          _
      $region12: #{tpu_custom_call.1} parent=5 // pred_fallthru
        _
      %p390 = scmp.lt.s32.totalorder %s35, 6
      // Predicated region
      $region33: #{tpu_custom_call.1} parent=5 // pred_check
        %p391 = pneg %p390
      $region34: #{tpu_custom_call.1} parent=5 // pred_check_branch
        %393 = sbr.rel (%p391) target = $region36
      $region35: #{tpu_custom_call.1} parent=5 // pred_region
        // Predicated region
        $region37: #{tpu_custom_call.1} parent=35 // pred_check
          %p394 = pneg %p85
        $region38: #{tpu_custom_call.1} parent=35 // pred_check_branch
          %396 = sbr.rel (%p394) target = $region40
        $region39: #{tpu_custom_call.1} parent=35 // pred_region
          %s397 = sand.u32 %s75, 1
          %s398 = scalar_lea.sflag [#allocation7], %s397
          %s399 = sand.u32 %s75, 1
          %s400 = smul.addr %s399, 512
          %s401 = scalar_lea.vmem [#allocation6], %s400
          %s402 = sshra.s32 %s43, 7
          %s403 = sand.u32 %s43, 127
          %s404 = sadd.s32 %s402, %s42
          %s405 = smul.u32 %s404, 128
          %s406 = sshra.s32 %s43, 7
          %s407 = sand.u32 %s43, 127
          %s408 = sadd.s32 %s405, %s407
          %s409 = sld [smem:[#allocation4 + %s408]]
          %s410 = smul.u32 64, %s42
          %s411 = smul.u32 2, %s409
          %s413 = ssub.s32 8192, 8192
          %414 = vsyncadd %s398, %s413
          %s415 = smul.addr %s410, 12
          %s416 = sadd.s32 %s411, %s415
          %s417 = smul.addr %s416, 64
          %s418 = scalar_lea.hbm %s2, %s417
          %s419 = sshll.u32 %s401, 4
          %s420 = int_to_ptr.vmem [resolvable:$true] %s419
          %425 = dma.hbm_to_vmem [thread:$0]  %s418, 8192, %s420, %s398, 768, 128, 8
        $region40: #{tpu_custom_call.1} parent=35 // pred_fallthru
          _
        // Predicated region
        $region41: #{tpu_custom_call.1} parent=35 // pred_check
          %p426 = pneg %p127
        $region42: #{tpu_custom_call.1} parent=35 // pred_check_branch
          %428 = sbr.rel (%p426) target = $region44
        $region43: #{tpu_custom_call.1} parent=35 // pred_region
          %s429 = sshra.s32 %s43, 7
          %s430 = sand.u32 %s43, 127
          %s431 = sadd.s32 %s429, %s42
          %s432 = smul.u32 %s431, 128
          %s433 = sshra.s32 %s43, 7
          %s434 = sand.u32 %s43, 127
          %s435 = sadd.s32 %s432, %s434
          %s436 = sld [smem:[#allocation4 + %s435]]
          %s437 = smul.u32 32, %s436
          %p438 = scmp.lt.s32.totalorder %s437, 191
          %s439 = scalar_select %p438, %s437, 191
          %s440 = smul.addr %s439, 8
          %s441 = scalar_lea.vmem %s3, %s440
          %s442 = sshra.s32 %s43, 7
          %s443 = sand.u32 %s43, 127
          %s444 = sadd.s32 %s442, %s42
          %s445 = smul.u32 %s444, 128
          %s446 = sshra.s32 %s43, 7
          %s447 = sand.u32 %s43, 127
          %s448 = sadd.s32 %s445, %s447
          %s449 = sld [smem:[#allocation4 + %s448]]
          %s450 = smul.u32 32, %s449
        $region44: #{tpu_custom_call.1} parent=35 // pred_fallthru
          _
        // Predicated region
        $region45: #{tpu_custom_call.1} parent=35 // pred_check
          %p451 = pneg %p153
        $region46: #{tpu_custom_call.1} parent=35 // pred_check_branch
          %453 = sbr.rel (%p451) target = $region48
        $region47: #{tpu_custom_call.1} parent=35 // pred_region
          %s454 = smul.u32 64, %s42
          %p455 = scmp.lt.s32.totalorder %s454, 191
          %s456 = scalar_select %p455, %s454, 191
          %s457 = smul.addr %s456, 8
          %s458 = scalar_lea.vmem %s4, %s457
          %s459 = smul.u32 64, %s42
        $region48: #{tpu_custom_call.1} parent=35 // pred_fallthru
          _
      $region36: #{tpu_custom_call.1} parent=5 // pred_fallthru
        _
      %p460 = scmp.le.s32.totalorder 1, %s35
      %p461 = scmp.lt.s32.totalorder %s35, 7
      %p462 = pnand %p460, %p461
      %p463 = pneg %p462
      // Predicated region
      $region49: #{tpu_custom_call.1} parent=5 // pred_check
        _
      $region50: #{tpu_custom_call.1} parent=5 // pred_check_branch
        %465 = sbr.rel (%p462) target = $region52
      $region51: #{tpu_custom_call.1} parent=5 // pred_region
        %s466 = ssub.s32 %s35, 1
        %s467 = sand.u32 %s78, 1
        %s468 = scalar_lea.sflag [#allocation7], %s467
        %s469 = sand.u32 %s78, 1
        %s470 = smul.addr %s469, 512
        %s471 = scalar_lea.vmem [#allocation6], %s470
        // Predicated region
        $region53: #{tpu_custom_call.1} parent=51 // pred_check
          %p472 = pneg %p91
        $region54: #{tpu_custom_call.1} parent=51 // pred_check_branch
          %474 = sbr.rel (%p472) target = $region56
        $region55: #{tpu_custom_call.1} parent=51 // pred_region
          %475 = dma.done %s468, 8192
        $region56: #{tpu_custom_call.1} parent=51 // pred_fallthru
          _
        // Predicated region
        $region57: #{tpu_custom_call.1} parent=51 // pred_check
          %p476 = pneg %p180
        $region58: #{tpu_custom_call.1} parent=51 // pred_check_branch
          %478 = sbr.rel (%p476) target = $region60
        $region59: #{tpu_custom_call.1} parent=51 // pred_region
          %479 = dma.done [#allocation10], 32
        $region60: #{tpu_custom_call.1} parent=51 // pred_fallthru
          _
        // Predicated region
        $region61: #{tpu_custom_call.1} parent=51 // pred_check
          %p480 = pneg %p201
        $region62: #{tpu_custom_call.1} parent=51 // pred_check_branch
          %482 = sbr.rel (%p480) target = $region64
        $region63: #{tpu_custom_call.1} parent=51 // pred_region
          %483 = dma.done [#allocation10], 512
        $region64: #{tpu_custom_call.1} parent=51 // pred_fallthru
          _
        // Predicated region
        $region65: #{tpu_custom_call.1} parent=51 // pred_check
          %p484 = pneg %p222
        $region66: #{tpu_custom_call.1} parent=51 // pred_check_branch
          %486 = sbr.rel (%p484) target = $region68
        $region67: #{tpu_custom_call.1} parent=51 // pred_region
          %487 = dma.done [#allocation13], 16
        $region68: #{tpu_custom_call.1} parent=51 // pred_fallthru
          _
        // Predicated region
        $region69: #{tpu_custom_call.1} parent=51 // pred_check
          %p488 = pneg %p243
        $region70: #{tpu_custom_call.1} parent=51 // pred_check_branch
          %490 = sbr.rel (%p488) target = $region72
        $region71: #{tpu_custom_call.1} parent=51 // pred_region
          %491 = dma.done [#allocation13], 1024
        $region72: #{tpu_custom_call.1} parent=51 // pred_fallthru
          _
        // Predicated region
        $region73: #{tpu_custom_call.1} parent=51 // pred_check
          %p492 = pneg %p264
        $region74: #{tpu_custom_call.1} parent=51 // pred_check_branch
          %494 = sbr.rel (%p492) target = $region76
        $region75: #{tpu_custom_call.1} parent=51 // pred_region
          %495 = dma.done [#allocation16], 16
        $region76: #{tpu_custom_call.1} parent=51 // pred_fallthru
          _
        %s496 = sand.u32 %s78, 1
        %s497 = scalar_lea.sflag [#allocation7], %s496
        %s498 = sand.u32 %s78, 1
        %s499 = smul.addr %s498, 512
        %s500 = scalar_lea.vmem [#allocation6], %s499
        %p501 = pneg %p91
        %p502 = pneg %p88
        %s503 = sshra.s32 %s45, 7
        %s504 = sand.u32 %s45, 127
        %s505 = sadd.s32 %s503, %s44
        %s506 = smul.u32 %s505, 128
        %s507 = sshra.s32 %s45, 7
        %s508 = sand.u32 %s45, 127
        %s509 = sadd.s32 %s506, %s508
        %s510 = sld [smem:[#allocation4 + %s509]]
        %s511 = smul.u32 32, %s510
        %p512 = scmp.lt.s32.totalorder %s511, 191
        %s513 = scalar_select %p512, %s511, 191
        %s514 = smul.addr %s513, 8
        %s515 = scalar_lea.vmem %s3, %s514
        %p516 = pneg %p133
        %p517 = pneg %p130
        %s518 = smul.u32 64, %s44
        %p519 = scmp.lt.s32.totalorder %s518, 191
        %s520 = scalar_select %p519, %s518, 191
        %s521 = smul.addr %s520, 8
        %s522 = scalar_lea.vmem %s4, %s521
        %p523 = pneg %p159
        %p524 = pneg %p156
        %p525 = pneg %p180
        %p526 = pneg %p177
        %p527 = pneg %p201
        %p528 = pneg %p198
        %p529 = pneg %p222
        %p530 = pneg %p219
        %p531 = pneg %p243
        %p532 = pneg %p240
        %p533 = pneg %p264
        %p534 = pneg %p261
        %p535 = pneg %p290
        %p536 = pneg %p287
        %s537 = smul.u32 64, %s44
        %p538 = scmp.lt.s32.totalorder %s537, 191
        %s539 = scalar_select %p538, %s537, 191
        %s540 = smul.addr %s539, 8
        %s541 = scalar_lea.vmem %s10, %s540
        %p542 = pneg %p316
        %p543 = pneg %p313
        %s544 = sand.u32 %s303, 1
        %s545 = scalar_lea.sflag [#allocation8], %s544
        %s546 = sand.u32 %s303, 1
        %s547 = smul.addr %s546, 2
        %s548 = scalar_lea.vmem [#allocation17], %s547
        %s549 = sshra.s32 %s45, 7
        %s550 = sand.u32 %s45, 127
        %s551 = sadd.s32 %s549, %s44
        %s552 = smul.u32 %s551, 128
        %s553 = sshra.s32 %s45, 7
        %s554 = sand.u32 %s45, 127
        %s555 = sadd.s32 %s552, %s554
        %s556 = sld [smem:[#allocation4 + %s555]]
        %s557 = smul.u32 64, %s44
        %s558 = smul.u32 2, %s556
        %s559 = sshra.s32 %s45, 7
        %s560 = sand.u32 %s45, 127
        %s561 = sadd.s32 %s559, %s44
        %s562 = smul.u32 %s561, 128
        %s563 = sshra.s32 %s45, 7
        %s564 = sand.u32 %s45, 127
        %s565 = sadd.s32 %s562, %s564
        %s566 = sld [smem:[#allocation4 + %s565]]
        %s567 = smul.u32 32, %s566
        %p568 = scmp.lt.s32.totalorder %s567, 191
        %s569 = scalar_select %p568, %s567, 191
        %s570 = smul.addr %s569, 8
        %s571 = scalar_lea.vmem %s3, %s570
        %s572 = sshra.s32 %s45, 7
        %s573 = sand.u32 %s45, 127
        %s574 = sadd.s32 %s572, %s44
        %s575 = smul.u32 %s574, 128
        %s576 = sshra.s32 %s45, 7
        %s577 = sand.u32 %s45, 127
        %s578 = sadd.s32 %s575, %s577
        %s579 = sld [smem:[#allocation4 + %s578]]
        %s580 = smul.u32 32, %s579
        %s581 = smul.u32 64, %s44
        %p582 = scmp.lt.s32.totalorder %s581, 191
        %s583 = scalar_select %p582, %s581, 191
        %s584 = smul.addr %s583, 8
        %s585 = scalar_lea.vmem %s4, %s584
        %s586 = smul.u32 64, %s44
        %s587 = smul.u32 64, %s44
        %p588 = scmp.lt.s32.totalorder %s587, 191
        %s589 = scalar_select %p588, %s587, 191
        %s590 = smul.addr %s589, 8
        %s591 = scalar_lea.vmem %s10, %s590
        %s592 = smul.u32 64, %s44
        %p594 = scmp.eq.s32.totalorder %s45, 0
        // Predicated region
        $region77: #{tpu_custom_call.1} parent=51 // pred_check
          %p595 = pneg %p594
        $region78: #{tpu_custom_call.1} parent=51 // pred_check_branch
          %597 = sbr.rel (%p595) target = $region80
        $region79: #{tpu_custom_call.1} parent=51 // pred_region
          %vm598 = vcmask 261120
          %599 = vst.msk [vmem:[#allocation2] sm:$0xff] %vm598, 0.0
          %600 = vst.msk [vmem:[#allocation2 + $0x8] sm:$0xff] %vm598, 0.0
          %601 = vst.msk [vmem:[#allocation2 + $0x10] sm:$0xff] %vm598, 0.0
          %602 = vst.msk [vmem:[#allocation2 + $0x18] sm:$0xff] %vm598, 0.0
          %603 = vst.msk [vmem:[#allocation2 + $0x20] sm:$0xff] %vm598, 0.0
          %604 = vst.msk [vmem:[#allocation2 + $0x28] sm:$0xff] %vm598, 0.0
          %605 = vst.msk [vmem:[#allocation2 + $0x30] sm:$0xff] %vm598, 0.0
          %606 = vst.msk [vmem:[#allocation2 + $0x38] sm:$0xff] %vm598, 0.0
          %607 = vst.msk [vmem:[#allocation2 + $0x40] sm:$0xff] %vm598, 0.0
          %608 = vst.msk [vmem:[#allocation2 + $0x48] sm:$0xff] %vm598, 0.0
          %609 = vst.msk [vmem:[#allocation2 + $0x50] sm:$0xff] %vm598, 0.0
          %610 = vst.msk [vmem:[#allocation2 + $0x58] sm:$0xff] %vm598, 0.0
          %611 = vst.msk [vmem:[#allocation2 + $0x60] sm:$0xff] %vm598, 0.0
          %612 = vst.msk [vmem:[#allocation2 + $0x68] sm:$0xff] %vm598, 0.0
          %613 = vst.msk [vmem:[#allocation2 + $0x70] sm:$0xff] %vm598, 0.0
          %614 = vst.msk [vmem:[#allocation2 + $0x78] sm:$0xff] %vm598, 0.0
          %615 = vst.msk [vmem:[#allocation2 + $0x80] sm:$0xff] %vm598, 0.0
          %616 = vst.msk [vmem:[#allocation2 + $0x88] sm:$0xff] %vm598, 0.0
          %617 = vst.msk [vmem:[#allocation2 + $0x90] sm:$0xff] %vm598, 0.0
          %618 = vst.msk [vmem:[#allocation2 + $0x98] sm:$0xff] %vm598, 0.0
          %619 = vst.msk [vmem:[#allocation2 + $0xa0] sm:$0xff] %vm598, 0.0
          %620 = vst.msk [vmem:[#allocation2 + $0xa8] sm:$0xff] %vm598, 0.0
          %621 = vst.msk [vmem:[#allocation2 + $0xb0] sm:$0xff] %vm598, 0.0
          %622 = vst.msk [vmem:[#allocation2 + $0xb8] sm:$0xff] %vm598, 0.0
          %623 = vst.msk [vmem:[#allocation2 + $0xc0] sm:$0xff] %vm598, 0.0
          %624 = vst.msk [vmem:[#allocation2 + $0xc8] sm:$0xff] %vm598, 0.0
          %625 = vst.msk [vmem:[#allocation2 + $0xd0] sm:$0xff] %vm598, 0.0
          %626 = vst.msk [vmem:[#allocation2 + $0xd8] sm:$0xff] %vm598, 0.0
          %627 = vst.msk [vmem:[#allocation2 + $0xe0] sm:$0xff] %vm598, 0.0
          %628 = vst.msk [vmem:[#allocation2 + $0xe8] sm:$0xff] %vm598, 0.0
          %629 = vst.msk [vmem:[#allocation2 + $0xf0] sm:$0xff] %vm598, 0.0
          %630 = vst.msk [vmem:[#allocation2 + $0xf8] sm:$0xff] %vm598, 0.0
          %631 = vst.msk [vmem:[#allocation2 + $0x100] sm:$0xff] %vm598, 0.0
          %632 = vst.msk [vmem:[#allocation2 + $0x108] sm:$0xff] %vm598, 0.0
          %633 = vst.msk [vmem:[#allocation2 + $0x110] sm:$0xff] %vm598, 0.0
          %634 = vst.msk [vmem:[#allocation2 + $0x118] sm:$0xff] %vm598, 0.0
          %635 = vst.msk [vmem:[#allocation2 + $0x120] sm:$0xff] %vm598, 0.0
          %636 = vst.msk [vmem:[#allocation2 + $0x128] sm:$0xff] %vm598, 0.0
          %637 = vst.msk [vmem:[#allocation2 + $0x130] sm:$0xff] %vm598, 0.0
          %638 = vst.msk [vmem:[#allocation2 + $0x138] sm:$0xff] %vm598, 0.0
          %639 = vst.msk [vmem:[#allocation2 + $0x140] sm:$0xff] %vm598, 0.0
          %640 = vst.msk [vmem:[#allocation2 + $0x148] sm:$0xff] %vm598, 0.0
          %641 = vst.msk [vmem:[#allocation2 + $0x150] sm:$0xff] %vm598, 0.0
          %642 = vst.msk [vmem:[#allocation2 + $0x158] sm:$0xff] %vm598, 0.0
          %643 = vst.msk [vmem:[#allocation2 + $0x160] sm:$0xff] %vm598, 0.0
          %644 = vst.msk [vmem:[#allocation2 + $0x168] sm:$0xff] %vm598, 0.0
          %645 = vst.msk [vmem:[#allocation2 + $0x170] sm:$0xff] %vm598, 0.0
          %646 = vst.msk [vmem:[#allocation2 + $0x178] sm:$0xff] %vm598, 0.0
          %647 = vst.msk [vmem:[#allocation2 + $0x180] sm:$0xff] %vm598, 0.0
          %648 = vst.msk [vmem:[#allocation2 + $0x188] sm:$0xff] %vm598, 0.0
          %649 = vst.msk [vmem:[#allocation2 + $0x190] sm:$0xff] %vm598, 0.0
          %650 = vst.msk [vmem:[#allocation2 + $0x198] sm:$0xff] %vm598, 0.0
          %651 = vst.msk [vmem:[#allocation2 + $0x1a0] sm:$0xff] %vm598, 0.0
          %652 = vst.msk [vmem:[#allocation2 + $0x1a8] sm:$0xff] %vm598, 0.0
          %653 = vst.msk [vmem:[#allocation2 + $0x1b0] sm:$0xff] %vm598, 0.0
          %654 = vst.msk [vmem:[#allocation2 + $0x1b8] sm:$0xff] %vm598, 0.0
          %655 = vst.msk [vmem:[#allocation2 + $0x1c0] sm:$0xff] %vm598, 0.0
          %656 = vst.msk [vmem:[#allocation2 + $0x1c8] sm:$0xff] %vm598, 0.0
          %657 = vst.msk [vmem:[#allocation2 + $0x1d0] sm:$0xff] %vm598, 0.0
          %658 = vst.msk [vmem:[#allocation2 + $0x1d8] sm:$0xff] %vm598, 0.0
          %659 = vst.msk [vmem:[#allocation2 + $0x1e0] sm:$0xff] %vm598, 0.0
          %660 = vst.msk [vmem:[#allocation2 + $0x1e8] sm:$0xff] %vm598, 0.0
          %661 = vst.msk [vmem:[#allocation2 + $0x1f0] sm:$0xff] %vm598, 0.0
          %662 = vst.msk [vmem:[#allocation2 + $0x1f8] sm:$0xff] %vm598, 0.0
        $region80: #{tpu_custom_call.1} parent=51 // pred_fallthru
          _
        %s663 = sld [smem:[#allocation5 + %s44]]
        %p664 = scmp.lt.s32.totalorder %s45, %s663
        // Predicated region
        $region81: #{tpu_custom_call.1} parent=51 // pred_check
          %p665 = pneg %p664
        $region82: #{tpu_custom_call.1} parent=51 // pred_check_branch
          %667 = sbr.rel (%p665) target = $region84
        $region83: #{tpu_custom_call.1} parent=51 // pred_region
          %v668 = vld [vmem:[%s571] sm:$0xff]
          %v669 = vld [vmem:[%s571 + $0x8] sm:$0xff]
          %v670 = vld [vmem:[%s571 + $0x10] sm:$0xff]
          %v671 = vld [vmem:[%s571 + $0x18] sm:$0xff]
          %v672 = vld [vmem:[%s571 + $0x20] sm:$0xff]
          %v673 = vld [vmem:[%s571 + $0x28] sm:$0xff]
          %v674 = vld [vmem:[%s571 + $0x30] sm:$0xff]
          %v675 = vld [vmem:[%s571 + $0x38] sm:$0xff]
          %v676 = vld [vmem:[%s571 + $0x40] sm:$0xff]
          %v677 = vld [vmem:[%s571 + $0x48] sm:$0xff]
          %v678 = vld [vmem:[%s571 + $0x50] sm:$0xff]
          %v679 = vld [vmem:[%s571 + $0x58] sm:$0xff]
          %v680 = vld [vmem:[%s571 + $0x60] sm:$0xff]
          %v681 = vld [vmem:[%s571 + $0x68] sm:$0xff]
          %v682 = vld [vmem:[%s571 + $0x70] sm:$0xff]
          %v683 = vld [vmem:[%s571 + $0x78] sm:$0xff]
          %v684 = vld [vmem:[%s571 + $0x80] sm:$0xff]
          %v685 = vld [vmem:[%s571 + $0x88] sm:$0xff]
          %v686 = vld [vmem:[%s571 + $0x90] sm:$0xff]
          %v687 = vld [vmem:[%s571 + $0x98] sm:$0xff]
          %v688 = vld [vmem:[%s571 + $0xa0] sm:$0xff]
          %v689 = vld [vmem:[%s571 + $0xa8] sm:$0xff]
          %v690 = vld [vmem:[%s571 + $0xb0] sm:$0xff]
          %v691 = vld [vmem:[%s571 + $0xb8] sm:$0xff]
          %v692 = vld [vmem:[%s571 + $0xc0] sm:$0xff]
          %v693 = vld [vmem:[%s571 + $0xc8] sm:$0xff]
          %v694 = vld [vmem:[%s571 + $0xd0] sm:$0xff]
          %v695 = vld [vmem:[%s571 + $0xd8] sm:$0xff]
          %v696 = vld [vmem:[%s571 + $0xe0] sm:$0xff]
          %v697 = vld [vmem:[%s571 + $0xe8] sm:$0xff]
          %v698 = vld [vmem:[%s571 + $0xf0] sm:$0xff]
          %v699 = vld [vmem:[%s571 + $0xf8] sm:$0xff]
          %v700 = vld [vmem:[#allocation9] sm:$0x1]
          %v701 = vlaneseq
          %v702 = vshrl.u32 %v701, 7
          %v703 = vsub.s32 0, %v702
          %v704 = vrot.slane %v700, %v703
          %v705 = vsub.f32 %v668, %v704
          %v706 = vsub.f32 %v669, %v704
          %v707 = vsub.f32 %v670, %v704
          %v708 = vsub.f32 %v671, %v704
          %v709 = vsub.f32 %v672, %v704
          %v710 = vsub.f32 %v673, %v704
          %v711 = vsub.f32 %v674, %v704
          %v712 = vsub.f32 %v675, %v704
          %v713 = vsub.f32 %v676, %v704
          %v714 = vsub.f32 %v677, %v704
          %v715 = vsub.f32 %v678, %v704
          %v716 = vsub.f32 %v679, %v704
          %v717 = vsub.f32 %v680, %v704
          %v718 = vsub.f32 %v681, %v704
          %v719 = vsub.f32 %v682, %v704
          %v720 = vsub.f32 %v683, %v704
          %v721 = vsub.f32 %v684, %v704
          %v722 = vsub.f32 %v685, %v704
          %v723 = vsub.f32 %v686, %v704
          %v724 = vsub.f32 %v687, %v704
          %v725 = vsub.f32 %v688, %v704
          %v726 = vsub.f32 %v689, %v704
          %v727 = vsub.f32 %v690, %v704
          %v728 = vsub.f32 %v691, %v704
          %v729 = vsub.f32 %v692, %v704
          %v730 = vsub.f32 %v693, %v704
          %v731 = vsub.f32 %v694, %v704
          %v732 = vsub.f32 %v695, %v704
          %v733 = vsub.f32 %v696, %v704
          %v734 = vsub.f32 %v697, %v704
          %v735 = vsub.f32 %v698, %v704
          %v736 = vsub.f32 %v699, %v704
          %v737 = vld [vmem:[#allocation9 + $0x1] sm:$0x1]
          %v738 = vlaneseq
          %v739 = vshrl.u32 %v738, 7
          %v740 = vsub.s32 0, %v739
          %v741 = vrot.slane %v737, %v740
          %v742 = vmul.f32 %v705, %v741
          %v743 = vmul.f32 %v706, %v741
          %v744 = vmul.f32 %v707, %v741
          %v745 = vmul.f32 %v708, %v741
          %v746 = vmul.f32 %v709, %v741
          %v747 = vmul.f32 %v710, %v741
          %v748 = vmul.f32 %v711, %v741
          %v749 = vmul.f32 %v712, %v741
          %v750 = vmul.f32 %v713, %v741
          %v751 = vmul.f32 %v714, %v741
          %v752 = vmul.f32 %v715, %v741
          %v753 = vmul.f32 %v716, %v741
          %v754 = vmul.f32 %v717, %v741
          %v755 = vmul.f32 %v718, %v741
          %v756 = vmul.f32 %v719, %v741
          %v757 = vmul.f32 %v720, %v741
          %v758 = vmul.f32 %v721, %v741
          %v759 = vmul.f32 %v722, %v741
          %v760 = vmul.f32 %v723, %v741
          %v761 = vmul.f32 %v724, %v741
          %v762 = vmul.f32 %v725, %v741
          %v763 = vmul.f32 %v726, %v741
          %v764 = vmul.f32 %v727, %v741
          %v765 = vmul.f32 %v728, %v741
          %v766 = vmul.f32 %v729, %v741
          %v767 = vmul.f32 %v730, %v741
          %v768 = vmul.f32 %v731, %v741
          %v769 = vmul.f32 %v732, %v741
          %v770 = vmul.f32 %v733, %v741
          %v771 = vmul.f32 %v734, %v741
          %v772 = vmul.f32 %v735, %v741
          %v773 = vmul.f32 %v736, %v741
          %v774 = vld [vmem:[#allocation2] sm:$0xff]
          %v775 = vld [vmem:[#allocation2 + $0x8] sm:$0xff]
          %v776 = vld [vmem:[#allocation2 + $0x10] sm:$0xff]
          %v777 = vld [vmem:[#allocation2 + $0x18] sm:$0xff]
          %v778 = vld [vmem:[#allocation2 + $0x20] sm:$0xff]
          %v779 = vld [vmem:[#allocation2 + $0x28] sm:$0xff]
          %v780 = vld [vmem:[#allocation2 + $0x30] sm:$0xff]
          %v781 = vld [vmem:[#allocation2 + $0x38] sm:$0xff]
          %v782 = vld [vmem:[#allocation2 + $0x40] sm:$0xff]
          %v783 = vld [vmem:[#allocation2 + $0x48] sm:$0xff]
          %v784 = vld [vmem:[#allocation2 + $0x50] sm:$0xff]
          %v785 = vld [vmem:[#allocation2 + $0x58] sm:$0xff]
          %v786 = vld [vmem:[#allocation2 + $0x60] sm:$0xff]
          %v787 = vld [vmem:[#allocation2 + $0x68] sm:$0xff]
          %v788 = vld [vmem:[#allocation2 + $0x70] sm:$0xff]
          %v789 = vld [vmem:[#allocation2 + $0x78] sm:$0xff]
          %v790 = vld [vmem:[#allocation2 + $0x80] sm:$0xff]
          %v791 = vld [vmem:[#allocation2 + $0x88] sm:$0xff]
          %v792 = vld [vmem:[#allocation2 + $0x90] sm:$0xff]
          %v793 = vld [vmem:[#allocation2 + $0x98] sm:$0xff]
          %v794 = vld [vmem:[#allocation2 + $0xa0] sm:$0xff]
          %v795 = vld [vmem:[#allocation2 + $0xa8] sm:$0xff]
          %v796 = vld [vmem:[#allocation2 + $0xb0] sm:$0xff]
          %v797 = vld [vmem:[#allocation2 + $0xb8] sm:$0xff]
          %v798 = vld [vmem:[#allocation2 + $0xc0] sm:$0xff]
          %v799 = vld [vmem:[#allocation2 + $0xc8] sm:$0xff]
          %v800 = vld [vmem:[#allocation2 + $0xd0] sm:$0xff]
          %v801 = vld [vmem:[#allocation2 + $0xd8] sm:$0xff]
          %v802 = vld [vmem:[#allocation2 + $0xe0] sm:$0xff]
          %v803 = vld [vmem:[#allocation2 + $0xe8] sm:$0xff]
          %v804 = vld [vmem:[#allocation2 + $0xf0] sm:$0xff]
          %v805 = vld [vmem:[#allocation2 + $0xf8] sm:$0xff]
          %v806 = vld [vmem:[#allocation2 + $0x100] sm:$0xff]
          %v807 = vld [vmem:[#allocation2 + $0x108] sm:$0xff]
          %v808 = vld [vmem:[#allocation2 + $0x110] sm:$0xff]
          %v809 = vld [vmem:[#allocation2 + $0x118] sm:$0xff]
          %v810 = vld [vmem:[#allocation2 + $0x120] sm:$0xff]
          %v811 = vld [vmem:[#allocation2 + $0x128] sm:$0xff]
          %v812 = vld [vmem:[#allocation2 + $0x130] sm:$0xff]
          %v813 = vld [vmem:[#allocation2 + $0x138] sm:$0xff]
          %v814 = vld [vmem:[#allocation2 + $0x140] sm:$0xff]
          %v815 = vld [vmem:[#allocation2 + $0x148] sm:$0xff]
          %v816 = vld [vmem:[#allocation2 + $0x150] sm:$0xff]
          %v817 = vld [vmem:[#allocation2 + $0x158] sm:$0xff]
          %v818 = vld [vmem:[#allocation2 + $0x160] sm:$0xff]
          %v819 = vld [vmem:[#allocation2 + $0x168] sm:$0xff]
          %v820 = vld [vmem:[#allocation2 + $0x170] sm:$0xff]
          %v821 = vld [vmem:[#allocation2 + $0x178] sm:$0xff]
          %v822 = vld [vmem:[#allocation2 + $0x180] sm:$0xff]
          %v823 = vld [vmem:[#allocation2 + $0x188] sm:$0xff]
          %v824 = vld [vmem:[#allocation2 + $0x190] sm:$0xff]
          %v825 = vld [vmem:[#allocation2 + $0x198] sm:$0xff]
          %v826 = vld [vmem:[#allocation2 + $0x1a0] sm:$0xff]
          %v827 = vld [vmem:[#allocation2 + $0x1a8] sm:$0xff]
          %v828 = vld [vmem:[#allocation2 + $0x1b0] sm:$0xff]
          %v829 = vld [vmem:[#allocation2 + $0x1b8] sm:$0xff]
          %v830 = vld [vmem:[#allocation2 + $0x1c0] sm:$0xff]
          %v831 = vld [vmem:[#allocation2 + $0x1c8] sm:$0xff]
          %v832 = vld [vmem:[#allocation2 + $0x1d0] sm:$0xff]
          %v833 = vld [vmem:[#allocation2 + $0x1d8] sm:$0xff]
          %v834 = vld [vmem:[#allocation2 + $0x1e0] sm:$0xff]
          %v835 = vld [vmem:[#allocation2 + $0x1e8] sm:$0xff]
          %v836 = vld [vmem:[#allocation2 + $0x1f0] sm:$0xff]
          %v837 = vld [vmem:[#allocation2 + $0x1f8] sm:$0xff]
          %v838 = vld [vmem:[%s471] sm:$0xff]
          %v839 = vld [vmem:[%s471 + $0x8] sm:$0xff]
          %v840 = vld [vmem:[%s471 + $0x10] sm:$0xff]
          %v841 = vld [vmem:[%s471 + $0x18] sm:$0xff]
          %v842 = vld [vmem:[%s471 + $0x20] sm:$0xff]
          %v843 = vld [vmem:[%s471 + $0x28] sm:$0xff]
          %v844 = vld [vmem:[%s471 + $0x30] sm:$0xff]
          %v845 = vld [vmem:[%s471 + $0x38] sm:$0xff]
          %v846 = vld [vmem:[%s471 + $0x40] sm:$0xff]
          %v847 = vld [vmem:[%s471 + $0x48] sm:$0xff]
          %v848 = vld [vmem:[%s471 + $0x50] sm:$0xff]
          %v849 = vld [vmem:[%s471 + $0x58] sm:$0xff]
          %v850 = vld [vmem:[%s471 + $0x60] sm:$0xff]
          %v851 = vld [vmem:[%s471 + $0x68] sm:$0xff]
          %v852 = vld [vmem:[%s471 + $0x70] sm:$0xff]
          %v853 = vld [vmem:[%s471 + $0x78] sm:$0xff]
          %v854 = vld [vmem:[%s471 + $0x80] sm:$0xff]
          %v855 = vld [vmem:[%s471 + $0x88] sm:$0xff]
          %v856 = vld [vmem:[%s471 + $0x90] sm:$0xff]
          %v857 = vld [vmem:[%s471 + $0x98] sm:$0xff]
          %v858 = vld [vmem:[%s471 + $0xa0] sm:$0xff]
          %v859 = vld [vmem:[%s471 + $0xa8] sm:$0xff]
          %v860 = vld [vmem:[%s471 + $0xb0] sm:$0xff]
          %v861 = vld [vmem:[%s471 + $0xb8] sm:$0xff]
          %v862 = vld [vmem:[%s471 + $0xc0] sm:$0xff]
          %v863 = vld [vmem:[%s471 + $0xc8] sm:$0xff]
          %v864 = vld [vmem:[%s471 + $0xd0] sm:$0xff]
          %v865 = vld [vmem:[%s471 + $0xd8] sm:$0xff]
          %v866 = vld [vmem:[%s471 + $0xe0] sm:$0xff]
          %v867 = vld [vmem:[%s471 + $0xe8] sm:$0xff]
          %v868 = vld [vmem:[%s471 + $0xf0] sm:$0xff]
          %v869 = vld [vmem:[%s471 + $0xf8] sm:$0xff]
          %v870 = vld [vmem:[%s471 + $0x100] sm:$0xff]
          %v871 = vld [vmem:[%s471 + $0x108] sm:$0xff]
          %v872 = vld [vmem:[%s471 + $0x110] sm:$0xff]
          %v873 = vld [vmem:[%s471 + $0x118] sm:$0xff]
          %v874 = vld [vmem:[%s471 + $0x120] sm:$0xff]
          %v875 = vld [vmem:[%s471 + $0x128] sm:$0xff]
          %v876 = vld [vmem:[%s471 + $0x130] sm:$0xff]
          %v877 = vld [vmem:[%s471 + $0x138] sm:$0xff]
          %v878 = vld [vmem:[%s471 + $0x140] sm:$0xff]
          %v879 = vld [vmem:[%s471 + $0x148] sm:$0xff]
          %v880 = vld [vmem:[%s471 + $0x150] sm:$0xff]
          %v881 = vld [vmem:[%s471 + $0x158] sm:$0xff]
          %v882 = vld [vmem:[%s471 + $0x160] sm:$0xff]
          %v883 = vld [vmem:[%s471 + $0x168] sm:$0xff]
          %v884 = vld [vmem:[%s471 + $0x170] sm:$0xff]
          %v885 = vld [vmem:[%s471 + $0x178] sm:$0xff]
          %v886 = vld [vmem:[%s471 + $0x180] sm:$0xff]
          %v887 = vld [vmem:[%s471 + $0x188] sm:$0xff]
          %v888 = vld [vmem:[%s471 + $0x190] sm:$0xff]
          %v889 = vld [vmem:[%s471 + $0x198] sm:$0xff]
          %v890 = vld [vmem:[%s471 + $0x1a0] sm:$0xff]
          %v891 = vld [vmem:[%s471 + $0x1a8] sm:$0xff]
          %v892 = vld [vmem:[%s471 + $0x1b0] sm:$0xff]
          %v893 = vld [vmem:[%s471 + $0x1b8] sm:$0xff]
          %v894 = vld [vmem:[%s471 + $0x1c0] sm:$0xff]
          %v895 = vld [vmem:[%s471 + $0x1c8] sm:$0xff]
          %v896 = vld [vmem:[%s471 + $0x1d0] sm:$0xff]
          %v897 = vld [vmem:[%s471 + $0x1d8] sm:$0xff]
          %v898 = vld [vmem:[%s471 + $0x1e0] sm:$0xff]
          %v899 = vld [vmem:[%s471 + $0x1e8] sm:$0xff]
          %v900 = vld [vmem:[%s471 + $0x1f0] sm:$0xff]
          %v901 = vld [vmem:[%s471 + $0x1f8] sm:$0xff]
          %v902 = vpack.c.bf16 %v743, %v742
          %v903 = vpack.c.bf16 %v745, %v744
          %v904 = vpack.c.bf16 %v747, %v746
          %v905 = vpack.c.bf16 %v749, %v748
          %v906 = vpack.c.bf16 %v751, %v750
          %v907 = vpack.c.bf16 %v753, %v752
          %v908 = vpack.c.bf16 %v755, %v754
          %v909 = vpack.c.bf16 %v757, %v756
          %v910 = vpack.c.bf16 %v759, %v758
          %v911 = vpack.c.bf16 %v761, %v760
          %v912 = vpack.c.bf16 %v763, %v762
          %v913 = vpack.c.bf16 %v765, %v764
          %v914 = vpack.c.bf16 %v767, %v766
          %v915 = vpack.c.bf16 %v769, %v768
          %v916 = vpack.c.bf16 %v771, %v770
          %v917 = vpack.c.bf16 %v773, %v772
          %v982 = vunpack.c.l.b16 %v838
          %v983 = vunpack.c.h.b16 %v838
          %v984 = vunpack.c.l.b16 %v839
          %v985 = vunpack.c.h.b16 %v839
          %v986 = vunpack.c.l.b16 %v840
          %v987 = vunpack.c.h.b16 %v840
          %v988 = vunpack.c.l.b16 %v841
          %v989 = vunpack.c.h.b16 %v841
          %v990 = vunpack.c.l.b16 %v842
          %v991 = vunpack.c.h.b16 %v842
          %v992 = vunpack.c.l.b16 %v843
          %v993 = vunpack.c.h.b16 %v843
          %v994 = vunpack.c.l.b16 %v844
          %v995 = vunpack.c.h.b16 %v844
          %v996 = vunpack.c.l.b16 %v845
          %v997 = vunpack.c.h.b16 %v845
          %v998 = vunpack.c.l.b16 %v846
          %v999 = vunpack.c.h.b16 %v846
          %v1000 = vunpack.c.l.b16 %v847
          %v1001 = vunpack.c.h.b16 %v847
          %v1002 = vunpack.c.l.b16 %v848
          %v1003 = vunpack.c.h.b16 %v848
          %v1004 = vunpack.c.l.b16 %v849
          %v1005 = vunpack.c.h.b16 %v849
          %v1006 = vunpack.c.l.b16 %v850
          %v1007 = vunpack.c.h.b16 %v850
          %v1008 = vunpack.c.l.b16 %v851
          %v1009 = vunpack.c.h.b16 %v851
          %v1010 = vunpack.c.l.b16 %v852
          %v1011 = vunpack.c.h.b16 %v852
          %v1012 = vunpack.c.l.b16 %v853
          %v1013 = vunpack.c.h.b16 %v853
          %v1014 = vunpack.c.l.b16 %v854
          %v1015 = vunpack.c.h.b16 %v854
          %v1016 = vunpack.c.l.b16 %v855
          %v1017 = vunpack.c.h.b16 %v855
          %v1018 = vunpack.c.l.b16 %v856
          %v1019 = vunpack.c.h.b16 %v856
          %v1020 = vunpack.c.l.b16 %v857
          %v1021 = vunpack.c.h.b16 %v857
          %v1022 = vunpack.c.l.b16 %v858
          %v1023 = vunpack.c.h.b16 %v858
          %v1024 = vunpack.c.l.b16 %v859
          %v1025 = vunpack.c.h.b16 %v859
          %v1026 = vunpack.c.l.b16 %v860
          %v1027 = vunpack.c.h.b16 %v860
          %v1028 = vunpack.c.l.b16 %v861
          %v1029 = vunpack.c.h.b16 %v861
          %v1030 = vunpack.c.l.b16 %v862
          %v1031 = vunpack.c.h.b16 %v862
          %v1032 = vunpack.c.l.b16 %v863
          %v1033 = vunpack.c.h.b16 %v863
          %v1034 = vunpack.c.l.b16 %v864
          %v1035 = vunpack.c.h.b16 %v864
          %v1036 = vunpack.c.l.b16 %v865
          %v1037 = vunpack.c.h.b16 %v865
          %v1038 = vunpack.c.l.b16 %v866
          %v1039 = vunpack.c.h.b16 %v866
          %v1040 = vunpack.c.l.b16 %v867
          %v1041 = vunpack.c.h.b16 %v867
          %v1042 = vunpack.c.l.b16 %v868
          %v1043 = vunpack.c.h.b16 %v868
          %v1044 = vunpack.c.l.b16 %v869
          %v1045 = vunpack.c.h.b16 %v869
          %v1046 = vunpack.c.l.b16 %v870
          %v1047 = vunpack.c.h.b16 %v870
          %v1048 = vunpack.c.l.b16 %v871
          %v1049 = vunpack.c.h.b16 %v871
          %v1050 = vunpack.c.l.b16 %v872
          %v1051 = vunpack.c.h.b16 %v872
          %v1052 = vunpack.c.l.b16 %v873
          %v1053 = vunpack.c.h.b16 %v873
          %v1054 = vunpack.c.l.b16 %v874
          %v1055 = vunpack.c.h.b16 %v874
          %v1056 = vunpack.c.l.b16 %v875
          %v1057 = vunpack.c.h.b16 %v875
          %v1058 = vunpack.c.l.b16 %v876
          %v1059 = vunpack.c.h.b16 %v876
          %v1060 = vunpack.c.l.b16 %v877
          %v1061 = vunpack.c.h.b16 %v877
          %v1062 = vunpack.c.l.b16 %v878
          %v1063 = vunpack.c.h.b16 %v878
          %v1064 = vunpack.c.l.b16 %v879
          %v1065 = vunpack.c.h.b16 %v879
          %v1066 = vunpack.c.l.b16 %v880
          %v1067 = vunpack.c.h.b16 %v880
          %v1068 = vunpack.c.l.b16 %v881
          %v1069 = vunpack.c.h.b16 %v881
          %v1070 = vunpack.c.l.b16 %v882
          %v1071 = vunpack.c.h.b16 %v882
          %v1072 = vunpack.c.l.b16 %v883
          %v1073 = vunpack.c.h.b16 %v883
          %v1074 = vunpack.c.l.b16 %v884
          %v1075 = vunpack.c.h.b16 %v884
          %v1076 = vunpack.c.l.b16 %v885
          %v1077 = vunpack.c.h.b16 %v885
          %v1078 = vunpack.c.l.b16 %v886
          %v1079 = vunpack.c.h.b16 %v886
          %v1080 = vunpack.c.l.b16 %v887
          %v1081 = vunpack.c.h.b16 %v887
          %v1082 = vunpack.c.l.b16 %v888
          %v1083 = vunpack.c.h.b16 %v888
          %v1084 = vunpack.c.l.b16 %v889
          %v1085 = vunpack.c.h.b16 %v889
          %v1086 = vunpack.c.l.b16 %v890
          %v1087 = vunpack.c.h.b16 %v890
          %v1088 = vunpack.c.l.b16 %v891
          %v1089 = vunpack.c.h.b16 %v891
          %v1090 = vunpack.c.l.b16 %v892
          %v1091 = vunpack.c.h.b16 %v892
          %v1092 = vunpack.c.l.b16 %v893
          %v1093 = vunpack.c.h.b16 %v893
          %v1094 = vunpack.c.l.b16 %v894
          %v1095 = vunpack.c.h.b16 %v894
          %v1096 = vunpack.c.l.b16 %v895
          %v1097 = vunpack.c.h.b16 %v895
          %v1098 = vunpack.c.l.b16 %v896
          %v1099 = vunpack.c.h.b16 %v896
          %v1100 = vunpack.c.l.b16 %v897
          %v1101 = vunpack.c.h.b16 %v897
          %v1102 = vunpack.c.l.b16 %v898
          %v1103 = vunpack.c.h.b16 %v898
          %v1104 = vunpack.c.l.b16 %v899
          %v1105 = vunpack.c.h.b16 %v899
          %v1106 = vunpack.c.l.b16 %v900
          %v1107 = vunpack.c.h.b16 %v900
          %v1108 = vunpack.c.l.b16 %v901
          %v1109 = vunpack.c.h.b16 %v901
          %v1110 = vpack.c.b16 %v984, %v982
          %v1111 = vpack.c.b16 %v985, %v983
          %v1112 = vpack.c.b16 %v988, %v986
          %v1113 = vpack.c.b16 %v989, %v987
          %v1114 = vpack.c.b16 %v992, %v990
          %v1115 = vpack.c.b16 %v993, %v991
          %v1116 = vpack.c.b16 %v996, %v994
          %v1117 = vpack.c.b16 %v997, %v995
          %v1118 = vpack.c.b16 %v1000, %v998
          %v1119 = vpack.c.b16 %v1001, %v999
          %v1120 = vpack.c.b16 %v1004, %v1002
          %v1121 = vpack.c.b16 %v1005, %v1003
          %v1122 = vpack.c.b16 %v1008, %v1006
          %v1123 = vpack.c.b16 %v1009, %v1007
          %v1124 = vpack.c.b16 %v1012, %v1010
          %v1125 = vpack.c.b16 %v1013, %v1011
          %v1126 = vpack.c.b16 %v1016, %v1014
          %v1127 = vpack.c.b16 %v1017, %v1015
          %v1128 = vpack.c.b16 %v1020, %v1018
          %v1129 = vpack.c.b16 %v1021, %v1019
          %v1130 = vpack.c.b16 %v1024, %v1022
          %v1131 = vpack.c.b16 %v1025, %v1023
          %v1132 = vpack.c.b16 %v1028, %v1026
          %v1133 = vpack.c.b16 %v1029, %v1027
          %v1134 = vpack.c.b16 %v1032, %v1030
          %v1135 = vpack.c.b16 %v1033, %v1031
          %v1136 = vpack.c.b16 %v1036, %v1034
          %v1137 = vpack.c.b16 %v1037, %v1035
          %v1138 = vpack.c.b16 %v1040, %v1038
          %v1139 = vpack.c.b16 %v1041, %v1039
          %v1140 = vpack.c.b16 %v1044, %v1042
          %v1141 = vpack.c.b16 %v1045, %v1043
          %v1142 = vpack.c.b16 %v1048, %v1046
          %v1143 = vpack.c.b16 %v1049, %v1047
          %v1144 = vpack.c.b16 %v1052, %v1050
          %v1145 = vpack.c.b16 %v1053, %v1051
          %v1146 = vpack.c.b16 %v1056, %v1054
          %v1147 = vpack.c.b16 %v1057, %v1055
          %v1148 = vpack.c.b16 %v1060, %v1058
          %v1149 = vpack.c.b16 %v1061, %v1059
          %v1150 = vpack.c.b16 %v1064, %v1062
          %v1151 = vpack.c.b16 %v1065, %v1063
          %v1152 = vpack.c.b16 %v1068, %v1066
          %v1153 = vpack.c.b16 %v1069, %v1067
          %v1154 = vpack.c.b16 %v1072, %v1070
          %v1155 = vpack.c.b16 %v1073, %v1071
          %v1156 = vpack.c.b16 %v1076, %v1074
          %v1157 = vpack.c.b16 %v1077, %v1075
          %v1158 = vpack.c.b16 %v1080, %v1078
          %v1159 = vpack.c.b16 %v1081, %v1079
          %v1160 = vpack.c.b16 %v1084, %v1082
          %v1161 = vpack.c.b16 %v1085, %v1083
          %v1162 = vpack.c.b16 %v1088, %v1086
          %v1163 = vpack.c.b16 %v1089, %v1087
          %v1164 = vpack.c.b16 %v1092, %v1090
          %v1165 = vpack.c.b16 %v1093, %v1091
          %v1166 = vpack.c.b16 %v1096, %v1094
          %v1167 = vpack.c.b16 %v1097, %v1095
          %v1168 = vpack.c.b16 %v1100, %v1098
          %v1169 = vpack.c.b16 %v1101, %v1099
          %v1170 = vpack.c.b16 %v1104, %v1102
          %v1171 = vpack.c.b16 %v1105, %v1103
          %v1172 = vpack.c.b16 %v1108, %v1106
          %v1173 = vpack.c.b16 %v1109, %v1107
          %1238 = vmatprep.subr.bf16.mxu0 0
          %1239 = vmatpush1.bf16.msra.mxu0 %v902
          %1240 = vmatprep.subr.bf16.mxu0 0
          %1241 = vmatpush1.bf16.msra.mxu0 %v903
          %1242 = vmatprep.subr.bf16.mxu0 0
          %1243 = vmatpush1.bf16.msra.mxu0 %v904
          %1244 = vmatprep.subr.bf16.mxu0 0
          %1245 = vmatpush1.bf16.msra.mxu0 %v905
          %1246 = vmatprep.subr.bf16.mxu0 0
          %1247 = vmatpush1.bf16.msra.mxu0 %v906
          %1248 = vmatprep.subr.bf16.mxu0 0
          %1249 = vmatpush1.bf16.msra.mxu0 %v907
          %1250 = vmatprep.subr.bf16.mxu0 0
          %1251 = vmatpush1.bf16.msra.mxu0 %v908
          %1252 = vmatprep.subr.bf16.mxu0 0
          %1253 = vmatpush1.bf16.msra.mxu0 %v909
          %1254 = vmatprep.subr.bf16.mxu0 0
          %1255 = vmatpush1.bf16.msra.mxu0 %v910
          %1256 = vmatprep.subr.bf16.mxu0 0
          %1257 = vmatpush1.bf16.msra.mxu0 %v911
          %1258 = vmatprep.subr.bf16.mxu0 0
          %1259 = vmatpush1.bf16.msra.mxu0 %v912
          %1260 = vmatprep.subr.bf16.mxu0 0
          %1261 = vmatpush1.bf16.msra.mxu0 %v913
          %1262 = vmatprep.subr.bf16.mxu0 0
          %1263 = vmatpush1.bf16.msra.mxu0 %v914
          %1264 = vmatprep.subr.bf16.mxu0 0
          %1265 = vmatpush1.bf16.msra.mxu0 %v915
          %1266 = vmatprep.subr.bf16.mxu0 0
          %1267 = vmatpush1.bf16.msra.mxu0 %v916
          %1268 = vmatprep.subr.bf16.mxu0 0
          %1269 = vmatpush1.bf16.msra.mxu0 %v917
          %1270 = vmatprep.mubr.bf16.mxu0 %v1111
          %1271 = vmatmul.mubr.bf16.gmra.mrb[0].mxu0 %v1110
          %v1272 = vpop.f32.mrb[0].mxu0
          %v1273 = vadd.f32 0.0, %v1272
          %v1274 = vpop.f32.mrb[0].mxu0
          %v1275 = vpop.f32.mrb[0].mxu0
          %v1276 = vadd.f32 0.0, %v1275
          %v1277 = vpop.f32.mrb[0].mxu0
          %1278 = vmatprep.mubr.bf16.mxu0 %v1113
          %1279 = vmatmul.mubr.bf16.gmra.mrb[0].mxu0 %v1112
          %v1280 = vpop.f32.mrb[0].mxu0
          %v1281 = vadd.f32 0.0, %v1280
          %v1282 = vpop.f32.mrb[0].mxu0
          %v1283 = vpop.f32.mrb[0].mxu0
          %v1284 = vadd.f32 0.0, %v1283
          %v1285 = vpop.f32.mrb[0].mxu0
          %1286 = vmatprep.mubr.bf16.mxu0 %v1115
          %1287 = vmatmul.mubr.bf16.gmra.mrb[0].mxu0 %v1114
          %v1288 = vpop.f32.mrb[0].mxu0
          %v1289 = vadd.f32 0.0, %v1288
          %v1290 = vpop.f32.mrb[0].mxu0
          %v1291 = vpop.f32.mrb[0].mxu0
          %v1292 = vadd.f32 0.0, %v1291
          %v1293 = vpop.f32.mrb[0].mxu0
          %1294 = vmatprep.mubr.bf16.mxu0 %v1117
          %1295 = vmatmul.mubr.bf16.gmra.mrb[0].mxu0 %v1116
          %v1296 = vpop.f32.mrb[0].mxu0
          %v1297 = vadd.f32 0.0, %v1296
          %v1298 = vpop.f32.mrb[0].mxu0
          %v1299 = vpop.f32.mrb[0].mxu0
          %v1300 = vadd.f32 0.0, %v1299
          %v1301 = vpop.f32.mrb[0].mxu0
          %1302 = vmatprep.mubr.bf16.mxu0 %v1119
          %1303 = vmatmul.mubr.bf16.gmra.mrb[0].mxu0 %v1118
          %v1304 = vpop.f32.mrb[0].mxu0
          %v1305 = vadd.f32 0.0, %v1304
          %v1306 = vpop.f32.mrb[0].mxu0
          %v1307 = vpop.f32.mrb[0].mxu0
          %v1308 = vadd.f32 0.0, %v1307
          %v1309 = vpop.f32.mrb[0].mxu0
          %1310 = vmatprep.mubr.bf16.mxu0 %v1121
          %1311 = vmatmul.mubr.bf16.gmra.mrb[0].mxu0 %v1120
          %v1312 = vpop.f32.mrb[0].mxu0
          %v1313 = vadd.f32 0.0, %v1312
          %v1314 = vpop.f32.mrb[0].mxu0
          %v1315 = vpop.f32.mrb[0].mxu0
          %v1316 = vadd.f32 0.0, %v1315
          %v1317 = vpop.f32.mrb[0].mxu0
          %1318 = vmatprep.mubr.bf16.mxu0 %v1123
          %1319 = vmatmul.mubr.bf16.gmra.mrb[0].mxu0 %v1122
          %v1320 = vpop.f32.mrb[0].mxu0
          %v1321 = vadd.f32 0.0, %v1320
          %v1322 = vpop.f32.mrb[0].mxu0
          %v1323 = vpop.f32.mrb[0].mxu0
          %v1324 = vadd.f32 0.0, %v1323
          %v1325 = vpop.f32.mrb[0].mxu0
          %1326 = vmatprep.mubr.bf16.mxu0 %v1125
          %1327 = vmatmul.mubr.bf16.gmra.mrb[0].mxu0 %v1124
          %v1328 = vpop.f32.mrb[0].mxu0
          %v1329 = vadd.f32 0.0, %v1328
          %v1330 = vpop.f32.mrb[0].mxu0
          %v1331 = vpop.f32.mrb[0].mxu0
          %v1332 = vadd.f32 0.0, %v1331
          %v1333 = vpop.f32.mrb[0].mxu0
          %1334 = vmatprep.mubr.bf16.mxu0 %v1127
          %1335 = vmatmul.mubr.bf16.gmra.mrb[0].mxu0 %v1126
          %v1336 = vpop.f32.mrb[0].mxu0
          %v1337 = vadd.f32 0.0, %v1336
          %v1338 = vpop.f32.mrb[0].mxu0
          %v1339 = vpop.f32.mrb[0].mxu0
          %v1340 = vadd.f32 0.0, %v1339
          %v1341 = vpop.f32.mrb[0].mxu0
          %1342 = vmatprep.mubr.bf16.mxu0 %v1129
          %1343 = vmatmul.mubr.bf16.gmra.mrb[0].mxu0 %v1128
          %v1344 = vpop.f32.mrb[0].mxu0
          %v1345 = vadd.f32 0.0, %v1344
          %v1346 = vpop.f32.mrb[0].mxu0
          %v1347 = vpop.f32.mrb[0].mxu0
          %v1348 = vadd.f32 0.0, %v1347
          %v1349 = vpop.f32.mrb[0].mxu0
          %1350 = vmatprep.mubr.bf16.mxu0 %v1131
          %1351 = vmatmul.mubr.bf16.gmra.mrb[0].mxu0 %v1130
          %v1352 = vpop.f32.mrb[0].mxu0
          %v1353 = vadd.f32 0.0, %v1352
          %v1354 = vpop.f32.mrb[0].mxu0
          %v1355 = vpop.f32.mrb[0].mxu0
          %v1356 = vadd.f32 0.0, %v1355
          %v1357 = vpop.f32.mrb[0].mxu0
          %1358 = vmatprep.mubr.bf16.mxu0 %v1133
          %1359 = vmatmul.mubr.bf16.gmra.mrb[0].mxu0 %v1132
          %v1360 = vpop.f32.mrb[0].mxu0
          %v1361 = vadd.f32 0.0, %v1360
          %v1362 = vpop.f32.mrb[0].mxu0
          %v1363 = vpop.f32.mrb[0].mxu0
          %v1364 = vadd.f32 0.0, %v1363
          %v1365 = vpop.f32.mrb[0].mxu0
          %1366 = vmatprep.mubr.bf16.mxu0 %v1135
          %1367 = vmatmul.mubr.bf16.gmra.mrb[0].mxu0 %v1134
          %v1368 = vpop.f32.mrb[0].mxu0
          %v1369 = vadd.f32 0.0, %v1368
          %v1370 = vpop.f32.mrb[0].mxu0
          %v1371 = vpop.f32.mrb[0].mxu0
          %v1372 = vadd.f32 0.0, %v1371
          %v1373 = vpop.f32.mrb[0].mxu0
          %1374 = vmatprep.mubr.bf16.mxu0 %v1137
          %1375 = vmatmul.mubr.bf16.gmra.mrb[0].mxu0 %v1136
          %v1376 = vpop.f32.mrb[0].mxu0
          %v1377 = vadd.f32 0.0, %v1376
          %v1378 = vpop.f32.mrb[0].mxu0
          %v1379 = vpop.f32.mrb[0].mxu0
          %v1380 = vadd.f32 0.0, %v1379
          %v1381 = vpop.f32.mrb[0].mxu0
          %1382 = vmatprep.mubr.bf16.mxu0 %v1139
          %1383 = vmatmul.mubr.bf16.gmra.mrb[0].mxu0 %v1138
          %v1384 = vpop.f32.mrb[0].mxu0
          %v1385 = vadd.f32 0.0, %v1384
          %v1386 = vpop.f32.mrb[0].mxu0
          %v1387 = vpop.f32.mrb[0].mxu0
          %v1388 = vadd.f32 0.0, %v1387
          %v1389 = vpop.f32.mrb[0].mxu0
          %1390 = vmatprep.mubr.bf16.mxu0 %v1141
          %1391 = vmatmul.mubr.bf16.gmra.mrb[0].mxu0 %v1140
          %v1392 = vpop.f32.mrb[0].mxu0
          %v1393 = vadd.f32 0.0, %v1392
          %v1394 = vpop.f32.mrb[0].mxu0
          %v1395 = vpop.f32.mrb[0].mxu0
          %v1396 = vadd.f32 0.0, %v1395
          %v1397 = vpop.f32.mrb[0].mxu0
          %1398 = vmatprep.mubr.bf16.mxu0 %v1143
          %1399 = vmatmul.mubr.bf16.gmra.mrb[0].mxu0 %v1142
          %v1400 = vpop.f32.mrb[0].mxu0
          %v1401 = vadd.f32 0.0, %v1400
          %v1402 = vpop.f32.mrb[0].mxu0
          %v1403 = vpop.f32.mrb[0].mxu0
          %v1404 = vadd.f32 0.0, %v1403
          %v1405 = vpop.f32.mrb[0].mxu0
          %1406 = vmatprep.mubr.bf16.mxu0 %v1145
          %1407 = vmatmul.mubr.bf16.gmra.mrb[0].mxu0 %v1144
          %v1408 = vpop.f32.mrb[0].mxu0
          %v1409 = vadd.f32 0.0, %v1408
          %v1410 = vpop.f32.mrb[0].mxu0
          %v1411 = vpop.f32.mrb[0].mxu0
          %v1412 = vadd.f32 0.0, %v1411
          %v1413 = vpop.f32.mrb[0].mxu0
          %1414 = vmatprep.mubr.bf16.mxu0 %v1147
          %1415 = vmatmul.mubr.bf16.gmra.mrb[0].mxu0 %v1146
          %v1416 = vpop.f32.mrb[0].mxu0
          %v1417 = vadd.f32 0.0, %v1416
          %v1418 = vpop.f32.mrb[0].mxu0
          %v1419 = vpop.f32.mrb[0].mxu0
          %v1420 = vadd.f32 0.0, %v1419
          %v1421 = vpop.f32.mrb[0].mxu0
          %1422 = vmatprep.mubr.bf16.mxu0 %v1149
          %1423 = vmatmul.mubr.bf16.gmra.mrb[0].mxu0 %v1148
          %v1424 = vpop.f32.mrb[0].mxu0
          %v1425 = vadd.f32 0.0, %v1424
          %v1426 = vpop.f32.mrb[0].mxu0
          %v1427 = vpop.f32.mrb[0].mxu0
          %v1428 = vadd.f32 0.0, %v1427
          %v1429 = vpop.f32.mrb[0].mxu0
          %1430 = vmatprep.mubr.bf16.mxu0 %v1151
          %1431 = vmatmul.mubr.bf16.gmra.mrb[0].mxu0 %v1150
          %v1432 = vpop.f32.mrb[0].mxu0
          %v1433 = vadd.f32 0.0, %v1432
          %v1434 = vpop.f32.mrb[0].mxu0
          %v1435 = vpop.f32.mrb[0].mxu0
          %v1436 = vadd.f32 0.0, %v1435
          %v1437 = vpop.f32.mrb[0].mxu0
          %1438 = vmatprep.mubr.bf16.mxu0 %v1153
          %1439 = vmatmul.mubr.bf16.gmra.mrb[0].mxu0 %v1152
          %v1440 = vpop.f32.mrb[0].mxu0
          %v1441 = vadd.f32 0.0, %v1440
          %v1442 = vpop.f32.mrb[0].mxu0
          %v1443 = vpop.f32.mrb[0].mxu0
          %v1444 = vadd.f32 0.0, %v1443
          %v1445 = vpop.f32.mrb[0].mxu0
          %1446 = vmatprep.mubr.bf16.mxu0 %v1155
          %1447 = vmatmul.mubr.bf16.gmra.mrb[0].mxu0 %v1154
          %v1448 = vpop.f32.mrb[0].mxu0
          %v1449 = vadd.f32 0.0, %v1448
          %v1450 = vpop.f32.mrb[0].mxu0
          %v1451 = vpop.f32.mrb[0].mxu0
          %v1452 = vadd.f32 0.0, %v1451
          %v1453 = vpop.f32.mrb[0].mxu0
          %1454 = vmatprep.mubr.bf16.mxu0 %v1157
          %1455 = vmatmul.mubr.bf16.gmra.mrb[0].mxu0 %v1156
          %v1456 = vpop.f32.mrb[0].mxu0
          %v1457 = vadd.f32 0.0, %v1456
          %v1458 = vpop.f32.mrb[0].mxu0
          %v1459 = vpop.f32.mrb[0].mxu0
          %v1460 = vadd.f32 0.0, %v1459
          %v1461 = vpop.f32.mrb[0].mxu0
          %1462 = vmatprep.mubr.bf16.mxu0 %v1159
          %1463 = vmatmul.mubr.bf16.gmra.mrb[0].mxu0 %v1158
          %v1464 = vpop.f32.mrb[0].mxu0
          %v1465 = vadd.f32 0.0, %v1464
          %v1466 = vpop.f32.mrb[0].mxu0
          %v1467 = vpop.f32.mrb[0].mxu0
          %v1468 = vadd.f32 0.0, %v1467
          %v1469 = vpop.f32.mrb[0].mxu0
          %1470 = vmatprep.mubr.bf16.mxu0 %v1161
          %1471 = vmatmul.mubr.bf16.gmra.mrb[0].mxu0 %v1160
          %v1472 = vpop.f32.mrb[0].mxu0
          %v1473 = vadd.f32 0.0, %v1472
          %v1474 = vpop.f32.mrb[0].mxu0
          %v1475 = vpop.f32.mrb[0].mxu0
          %v1476 = vadd.f32 0.0, %v1475
          %v1477 = vpop.f32.mrb[0].mxu0
          %1478 = vmatprep.mubr.bf16.mxu0 %v1163
          %1479 = vmatmul.mubr.bf16.gmra.mrb[0].mxu0 %v1162
          %v1480 = vpop.f32.mrb[0].mxu0
          %v1481 = vadd.f32 0.0, %v1480
          %v1482 = vpop.f32.mrb[0].mxu0
          %v1483 = vpop.f32.mrb[0].mxu0
          %v1484 = vadd.f32 0.0, %v1483
          %v1485 = vpop.f32.mrb[0].mxu0
          %1486 = vmatprep.mubr.bf16.mxu0 %v1165
          %1487 = vmatmul.mubr.bf16.gmra.mrb[0].mxu0 %v1164
          %v1488 = vpop.f32.mrb[0].mxu0
          %v1489 = vadd.f32 0.0, %v1488
          %v1490 = vpop.f32.mrb[0].mxu0
          %v1491 = vpop.f32.mrb[0].mxu0
          %v1492 = vadd.f32 0.0, %v1491
          %v1493 = vpop.f32.mrb[0].mxu0
          %1494 = vmatprep.mubr.bf16.mxu0 %v1167
          %1495 = vmatmul.mubr.bf16.gmra.mrb[0].mxu0 %v1166
          %v1496 = vpop.f32.mrb[0].mxu0
          %v1497 = vadd.f32 0.0, %v1496
          %v1498 = vpop.f32.mrb[0].mxu0
          %v1499 = vpop.f32.mrb[0].mxu0
          %v1500 = vadd.f32 0.0, %v1499
          %v1501 = vpop.f32.mrb[0].mxu0
          %1502 = vmatprep.mubr.bf16.mxu0 %v1169
          %1503 = vmatmul.mubr.bf16.gmra.mrb[0].mxu0 %v1168
          %v1504 = vpop.f32.mrb[0].mxu0
          %v1505 = vadd.f32 0.0, %v1504
          %v1506 = vpop.f32.mrb[0].mxu0
          %v1507 = vpop.f32.mrb[0].mxu0
          %v1508 = vadd.f32 0.0, %v1507
          %v1509 = vpop.f32.mrb[0].mxu0
          %1510 = vmatprep.mubr.bf16.mxu0 %v1171
          %1511 = vmatmul.mubr.bf16.gmra.mrb[0].mxu0 %v1170
          %v1512 = vpop.f32.mrb[0].mxu0
          %v1513 = vadd.f32 0.0, %v1512
          %v1514 = vpop.f32.mrb[0].mxu0
          %v1515 = vpop.f32.mrb[0].mxu0
          %v1516 = vadd.f32 0.0, %v1515
          %v1517 = vpop.f32.mrb[0].mxu0
          %1518 = vmatprep.mubr.bf16.mxu0 %v1173
          %1519 = vmatmul.mubr.bf16.gmra.mrb[0].mxu0 %v1172
          %v1520 = vpop.f32.mrb[0].mxu0
          %v1521 = vadd.f32 0.0, %v1520
          %v1522 = vpop.f32.mrb[0].mxu0
          %v1523 = vpop.f32.mrb[0].mxu0
          %v1524 = vadd.f32 0.0, %v1523
          %v1525 = vpop.f32.mrb[0].mxu0
          %1526 = vdwg.mxu0
          %v1527 = vadd.f32 %v774, %v1273
          %v1528 = vadd.f32 %v775, %v1276
          %v1529 = vadd.f32 %v776, %v1281
          %v1530 = vadd.f32 %v777, %v1284
          %v1531 = vadd.f32 %v778, %v1289
          %v1532 = vadd.f32 %v779, %v1292
          %v1533 = vadd.f32 %v780, %v1297
          %v1534 = vadd.f32 %v781, %v1300
          %v1535 = vadd.f32 %v782, %v1305
          %v1536 = vadd.f32 %v783, %v1308
          %v1537 = vadd.f32 %v784, %v1313
          %v1538 = vadd.f32 %v785, %v1316
          %v1539 = vadd.f32 %v786, %v1321
          %v1540 = vadd.f32 %v787, %v1324
          %v1541 = vadd.f32 %v788, %v1329
          %v1542 = vadd.f32 %v789, %v1332
          %v1543 = vadd.f32 %v790, %v1337
          %v1544 = vadd.f32 %v791, %v1340
          %v1545 = vadd.f32 %v792, %v1345
          %v1546 = vadd.f32 %v793, %v1348
          %v1547 = vadd.f32 %v794, %v1353
          %v1548 = vadd.f32 %v795, %v1356
          %v1549 = vadd.f32 %v796, %v1361
          %v1550 = vadd.f32 %v797, %v1364
          %v1551 = vadd.f32 %v798, %v1369
          %v1552 = vadd.f32 %v799, %v1372
          %v1553 = vadd.f32 %v800, %v1377
          %v1554 = vadd.f32 %v801, %v1380
          %v1555 = vadd.f32 %v802, %v1385
          %v1556 = vadd.f32 %v803, %v1388
          %v1557 = vadd.f32 %v804, %v1393
          %v1558 = vadd.f32 %v805, %v1396
          %v1559 = vadd.f32 %v806, %v1401
          %v1560 = vadd.f32 %v807, %v1404
          %v1561 = vadd.f32 %v808, %v1409
          %v1562 = vadd.f32 %v809, %v1412
          %v1563 = vadd.f32 %v810, %v1417
          %v1564 = vadd.f32 %v811, %v1420
          %v1565 = vadd.f32 %v812, %v1425
          %v1566 = vadd.f32 %v813, %v1428
          %v1567 = vadd.f32 %v814, %v1433
          %v1568 = vadd.f32 %v815, %v1436
          %v1569 = vadd.f32 %v816, %v1441
          %v1570 = vadd.f32 %v817, %v1444
          %v1571 = vadd.f32 %v818, %v1449
          %v1572 = vadd.f32 %v819, %v1452
          %v1573 = vadd.f32 %v820, %v1457
          %v1574 = vadd.f32 %v821, %v1460
          %v1575 = vadd.f32 %v822, %v1465
          %v1576 = vadd.f32 %v823, %v1468
          %v1577 = vadd.f32 %v824, %v1473
          %v1578 = vadd.f32 %v825, %v1476
          %v1579 = vadd.f32 %v826, %v1481
          %v1580 = vadd.f32 %v827, %v1484
          %v1581 = vadd.f32 %v828, %v1489
          %v1582 = vadd.f32 %v829, %v1492
          %v1583 = vadd.f32 %v830, %v1497
          %v1584 = vadd.f32 %v831, %v1500
          %v1585 = vadd.f32 %v832, %v1505
          %v1586 = vadd.f32 %v833, %v1508
          %v1587 = vadd.f32 %v834, %v1513
          %v1588 = vadd.f32 %v835, %v1516
          %v1589 = vadd.f32 %v836, %v1521
          %v1590 = vadd.f32 %v837, %v1524
          %vm1591 = vcmask 261120
          %1592 = vst.msk [vmem:[#allocation2] sm:$0xff] %vm1591, %v1527
          %1593 = vst.msk [vmem:[#allocation2 + $0x8] sm:$0xff] %vm1591, %v1528
          %1594 = vst.msk [vmem:[#allocation2 + $0x10] sm:$0xff] %vm1591, %v1529
          %1595 = vst.msk [vmem:[#allocation2 + $0x18] sm:$0xff] %vm1591, %v1530
          %1596 = vst.msk [vmem:[#allocation2 + $0x20] sm:$0xff] %vm1591, %v1531
          %1597 = vst.msk [vmem:[#allocation2 + $0x28] sm:$0xff] %vm1591, %v1532
          %1598 = vst.msk [vmem:[#allocation2 + $0x30] sm:$0xff] %vm1591, %v1533
          %1599 = vst.msk [vmem:[#allocation2 + $0x38] sm:$0xff] %vm1591, %v1534
          %1600 = vst.msk [vmem:[#allocation2 + $0x40] sm:$0xff] %vm1591, %v1535
          %1601 = vst.msk [vmem:[#allocation2 + $0x48] sm:$0xff] %vm1591, %v1536
          %1602 = vst.msk [vmem:[#allocation2 + $0x50] sm:$0xff] %vm1591, %v1537
          %1603 = vst.msk [vmem:[#allocation2 + $0x58] sm:$0xff] %vm1591, %v1538
          %1604 = vst.msk [vmem:[#allocation2 + $0x60] sm:$0xff] %vm1591, %v1539
          %1605 = vst.msk [vmem:[#allocation2 + $0x68] sm:$0xff] %vm1591, %v1540
          %1606 = vst.msk [vmem:[#allocation2 + $0x70] sm:$0xff] %vm1591, %v1541
          %1607 = vst.msk [vmem:[#allocation2 + $0x78] sm:$0xff] %vm1591, %v1542
          %1608 = vst.msk [vmem:[#allocation2 + $0x80] sm:$0xff] %vm1591, %v1543
          %1609 = vst.msk [vmem:[#allocation2 + $0x88] sm:$0xff] %vm1591, %v1544
          %1610 = vst.msk [vmem:[#allocation2 + $0x90] sm:$0xff] %vm1591, %v1545
          %1611 = vst.msk [vmem:[#allocation2 + $0x98] sm:$0xff] %vm1591, %v1546
          %1612 = vst.msk [vmem:[#allocation2 + $0xa0] sm:$0xff] %vm1591, %v1547
          %1613 = vst.msk [vmem:[#allocation2 + $0xa8] sm:$0xff] %vm1591, %v1548
          %1614 = vst.msk [vmem:[#allocation2 + $0xb0] sm:$0xff] %vm1591, %v1549
          %1615 = vst.msk [vmem:[#allocation2 + $0xb8] sm:$0xff] %vm1591, %v1550
          %1616 = vst.msk [vmem:[#allocation2 + $0xc0] sm:$0xff] %vm1591, %v1551
          %1617 = vst.msk [vmem:[#allocation2 + $0xc8] sm:$0xff] %vm1591, %v1552
          %1618 = vst.msk [vmem:[#allocation2 + $0xd0] sm:$0xff] %vm1591, %v1553
          %1619 = vst.msk [vmem:[#allocation2 + $0xd8] sm:$0xff] %vm1591, %v1554
          %1620 = vst.msk [vmem:[#allocation2 + $0xe0] sm:$0xff] %vm1591, %v1555
          %1621 = vst.msk [vmem:[#allocation2 + $0xe8] sm:$0xff] %vm1591, %v1556
          %1622 = vst.msk [vmem:[#allocation2 + $0xf0] sm:$0xff] %vm1591, %v1557
          %1623 = vst.msk [vmem:[#allocation2 + $0xf8] sm:$0xff] %vm1591, %v1558
          %1624 = vst.msk [vmem:[#allocation2 + $0x100] sm:$0xff] %vm1591, %v1559
          %1625 = vst.msk [vmem:[#allocation2 + $0x108] sm:$0xff] %vm1591, %v1560
          %1626 = vst.msk [vmem:[#allocation2 + $0x110] sm:$0xff] %vm1591, %v1561
          %1627 = vst.msk [vmem:[#allocation2 + $0x118] sm:$0xff] %vm1591, %v1562
          %1628 = vst.msk [vmem:[#allocation2 + $0x120] sm:$0xff] %vm1591, %v1563
          %1629 = vst.msk [vmem:[#allocation2 + $0x128] sm:$0xff] %vm1591, %v1564
          %1630 = vst.msk [vmem:[#allocation2 + $0x130] sm:$0xff] %vm1591, %v1565
          %1631 = vst.msk [vmem:[#allocation2 + $0x138] sm:$0xff] %vm1591, %v1566
          %1632 = vst.msk [vmem:[#allocation2 + $0x140] sm:$0xff] %vm1591, %v1567
          %1633 = vst.msk [vmem:[#allocation2 + $0x148] sm:$0xff] %vm1591, %v1568
          %1634 = vst.msk [vmem:[#allocation2 + $0x150] sm:$0xff] %vm1591, %v1569
          %1635 = vst.msk [vmem:[#allocation2 + $0x158] sm:$0xff] %vm1591, %v1570
          %1636 = vst.msk [vmem:[#allocation2 + $0x160] sm:$0xff] %vm1591, %v1571
          %1637 = vst.msk [vmem:[#allocation2 + $0x168] sm:$0xff] %vm1591, %v1572
          %1638 = vst.msk [vmem:[#allocation2 + $0x170] sm:$0xff] %vm1591, %v1573
          %1639 = vst.msk [vmem:[#allocation2 + $0x178] sm:$0xff] %vm1591, %v1574
          %1640 = vst.msk [vmem:[#allocation2 + $0x180] sm:$0xff] %vm1591, %v1575
          %1641 = vst.msk [vmem:[#allocation2 + $0x188] sm:$0xff] %vm1591, %v1576
          %1642 = vst.msk [vmem:[#allocation2 + $0x190] sm:$0xff] %vm1591, %v1577
          %1643 = vst.msk [vmem:[#allocation2 + $0x198] sm:$0xff] %vm1591, %v1578
          %1644 = vst.msk [vmem:[#allocation2 + $0x1a0] sm:$0xff] %vm1591, %v1579
          %1645 = vst.msk [vmem:[#allocation2 + $0x1a8] sm:$0xff] %vm1591, %v1580
          %1646 = vst.msk [vmem:[#allocation2 + $0x1b0] sm:$0xff] %vm1591, %v1581
          %1647 = vst.msk [vmem:[#allocation2 + $0x1b8] sm:$0xff] %vm1591, %v1582
          %1648 = vst.msk [vmem:[#allocation2 + $0x1c0] sm:$0xff] %vm1591, %v1583
          %1649 = vst.msk [vmem:[#allocation2 + $0x1c8] sm:$0xff] %vm1591, %v1584
          %1650 = vst.msk [vmem:[#allocation2 + $0x1d0] sm:$0xff] %vm1591, %v1585
          %1651 = vst.msk [vmem:[#allocation2 + $0x1d8] sm:$0xff] %vm1591, %v1586
          %1652 = vst.msk [vmem:[#allocation2 + $0x1e0] sm:$0xff] %vm1591, %v1587
          %1653 = vst.msk [vmem:[#allocation2 + $0x1e8] sm:$0xff] %vm1591, %v1588
          %1654 = vst.msk [vmem:[#allocation2 + $0x1f0] sm:$0xff] %vm1591, %v1589
          %1655 = vst.msk [vmem:[#allocation2 + $0x1f8] sm:$0xff] %vm1591, %v1590
        $region84: #{tpu_custom_call.1} parent=51 // pred_fallthru
          _
        %p1656 = scmp.eq.s32.totalorder %s45, 1
        // Predicated region
        $region85: #{tpu_custom_call.1} parent=51 // pred_check
          %p1657 = pneg %p1656
        $region86: #{tpu_custom_call.1} parent=51 // pred_check_branch
          %1659 = sbr.rel (%p1657) target = $region88
        $region87: #{tpu_custom_call.1} parent=51 // pred_region
          %v1660 = vld [vmem:[%s585] sm:$0xff]
          %v1661 = vld [vmem:[%s585 + $0x8] sm:$0xff]
          %v1662 = vld [vmem:[%s585 + $0x10] sm:$0xff]
          %v1663 = vld [vmem:[%s585 + $0x18] sm:$0xff]
          %v1664 = vld [vmem:[%s585 + $0x20] sm:$0xff]
          %v1665 = vld [vmem:[%s585 + $0x28] sm:$0xff]
          %v1666 = vld [vmem:[%s585 + $0x30] sm:$0xff]
          %v1667 = vld [vmem:[%s585 + $0x38] sm:$0xff]
          %v1668 = vld [vmem:[%s585 + $0x40] sm:$0xff]
          %v1669 = vld [vmem:[%s585 + $0x48] sm:$0xff]
          %v1670 = vld [vmem:[%s585 + $0x50] sm:$0xff]
          %v1671 = vld [vmem:[%s585 + $0x58] sm:$0xff]
          %v1672 = vld [vmem:[%s585 + $0x60] sm:$0xff]
          %v1673 = vld [vmem:[%s585 + $0x68] sm:$0xff]
          %v1674 = vld [vmem:[%s585 + $0x70] sm:$0xff]
          %v1675 = vld [vmem:[%s585 + $0x78] sm:$0xff]
          %v1676 = vld [vmem:[%s585 + $0x80] sm:$0xff]
          %v1677 = vld [vmem:[%s585 + $0x88] sm:$0xff]
          %v1678 = vld [vmem:[%s585 + $0x90] sm:$0xff]
          %v1679 = vld [vmem:[%s585 + $0x98] sm:$0xff]
          %v1680 = vld [vmem:[%s585 + $0xa0] sm:$0xff]
          %v1681 = vld [vmem:[%s585 + $0xa8] sm:$0xff]
          %v1682 = vld [vmem:[%s585 + $0xb0] sm:$0xff]
          %v1683 = vld [vmem:[%s585 + $0xb8] sm:$0xff]
          %v1684 = vld [vmem:[%s585 + $0xc0] sm:$0xff]
          %v1685 = vld [vmem:[%s585 + $0xc8] sm:$0xff]
          %v1686 = vld [vmem:[%s585 + $0xd0] sm:$0xff]
          %v1687 = vld [vmem:[%s585 + $0xd8] sm:$0xff]
          %v1688 = vld [vmem:[%s585 + $0xe0] sm:$0xff]
          %v1689 = vld [vmem:[%s585 + $0xe8] sm:$0xff]
          %v1690 = vld [vmem:[%s585 + $0xf0] sm:$0xff]
          %v1691 = vld [vmem:[%s585 + $0xf8] sm:$0xff]
          %v1692 = vld [vmem:[%s585 + $0x100] sm:$0xff]
          %v1693 = vld [vmem:[%s585 + $0x108] sm:$0xff]
          %v1694 = vld [vmem:[%s585 + $0x110] sm:$0xff]
          %v1695 = vld [vmem:[%s585 + $0x118] sm:$0xff]
          %v1696 = vld [vmem:[%s585 + $0x120] sm:$0xff]
          %v1697 = vld [vmem:[%s585 + $0x128] sm:$0xff]
          %v1698 = vld [vmem:[%s585 + $0x130] sm:$0xff]
          %v1699 = vld [vmem:[%s585 + $0x138] sm:$0xff]
          %v1700 = vld [vmem:[%s585 + $0x140] sm:$0xff]
          %v1701 = vld [vmem:[%s585 + $0x148] sm:$0xff]
          %v1702 = vld [vmem:[%s585 + $0x150] sm:$0xff]
          %v1703 = vld [vmem:[%s585 + $0x158] sm:$0xff]
          %v1704 = vld [vmem:[%s585 + $0x160] sm:$0xff]
          %v1705 = vld [vmem:[%s585 + $0x168] sm:$0xff]
          %v1706 = vld [vmem:[%s585 + $0x170] sm:$0xff]
          %v1707 = vld [vmem:[%s585 + $0x178] sm:$0xff]
          %v1708 = vld [vmem:[%s585 + $0x180] sm:$0xff]
          %v1709 = vld [vmem:[%s585 + $0x188] sm:$0xff]
          %v1710 = vld [vmem:[%s585 + $0x190] sm:$0xff]
          %v1711 = vld [vmem:[%s585 + $0x198] sm:$0xff]
          %v1712 = vld [vmem:[%s585 + $0x1a0] sm:$0xff]
          %v1713 = vld [vmem:[%s585 + $0x1a8] sm:$0xff]
          %v1714 = vld [vmem:[%s585 + $0x1b0] sm:$0xff]
          %v1715 = vld [vmem:[%s585 + $0x1b8] sm:$0xff]
          %v1716 = vld [vmem:[%s585 + $0x1c0] sm:$0xff]
          %v1717 = vld [vmem:[%s585 + $0x1c8] sm:$0xff]
          %v1718 = vld [vmem:[%s585 + $0x1d0] sm:$0xff]
          %v1719 = vld [vmem:[%s585 + $0x1d8] sm:$0xff]
          %v1720 = vld [vmem:[%s585 + $0x1e0] sm:$0xff]
          %v1721 = vld [vmem:[%s585 + $0x1e8] sm:$0xff]
          %v1722 = vld [vmem:[%s585 + $0x1f0] sm:$0xff]
          %v1723 = vld [vmem:[%s585 + $0x1f8] sm:$0xff]
          %v1724 = vld [vmem:[#allocation9] sm:$0x1]
          %v1725 = vlaneseq
          %v1726 = vshrl.u32 %v1725, 7
          %v1727 = vsub.s32 0, %v1726
          %v1728 = vrot.slane %v1724, %v1727
          %v1729 = vsub.f32 %v1660, %v1728
          %v1730 = vsub.f32 %v1661, %v1728
          %v1731 = vsub.f32 %v1662, %v1728
          %v1732 = vsub.f32 %v1663, %v1728
          %v1733 = vsub.f32 %v1664, %v1728
          %v1734 = vsub.f32 %v1665, %v1728
          %v1735 = vsub.f32 %v1666, %v1728
          %v1736 = vsub.f32 %v1667, %v1728
          %v1737 = vsub.f32 %v1668, %v1728
          %v1738 = vsub.f32 %v1669, %v1728
          %v1739 = vsub.f32 %v1670, %v1728
          %v1740 = vsub.f32 %v1671, %v1728
          %v1741 = vsub.f32 %v1672, %v1728
          %v1742 = vsub.f32 %v1673, %v1728
          %v1743 = vsub.f32 %v1674, %v1728
          %v1744 = vsub.f32 %v1675, %v1728
          %v1745 = vsub.f32 %v1676, %v1728
          %v1746 = vsub.f32 %v1677, %v1728
          %v1747 = vsub.f32 %v1678, %v1728
          %v1748 = vsub.f32 %v1679, %v1728
          %v1749 = vsub.f32 %v1680, %v1728
          %v1750 = vsub.f32 %v1681, %v1728
          %v1751 = vsub.f32 %v1682, %v1728
          %v1752 = vsub.f32 %v1683, %v1728
          %v1753 = vsub.f32 %v1684, %v1728
          %v1754 = vsub.f32 %v1685, %v1728
          %v1755 = vsub.f32 %v1686, %v1728
          %v1756 = vsub.f32 %v1687, %v1728
          %v1757 = vsub.f32 %v1688, %v1728
          %v1758 = vsub.f32 %v1689, %v1728
          %v1759 = vsub.f32 %v1690, %v1728
          %v1760 = vsub.f32 %v1691, %v1728
          %v1761 = vsub.f32 %v1692, %v1728
          %v1762 = vsub.f32 %v1693, %v1728
          %v1763 = vsub.f32 %v1694, %v1728
          %v1764 = vsub.f32 %v1695, %v1728
          %v1765 = vsub.f32 %v1696, %v1728
          %v1766 = vsub.f32 %v1697, %v1728
          %v1767 = vsub.f32 %v1698, %v1728
          %v1768 = vsub.f32 %v1699, %v1728
          %v1769 = vsub.f32 %v1700, %v1728
          %v1770 = vsub.f32 %v1701, %v1728
          %v1771 = vsub.f32 %v1702, %v1728
          %v1772 = vsub.f32 %v1703, %v1728
          %v1773 = vsub.f32 %v1704, %v1728
          %v1774 = vsub.f32 %v1705, %v1728
          %v1775 = vsub.f32 %v1706, %v1728
          %v1776 = vsub.f32 %v1707, %v1728
          %v1777 = vsub.f32 %v1708, %v1728
          %v1778 = vsub.f32 %v1709, %v1728
          %v1779 = vsub.f32 %v1710, %v1728
          %v1780 = vsub.f32 %v1711, %v1728
          %v1781 = vsub.f32 %v1712, %v1728
          %v1782 = vsub.f32 %v1713, %v1728
          %v1783 = vsub.f32 %v1714, %v1728
          %v1784 = vsub.f32 %v1715, %v1728
          %v1785 = vsub.f32 %v1716, %v1728
          %v1786 = vsub.f32 %v1717, %v1728
          %v1787 = vsub.f32 %v1718, %v1728
          %v1788 = vsub.f32 %v1719, %v1728
          %v1789 = vsub.f32 %v1720, %v1728
          %v1790 = vsub.f32 %v1721, %v1728
          %v1791 = vsub.f32 %v1722, %v1728
          %v1792 = vsub.f32 %v1723, %v1728
          %v1793 = vld [vmem:[#allocation9 + $0x1] sm:$0x1]
          %v1794 = vlaneseq
          %v1795 = vshrl.u32 %v1794, 7
          %v1796 = vsub.s32 0, %v1795
          %v1797 = vrot.slane %v1793, %v1796
          %v1798 = vmul.f32 %v1729, %v1797
          %v1799 = vmul.f32 %v1730, %v1797
          %v1800 = vmul.f32 %v1731, %v1797
          %v1801 = vmul.f32 %v1732, %v1797
          %v1802 = vmul.f32 %v1733, %v1797
          %v1803 = vmul.f32 %v1734, %v1797
          %v1804 = vmul.f32 %v1735, %v1797
          %v1805 = vmul.f32 %v1736, %v1797
          %v1806 = vmul.f32 %v1737, %v1797
          %v1807 = vmul.f32 %v1738, %v1797
          %v1808 = vmul.f32 %v1739, %v1797
          %v1809 = vmul.f32 %v1740, %v1797
          %v1810 = vmul.f32 %v1741, %v1797
          %v1811 = vmul.f32 %v1742, %v1797
          %v1812 = vmul.f32 %v1743, %v1797
          %v1813 = vmul.f32 %v1744, %v1797
          %v1814 = vmul.f32 %v1745, %v1797
          %v1815 = vmul.f32 %v1746, %v1797
          %v1816 = vmul.f32 %v1747, %v1797
          %v1817 = vmul.f32 %v1748, %v1797
          %v1818 = vmul.f32 %v1749, %v1797
          %v1819 = vmul.f32 %v1750, %v1797
          %v1820 = vmul.f32 %v1751, %v1797
          %v1821 = vmul.f32 %v1752, %v1797
          %v1822 = vmul.f32 %v1753, %v1797
          %v1823 = vmul.f32 %v1754, %v1797
          %v1824 = vmul.f32 %v1755, %v1797
          %v1825 = vmul.f32 %v1756, %v1797
          %v1826 = vmul.f32 %v1757, %v1797
          %v1827 = vmul.f32 %v1758, %v1797
          %v1828 = vmul.f32 %v1759, %v1797
          %v1829 = vmul.f32 %v1760, %v1797
          %v1830 = vmul.f32 %v1761, %v1797
          %v1831 = vmul.f32 %v1762, %v1797
          %v1832 = vmul.f32 %v1763, %v1797
          %v1833 = vmul.f32 %v1764, %v1797
          %v1834 = vmul.f32 %v1765, %v1797
          %v1835 = vmul.f32 %v1766, %v1797
          %v1836 = vmul.f32 %v1767, %v1797
          %v1837 = vmul.f32 %v1768, %v1797
          %v1838 = vmul.f32 %v1769, %v1797
          %v1839 = vmul.f32 %v1770, %v1797
          %v1840 = vmul.f32 %v1771, %v1797
          %v1841 = vmul.f32 %v1772, %v1797
          %v1842 = vmul.f32 %v1773, %v1797
          %v1843 = vmul.f32 %v1774, %v1797
          %v1844 = vmul.f32 %v1775, %v1797
          %v1845 = vmul.f32 %v1776, %v1797
          %v1846 = vmul.f32 %v1777, %v1797
          %v1847 = vmul.f32 %v1778, %v1797
          %v1848 = vmul.f32 %v1779, %v1797
          %v1849 = vmul.f32 %v1780, %v1797
          %v1850 = vmul.f32 %v1781, %v1797
          %v1851 = vmul.f32 %v1782, %v1797
          %v1852 = vmul.f32 %v1783, %v1797
          %v1853 = vmul.f32 %v1784, %v1797
          %v1854 = vmul.f32 %v1785, %v1797
          %v1855 = vmul.f32 %v1786, %v1797
          %v1856 = vmul.f32 %v1787, %v1797
          %v1857 = vmul.f32 %v1788, %v1797
          %v1858 = vmul.f32 %v1789, %v1797
          %v1859 = vmul.f32 %v1790, %v1797
          %v1860 = vmul.f32 %v1791, %v1797
          %v1861 = vmul.f32 %v1792, %v1797
          %v1862 = vld [vmem:[#allocation2] sm:$0xff]
          %v1863 = vld [vmem:[#allocation2 + $0x8] sm:$0xff]
          %v1864 = vld [vmem:[#allocation2 + $0x10] sm:$0xff]
          %v1865 = vld [vmem:[#allocation2 + $0x18] sm:$0xff]
          %v1866 = vld [vmem:[#allocation2 + $0x20] sm:$0xff]
          %v1867 = vld [vmem:[#allocation2 + $0x28] sm:$0xff]
          %v1868 = vld [vmem:[#allocation2 + $0x30] sm:$0xff]
          %v1869 = vld [vmem:[#allocation2 + $0x38] sm:$0xff]
          %v1870 = vld [vmem:[#allocation2 + $0x40] sm:$0xff]
          %v1871 = vld [vmem:[#allocation2 + $0x48] sm:$0xff]
          %v1872 = vld [vmem:[#allocation2 + $0x50] sm:$0xff]
          %v1873 = vld [vmem:[#allocation2 + $0x58] sm:$0xff]
          %v1874 = vld [vmem:[#allocation2 + $0x60] sm:$0xff]
          %v1875 = vld [vmem:[#allocation2 + $0x68] sm:$0xff]
          %v1876 = vld [vmem:[#allocation2 + $0x70] sm:$0xff]
          %v1877 = vld [vmem:[#allocation2 + $0x78] sm:$0xff]
          %v1878 = vld [vmem:[#allocation2 + $0x80] sm:$0xff]
          %v1879 = vld [vmem:[#allocation2 + $0x88] sm:$0xff]
          %v1880 = vld [vmem:[#allocation2 + $0x90] sm:$0xff]
          %v1881 = vld [vmem:[#allocation2 + $0x98] sm:$0xff]
          %v1882 = vld [vmem:[#allocation2 + $0xa0] sm:$0xff]
          %v1883 = vld [vmem:[#allocation2 + $0xa8] sm:$0xff]
          %v1884 = vld [vmem:[#allocation2 + $0xb0] sm:$0xff]
          %v1885 = vld [vmem:[#allocation2 + $0xb8] sm:$0xff]
          %v1886 = vld [vmem:[#allocation2 + $0xc0] sm:$0xff]
          %v1887 = vld [vmem:[#allocation2 + $0xc8] sm:$0xff]
          %v1888 = vld [vmem:[#allocation2 + $0xd0] sm:$0xff]
          %v1889 = vld [vmem:[#allocation2 + $0xd8] sm:$0xff]
          %v1890 = vld [vmem:[#allocation2 + $0xe0] sm:$0xff]
          %v1891 = vld [vmem:[#allocation2 + $0xe8] sm:$0xff]
          %v1892 = vld [vmem:[#allocation2 + $0xf0] sm:$0xff]
          %v1893 = vld [vmem:[#allocation2 + $0xf8] sm:$0xff]
          %v1894 = vld [vmem:[#allocation2 + $0x100] sm:$0xff]
          %v1895 = vld [vmem:[#allocation2 + $0x108] sm:$0xff]
          %v1896 = vld [vmem:[#allocation2 + $0x110] sm:$0xff]
          %v1897 = vld [vmem:[#allocation2 + $0x118] sm:$0xff]
          %v1898 = vld [vmem:[#allocation2 + $0x120] sm:$0xff]
          %v1899 = vld [vmem:[#allocation2 + $0x128] sm:$0xff]
          %v1900 = vld [vmem:[#allocation2 + $0x130] sm:$0xff]
          %v1901 = vld [vmem:[#allocation2 + $0x138] sm:$0xff]
          %v1902 = vld [vmem:[#allocation2 + $0x140] sm:$0xff]
          %v1903 = vld [vmem:[#allocation2 + $0x148] sm:$0xff]
          %v1904 = vld [vmem:[#allocation2 + $0x150] sm:$0xff]
          %v1905 = vld [vmem:[#allocation2 + $0x158] sm:$0xff]
          %v1906 = vld [vmem:[#allocation2 + $0x160] sm:$0xff]
          %v1907 = vld [vmem:[#allocation2 + $0x168] sm:$0xff]
          %v1908 = vld [vmem:[#allocation2 + $0x170] sm:$0xff]
          %v1909 = vld [vmem:[#allocation2 + $0x178] sm:$0xff]
          %v1910 = vld [vmem:[#allocation2 + $0x180] sm:$0xff]
          %v1911 = vld [vmem:[#allocation2 + $0x188] sm:$0xff]
          %v1912 = vld [vmem:[#allocation2 + $0x190] sm:$0xff]
          %v1913 = vld [vmem:[#allocation2 + $0x198] sm:$0xff]
          %v1914 = vld [vmem:[#allocation2 + $0x1a0] sm:$0xff]
          %v1915 = vld [vmem:[#allocation2 + $0x1a8] sm:$0xff]
          %v1916 = vld [vmem:[#allocation2 + $0x1b0] sm:$0xff]
          %v1917 = vld [vmem:[#allocation2 + $0x1b8] sm:$0xff]
          %v1918 = vld [vmem:[#allocation2 + $0x1c0] sm:$0xff]
          %v1919 = vld [vmem:[#allocation2 + $0x1c8] sm:$0xff]
          %v1920 = vld [vmem:[#allocation2 + $0x1d0] sm:$0xff]
          %v1921 = vld [vmem:[#allocation2 + $0x1d8] sm:$0xff]
          %v1922 = vld [vmem:[#allocation2 + $0x1e0] sm:$0xff]
          %v1923 = vld [vmem:[#allocation2 + $0x1e8] sm:$0xff]
          %v1924 = vld [vmem:[#allocation2 + $0x1f0] sm:$0xff]
          %v1925 = vld [vmem:[#allocation2 + $0x1f8] sm:$0xff]
          %v1926 = vadd.f32 %v1798, %v1862
          %v1927 = vadd.f32 %v1799, %v1863
          %v1928 = vadd.f32 %v1800, %v1864
          %v1929 = vadd.f32 %v1801, %v1865
          %v1930 = vadd.f32 %v1802, %v1866
          %v1931 = vadd.f32 %v1803, %v1867
          %v1932 = vadd.f32 %v1804, %v1868
          %v1933 = vadd.f32 %v1805, %v1869
          %v1934 = vadd.f32 %v1806, %v1870
          %v1935 = vadd.f32 %v1807, %v1871
          %v1936 = vadd.f32 %v1808, %v1872
          %v1937 = vadd.f32 %v1809, %v1873
          %v1938 = vadd.f32 %v1810, %v1874
          %v1939 = vadd.f32 %v1811, %v1875
          %v1940 = vadd.f32 %v1812, %v1876
          %v1941 = vadd.f32 %v1813, %v1877
          %v1942 = vadd.f32 %v1814, %v1878
          %v1943 = vadd.f32 %v1815, %v1879
          %v1944 = vadd.f32 %v1816, %v1880
          %v1945 = vadd.f32 %v1817, %v1881
          %v1946 = vadd.f32 %v1818, %v1882
          %v1947 = vadd.f32 %v1819, %v1883
          %v1948 = vadd.f32 %v1820, %v1884
          %v1949 = vadd.f32 %v1821, %v1885
          %v1950 = vadd.f32 %v1822, %v1886
          %v1951 = vadd.f32 %v1823, %v1887
          %v1952 = vadd.f32 %v1824, %v1888
          %v1953 = vadd.f32 %v1825, %v1889
          %v1954 = vadd.f32 %v1826, %v1890
          %v1955 = vadd.f32 %v1827, %v1891
          %v1956 = vadd.f32 %v1828, %v1892
          %v1957 = vadd.f32 %v1829, %v1893
          %v1958 = vadd.f32 %v1830, %v1894
          %v1959 = vadd.f32 %v1831, %v1895
          %v1960 = vadd.f32 %v1832, %v1896
          %v1961 = vadd.f32 %v1833, %v1897
          %v1962 = vadd.f32 %v1834, %v1898
          %v1963 = vadd.f32 %v1835, %v1899
          %v1964 = vadd.f32 %v1836, %v1900
          %v1965 = vadd.f32 %v1837, %v1901
          %v1966 = vadd.f32 %v1838, %v1902
          %v1967 = vadd.f32 %v1839, %v1903
          %v1968 = vadd.f32 %v1840, %v1904
          %v1969 = vadd.f32 %v1841, %v1905
          %v1970 = vadd.f32 %v1842, %v1906
          %v1971 = vadd.f32 %v1843, %v1907
          %v1972 = vadd.f32 %v1844, %v1908
          %v1973 = vadd.f32 %v1845, %v1909
          %v1974 = vadd.f32 %v1846, %v1910
          %v1975 = vadd.f32 %v1847, %v1911
          %v1976 = vadd.f32 %v1848, %v1912
          %v1977 = vadd.f32 %v1849, %v1913
          %v1978 = vadd.f32 %v1850, %v1914
          %v1979 = vadd.f32 %v1851, %v1915
          %v1980 = vadd.f32 %v1852, %v1916
          %v1981 = vadd.f32 %v1853, %v1917
          %v1982 = vadd.f32 %v1854, %v1918
          %v1983 = vadd.f32 %v1855, %v1919
          %v1984 = vadd.f32 %v1856, %v1920
          %v1985 = vadd.f32 %v1857, %v1921
          %v1986 = vadd.f32 %v1858, %v1922
          %v1987 = vadd.f32 %v1859, %v1923
          %v1988 = vadd.f32 %v1860, %v1924
          %v1989 = vadd.f32 %v1861, %v1925
          %v1990 = vld [vmem:[#allocation11] sm:$0xff]
          %v1991 = vld [vmem:[#allocation11 + $0x8] sm:$0xff]
          %v1992 = vld [vmem:[#allocation11 + $0x10] sm:$0xff]
          %v1993 = vld [vmem:[#allocation11 + $0x18] sm:$0xff]
          %v1994 = vld [vmem:[#allocation12] sm:$0x1]
          %v1996 = vlaneseq
          %v1997 = vshrl.u32 %v1996, 7
          %v1998 = vsub.s32 0, %v1997
          %v1999 = vrot.slane %v1994, %v1998
          %vm2001 = vcmask 261120
          %v2003 = vsel %vm2001, %v1926, 0
          %v2006 = vsel %vm2001, %v1927, 0
          %v2009 = vsel %vm2001, %v1928, 0
          %v2012 = vsel %vm2001, %v1929, 0
          %v2015 = vsel %vm2001, %v1930, 0
          %v2018 = vsel %vm2001, %v1931, 0
          %v2021 = vsel %vm2001, %v1932, 0
          %v2024 = vsel %vm2001, %v1933, 0
          %v2027 = vsel %vm2001, %v1934, 0
          %v2030 = vsel %vm2001, %v1935, 0
          %v2033 = vsel %vm2001, %v1936, 0
          %v2036 = vsel %vm2001, %v1937, 0
          %v2039 = vsel %vm2001, %v1938, 0
          %v2042 = vsel %vm2001, %v1939, 0
          %v2045 = vsel %vm2001, %v1940, 0
          %v2048 = vsel %vm2001, %v1941, 0
          %v2051 = vsel %vm2001, %v1942, 0
          %v2054 = vsel %vm2001, %v1943, 0
          %v2057 = vsel %vm2001, %v1944, 0
          %v2060 = vsel %vm2001, %v1945, 0
          %v2063 = vsel %vm2001, %v1946, 0
          %v2066 = vsel %vm2001, %v1947, 0
          %v2069 = vsel %vm2001, %v1948, 0
          %v2072 = vsel %vm2001, %v1949, 0
          %v2075 = vsel %vm2001, %v1950, 0
          %v2078 = vsel %vm2001, %v1951, 0
          %v2081 = vsel %vm2001, %v1952, 0
          %v2084 = vsel %vm2001, %v1953, 0
          %v2087 = vsel %vm2001, %v1954, 0
          %v2090 = vsel %vm2001, %v1955, 0
          %v2093 = vsel %vm2001, %v1956, 0
          %v2096 = vsel %vm2001, %v1957, 0
          %v2099 = vsel %vm2001, %v1958, 0
          %v2102 = vsel %vm2001, %v1959, 0
          %v2105 = vsel %vm2001, %v1960, 0
          %v2108 = vsel %vm2001, %v1961, 0
          %v2111 = vsel %vm2001, %v1962, 0
          %v2114 = vsel %vm2001, %v1963, 0
          %v2117 = vsel %vm2001, %v1964, 0
          %v2120 = vsel %vm2001, %v1965, 0
          %v2123 = vsel %vm2001, %v1966, 0
          %v2126 = vsel %vm2001, %v1967, 0
          %v2129 = vsel %vm2001, %v1968, 0
          %v2132 = vsel %vm2001, %v1969, 0
          %v2135 = vsel %vm2001, %v1970, 0
          %v2138 = vsel %vm2001, %v1971, 0
          %v2141 = vsel %vm2001, %v1972, 0
          %v2144 = vsel %vm2001, %v1973, 0
          %v2147 = vsel %vm2001, %v1974, 0
          %v2150 = vsel %vm2001, %v1975, 0
          %v2153 = vsel %vm2001, %v1976, 0
          %v2156 = vsel %vm2001, %v1977, 0
          %v2159 = vsel %vm2001, %v1978, 0
          %v2162 = vsel %vm2001, %v1979, 0
          %v2165 = vsel %vm2001, %v1980, 0
          %v2168 = vsel %vm2001, %v1981, 0
          %v2171 = vsel %vm2001, %v1982, 0
          %v2174 = vsel %vm2001, %v1983, 0
          %v2177 = vsel %vm2001, %v1984, 0
          %v2180 = vsel %vm2001, %v1985, 0
          %v2183 = vsel %vm2001, %v1986, 0
          %v2186 = vsel %vm2001, %v1987, 0
          %v2189 = vsel %vm2001, %v1988, 0
          %v2192 = vsel %vm2001, %v1989, 0
          %2194 = vmatprep.subr.mxu0 0.0
          %2195 = vmatpush1.msra.mxu0 %v1990
          %2196 = vmatprep.subr.mxu0 0.0
          %2197 = vmatpush1.msra.mxu0 %v1991
          %2198 = vmatprep.subr.mxu0 0.0
          %2199 = vmatpush1.msra.mxu0 %v1992
          %2200 = vmatprep.subr.mxu0 0.0
          %2201 = vmatpush1.msra.mxu0 %v1993
          %2202 = vmatprep.subr.mxu0 0.0
          %2203 = vmatpush1.msra.mxu0 0.0
          %2204 = vmatprep.subr.mxu0 0.0
          %2205 = vmatpush1.msra.mxu0 0.0
          %2206 = vmatprep.subr.mxu0 0.0
          %2207 = vmatpush1.msra.mxu0 0.0
          %2208 = vmatprep.subr.mxu0 0.0
          %2209 = vmatpush1.msra.mxu0 0.0
          %2210 = vmatprep.subr.mxu0 0.0
          %2211 = vmatpush1.msra.mxu0 0.0
          %2212 = vmatprep.subr.mxu0 0.0
          %2213 = vmatpush1.msra.mxu0 0.0
          %2214 = vmatprep.subr.mxu0 0.0
          %2215 = vmatpush1.msra.mxu0 0.0
          %2216 = vmatprep.subr.mxu0 0.0
          %2217 = vmatpush1.msra.mxu0 0.0
          %2218 = vmatprep.subr.mxu0 0.0
          %2219 = vmatpush1.msra.mxu0 0.0
          %2220 = vmatprep.subr.mxu0 0.0
          %2221 = vmatpush1.msra.mxu0 0.0
          %2222 = vmatprep.subr.mxu0 0.0
          %2223 = vmatpush1.msra.mxu0 0.0
          %2224 = vmatprep.subr.mxu0 0.0
          %2225 = vmatpush1.msra.mxu0 0.0
          %2226 = vmatprep.subr.mxu0 0.0
          %2227 = vmatpush1.msra.mxu0 0.0
          %2228 = vmatprep.subr.mxu0 0.0
          %2229 = vmatpush1.msra.mxu0 0.0
          %2230 = vmatprep.subr.mxu0 0.0
          %2231 = vmatpush1.msra.mxu0 0.0
          %2232 = vmatprep.subr.mxu0 0.0
          %2233 = vmatpush1.msra.mxu0 0.0
          %2234 = vmatprep.subr.mxu0 0.0
          %2235 = vmatpush1.msra.mxu0 0.0
          %2236 = vmatprep.subr.mxu0 0.0
          %2237 = vmatpush1.msra.mxu0 0.0
          %2238 = vmatprep.subr.mxu0 0.0
          %2239 = vmatpush1.msra.mxu0 0.0
          %2240 = vmatprep.subr.mxu0 0.0
          %2241 = vmatpush1.msra.mxu0 0.0
          %2242 = vmatprep.subr.mxu0 0.0
          %2243 = vmatpush1.msra.mxu0 0.0
          %2244 = vmatprep.subr.mxu0 0.0
          %2245 = vmatpush1.msra.mxu0 0.0
          %2246 = vmatprep.subr.mxu0 0.0
          %2247 = vmatpush1.msra.mxu0 0.0
          %2248 = vmatprep.subr.mxu0 0.0
          %2249 = vmatpush1.msra.mxu0 0.0
          %2250 = vmatprep.subr.mxu0 0.0
          %2251 = vmatpush1.msra.mxu0 0.0
          %2252 = vmatprep.subr.mxu0 0.0
          %2253 = vmatpush1.msra.mxu0 0.0
          %2254 = vmatprep.subr.mxu0 0.0
          %2255 = vmatpush1.msra.mxu0 0.0
          %2256 = vmatprep.subr.mxu0 0.0
          %2257 = vmatpush1.msra.mxu0 0.0
          %2258 = vmatprep.mubr.f32.mxu0 0.0
          %2259 = vmatmul.mubr.f32.gmra.mrb[0].mxu0 %v2003
          %v2260 = vpop.f32.mrb[0].mxu0
          %v2261 = vadd.f32 %v1999, %v2260
          %v2262 = vpop.f32.mrb[0].mxu0
          %2263 = vmatprep.mubr.f32.mxu0 0.0
          %2264 = vmatmul.mubr.f32.gmra.mrb[0].mxu0 %v2006
          %v2265 = vpop.f32.mrb[0].mxu0
          %v2266 = vadd.f32 %v1999, %v2265
          %v2267 = vpop.f32.mrb[0].mxu0
          %2268 = vmatprep.mubr.f32.mxu0 0.0
          %2269 = vmatmul.mubr.f32.gmra.mrb[0].mxu0 %v2009
          %v2270 = vpop.f32.mrb[0].mxu0
          %v2271 = vadd.f32 %v1999, %v2270
          %v2272 = vpop.f32.mrb[0].mxu0
          %2273 = vmatprep.mubr.f32.mxu0 0.0
          %2274 = vmatmul.mubr.f32.gmra.mrb[0].mxu0 %v2012
          %v2275 = vpop.f32.mrb[0].mxu0
          %v2276 = vadd.f32 %v1999, %v2275
          %v2277 = vpop.f32.mrb[0].mxu0
          %2278 = vmatprep.mubr.f32.mxu0 0.0
          %2279 = vmatmul.mubr.f32.gmra.mrb[0].mxu0 %v2015
          %v2280 = vpop.f32.mrb[0].mxu0
          %v2281 = vadd.f32 %v1999, %v2280
          %v2282 = vpop.f32.mrb[0].mxu0
          %2283 = vmatprep.mubr.f32.mxu0 0.0
          %2284 = vmatmul.mubr.f32.gmra.mrb[0].mxu0 %v2018
          %v2285 = vpop.f32.mrb[0].mxu0
          %v2286 = vadd.f32 %v1999, %v2285
          %v2287 = vpop.f32.mrb[0].mxu0
          %2288 = vmatprep.mubr.f32.mxu0 0.0
          %2289 = vmatmul.mubr.f32.gmra.mrb[0].mxu0 %v2021
          %v2290 = vpop.f32.mrb[0].mxu0
          %v2291 = vadd.f32 %v1999, %v2290
          %v2292 = vpop.f32.mrb[0].mxu0
          %2293 = vmatprep.mubr.f32.mxu0 0.0
          %2294 = vmatmul.mubr.f32.gmra.mrb[0].mxu0 %v2024
          %v2295 = vpop.f32.mrb[0].mxu0
          %v2296 = vadd.f32 %v1999, %v2295
          %v2297 = vpop.f32.mrb[0].mxu0
          %2298 = vmatprep.mubr.f32.mxu0 0.0
          %2299 = vmatmul.mubr.f32.gmra.mrb[0].mxu0 %v2027
          %v2300 = vpop.f32.mrb[0].mxu0
          %v2301 = vadd.f32 %v1999, %v2300
          %v2302 = vpop.f32.mrb[0].mxu0
          %2303 = vmatprep.mubr.f32.mxu0 0.0
          %2304 = vmatmul.mubr.f32.gmra.mrb[0].mxu0 %v2030
          %v2305 = vpop.f32.mrb[0].mxu0
          %v2306 = vadd.f32 %v1999, %v2305
          %v2307 = vpop.f32.mrb[0].mxu0
          %2308 = vmatprep.mubr.f32.mxu0 0.0
          %2309 = vmatmul.mubr.f32.gmra.mrb[0].mxu0 %v2033
          %v2310 = vpop.f32.mrb[0].mxu0
          %v2311 = vadd.f32 %v1999, %v2310
          %v2312 = vpop.f32.mrb[0].mxu0
          %2313 = vmatprep.mubr.f32.mxu0 0.0
          %2314 = vmatmul.mubr.f32.gmra.mrb[0].mxu0 %v2036
          %v2315 = vpop.f32.mrb[0].mxu0
          %v2316 = vadd.f32 %v1999, %v2315
          %v2317 = vpop.f32.mrb[0].mxu0
          %2318 = vmatprep.mubr.f32.mxu0 0.0
          %2319 = vmatmul.mubr.f32.gmra.mrb[0].mxu0 %v2039
          %v2320 = vpop.f32.mrb[0].mxu0
          %v2321 = vadd.f32 %v1999, %v2320
          %v2322 = vpop.f32.mrb[0].mxu0
          %2323 = vmatprep.mubr.f32.mxu0 0.0
          %2324 = vmatmul.mubr.f32.gmra.mrb[0].mxu0 %v2042
          %v2325 = vpop.f32.mrb[0].mxu0
          %v2326 = vadd.f32 %v1999, %v2325
          %v2327 = vpop.f32.mrb[0].mxu0
          %2328 = vmatprep.mubr.f32.mxu0 0.0
          %2329 = vmatmul.mubr.f32.gmra.mrb[0].mxu0 %v2045
          %v2330 = vpop.f32.mrb[0].mxu0
          %v2331 = vadd.f32 %v1999, %v2330
          %v2332 = vpop.f32.mrb[0].mxu0
          %2333 = vmatprep.mubr.f32.mxu0 0.0
          %2334 = vmatmul.mubr.f32.gmra.mrb[0].mxu0 %v2048
          %v2335 = vpop.f32.mrb[0].mxu0
          %v2336 = vadd.f32 %v1999, %v2335
          %v2337 = vpop.f32.mrb[0].mxu0
          %2338 = vmatprep.mubr.f32.mxu0 0.0
          %2339 = vmatmul.mubr.f32.gmra.mrb[0].mxu0 %v2051
          %v2340 = vpop.f32.mrb[0].mxu0
          %v2341 = vadd.f32 %v1999, %v2340
          %v2342 = vpop.f32.mrb[0].mxu0
          %2343 = vmatprep.mubr.f32.mxu0 0.0
          %2344 = vmatmul.mubr.f32.gmra.mrb[0].mxu0 %v2054
          %v2345 = vpop.f32.mrb[0].mxu0
          %v2346 = vadd.f32 %v1999, %v2345
          %v2347 = vpop.f32.mrb[0].mxu0
          %2348 = vmatprep.mubr.f32.mxu0 0.0
          %2349 = vmatmul.mubr.f32.gmra.mrb[0].mxu0 %v2057
          %v2350 = vpop.f32.mrb[0].mxu0
          %v2351 = vadd.f32 %v1999, %v2350
          %v2352 = vpop.f32.mrb[0].mxu0
          %2353 = vmatprep.mubr.f32.mxu0 0.0
          %2354 = vmatmul.mubr.f32.gmra.mrb[0].mxu0 %v2060
          %v2355 = vpop.f32.mrb[0].mxu0
          %v2356 = vadd.f32 %v1999, %v2355
          %v2357 = vpop.f32.mrb[0].mxu0
          %2358 = vmatprep.mubr.f32.mxu0 0.0
          %2359 = vmatmul.mubr.f32.gmra.mrb[0].mxu0 %v2063
          %v2360 = vpop.f32.mrb[0].mxu0
          %v2361 = vadd.f32 %v1999, %v2360
          %v2362 = vpop.f32.mrb[0].mxu0
          %2363 = vmatprep.mubr.f32.mxu0 0.0
          %2364 = vmatmul.mubr.f32.gmra.mrb[0].mxu0 %v2066
          %v2365 = vpop.f32.mrb[0].mxu0
          %v2366 = vadd.f32 %v1999, %v2365
          %v2367 = vpop.f32.mrb[0].mxu0
          %2368 = vmatprep.mubr.f32.mxu0 0.0
          %2369 = vmatmul.mubr.f32.gmra.mrb[0].mxu0 %v2069
          %v2370 = vpop.f32.mrb[0].mxu0
          %v2371 = vadd.f32 %v1999, %v2370
          %v2372 = vpop.f32.mrb[0].mxu0
          %2373 = vmatprep.mubr.f32.mxu0 0.0
          %2374 = vmatmul.mubr.f32.gmra.mrb[0].mxu0 %v2072
          %v2375 = vpop.f32.mrb[0].mxu0
          %v2376 = vadd.f32 %v1999, %v2375
          %v2377 = vpop.f32.mrb[0].mxu0
          %2378 = vmatprep.mubr.f32.mxu0 0.0
          %2379 = vmatmul.mubr.f32.gmra.mrb[0].mxu0 %v2075
          %v2380 = vpop.f32.mrb[0].mxu0
          %v2381 = vadd.f32 %v1999, %v2380
          %v2382 = vpop.f32.mrb[0].mxu0
          %2383 = vmatprep.mubr.f32.mxu0 0.0
          %2384 = vmatmul.mubr.f32.gmra.mrb[0].mxu0 %v2078
          %v2385 = vpop.f32.mrb[0].mxu0
          %v2386 = vadd.f32 %v1999, %v2385
          %v2387 = vpop.f32.mrb[0].mxu0
          %2388 = vmatprep.mubr.f32.mxu0 0.0
          %2389 = vmatmul.mubr.f32.gmra.mrb[0].mxu0 %v2081
          %v2390 = vpop.f32.mrb[0].mxu0
          %v2391 = vadd.f32 %v1999, %v2390
          %v2392 = vpop.f32.mrb[0].mxu0
          %2393 = vmatprep.mubr.f32.mxu0 0.0
          %2394 = vmatmul.mubr.f32.gmra.mrb[0].mxu0 %v2084
          %v2395 = vpop.f32.mrb[0].mxu0
          %v2396 = vadd.f32 %v1999, %v2395
          %v2397 = vpop.f32.mrb[0].mxu0
          %2398 = vmatprep.mubr.f32.mxu0 0.0
          %2399 = vmatmul.mubr.f32.gmra.mrb[0].mxu0 %v2087
          %v2400 = vpop.f32.mrb[0].mxu0
          %v2401 = vadd.f32 %v1999, %v2400
          %v2402 = vpop.f32.mrb[0].mxu0
          %2403 = vmatprep.mubr.f32.mxu0 0.0
          %2404 = vmatmul.mubr.f32.gmra.mrb[0].mxu0 %v2090
          %v2405 = vpop.f32.mrb[0].mxu0
          %v2406 = vadd.f32 %v1999, %v2405
          %v2407 = vpop.f32.mrb[0].mxu0
          %2408 = vmatprep.mubr.f32.mxu0 0.0
          %2409 = vmatmul.mubr.f32.gmra.mrb[0].mxu0 %v2093
          %v2410 = vpop.f32.mrb[0].mxu0
          %v2411 = vadd.f32 %v1999, %v2410
          %v2412 = vpop.f32.mrb[0].mxu0
          %2413 = vmatprep.mubr.f32.mxu0 0.0
          %2414 = vmatmul.mubr.f32.gmra.mrb[0].mxu0 %v2096
          %v2415 = vpop.f32.mrb[0].mxu0
          %v2416 = vadd.f32 %v1999, %v2415
          %v2417 = vpop.f32.mrb[0].mxu0
          %2418 = vmatprep.mubr.f32.mxu0 0.0
          %2419 = vmatmul.mubr.f32.gmra.mrb[0].mxu0 %v2099
          %v2420 = vpop.f32.mrb[0].mxu0
          %v2421 = vadd.f32 %v1999, %v2420
          %v2422 = vpop.f32.mrb[0].mxu0
          %2423 = vmatprep.mubr.f32.mxu0 0.0
          %2424 = vmatmul.mubr.f32.gmra.mrb[0].mxu0 %v2102
          %v2425 = vpop.f32.mrb[0].mxu0
          %v2426 = vadd.f32 %v1999, %v2425
          %v2427 = vpop.f32.mrb[0].mxu0
          %2428 = vmatprep.mubr.f32.mxu0 0.0
          %2429 = vmatmul.mubr.f32.gmra.mrb[0].mxu0 %v2105
          %v2430 = vpop.f32.mrb[0].mxu0
          %v2431 = vadd.f32 %v1999, %v2430
          %v2432 = vpop.f32.mrb[0].mxu0
          %2433 = vmatprep.mubr.f32.mxu0 0.0
          %2434 = vmatmul.mubr.f32.gmra.mrb[0].mxu0 %v2108
          %v2435 = vpop.f32.mrb[0].mxu0
          %v2436 = vadd.f32 %v1999, %v2435
          %v2437 = vpop.f32.mrb[0].mxu0
          %2438 = vmatprep.mubr.f32.mxu0 0.0
          %2439 = vmatmul.mubr.f32.gmra.mrb[0].mxu0 %v2111
          %v2440 = vpop.f32.mrb[0].mxu0
          %v2441 = vadd.f32 %v1999, %v2440
          %v2442 = vpop.f32.mrb[0].mxu0
          %2443 = vmatprep.mubr.f32.mxu0 0.0
          %2444 = vmatmul.mubr.f32.gmra.mrb[0].mxu0 %v2114
          %v2445 = vpop.f32.mrb[0].mxu0
          %v2446 = vadd.f32 %v1999, %v2445
          %v2447 = vpop.f32.mrb[0].mxu0
          %2448 = vmatprep.mubr.f32.mxu0 0.0
          %2449 = vmatmul.mubr.f32.gmra.mrb[0].mxu0 %v2117
          %v2450 = vpop.f32.mrb[0].mxu0
          %v2451 = vadd.f32 %v1999, %v2450
          %v2452 = vpop.f32.mrb[0].mxu0
          %2453 = vmatprep.mubr.f32.mxu0 0.0
          %2454 = vmatmul.mubr.f32.gmra.mrb[0].mxu0 %v2120
          %v2455 = vpop.f32.mrb[0].mxu0
          %v2456 = vadd.f32 %v1999, %v2455
          %v2457 = vpop.f32.mrb[0].mxu0
          %2458 = vmatprep.mubr.f32.mxu0 0.0
          %2459 = vmatmul.mubr.f32.gmra.mrb[0].mxu0 %v2123
          %v2460 = vpop.f32.mrb[0].mxu0
          %v2461 = vadd.f32 %v1999, %v2460
          %v2462 = vpop.f32.mrb[0].mxu0
          %2463 = vmatprep.mubr.f32.mxu0 0.0
          %2464 = vmatmul.mubr.f32.gmra.mrb[0].mxu0 %v2126
          %v2465 = vpop.f32.mrb[0].mxu0
          %v2466 = vadd.f32 %v1999, %v2465
          %v2467 = vpop.f32.mrb[0].mxu0
          %2468 = vmatprep.mubr.f32.mxu0 0.0
          %2469 = vmatmul.mubr.f32.gmra.mrb[0].mxu0 %v2129
          %v2470 = vpop.f32.mrb[0].mxu0
          %v2471 = vadd.f32 %v1999, %v2470
          %v2472 = vpop.f32.mrb[0].mxu0
          %2473 = vmatprep.mubr.f32.mxu0 0.0
          %2474 = vmatmul.mubr.f32.gmra.mrb[0].mxu0 %v2132
          %v2475 = vpop.f32.mrb[0].mxu0
          %v2476 = vadd.f32 %v1999, %v2475
          %v2477 = vpop.f32.mrb[0].mxu0
          %2478 = vmatprep.mubr.f32.mxu0 0.0
          %2479 = vmatmul.mubr.f32.gmra.mrb[0].mxu0 %v2135
          %v2480 = vpop.f32.mrb[0].mxu0
          %v2481 = vadd.f32 %v1999, %v2480
          %v2482 = vpop.f32.mrb[0].mxu0
          %2483 = vmatprep.mubr.f32.mxu0 0.0
          %2484 = vmatmul.mubr.f32.gmra.mrb[0].mxu0 %v2138
          %v2485 = vpop.f32.mrb[0].mxu0
          %v2486 = vadd.f32 %v1999, %v2485
          %v2487 = vpop.f32.mrb[0].mxu0
          %2488 = vmatprep.mubr.f32.mxu0 0.0
          %2489 = vmatmul.mubr.f32.gmra.mrb[0].mxu0 %v2141
          %v2490 = vpop.f32.mrb[0].mxu0
          %v2491 = vadd.f32 %v1999, %v2490
          %v2492 = vpop.f32.mrb[0].mxu0
          %2493 = vmatprep.mubr.f32.mxu0 0.0
          %2494 = vmatmul.mubr.f32.gmra.mrb[0].mxu0 %v2144
          %v2495 = vpop.f32.mrb[0].mxu0
          %v2496 = vadd.f32 %v1999, %v2495
          %v2497 = vpop.f32.mrb[0].mxu0
          %2498 = vmatprep.mubr.f32.mxu0 0.0
          %2499 = vmatmul.mubr.f32.gmra.mrb[0].mxu0 %v2147
          %v2500 = vpop.f32.mrb[0].mxu0
          %v2501 = vadd.f32 %v1999, %v2500
          %v2502 = vpop.f32.mrb[0].mxu0
          %2503 = vmatprep.mubr.f32.mxu0 0.0
          %2504 = vmatmul.mubr.f32.gmra.mrb[0].mxu0 %v2150
          %v2505 = vpop.f32.mrb[0].mxu0
          %v2506 = vadd.f32 %v1999, %v2505
          %v2507 = vpop.f32.mrb[0].mxu0
          %2508 = vmatprep.mubr.f32.mxu0 0.0
          %2509 = vmatmul.mubr.f32.gmra.mrb[0].mxu0 %v2153
          %v2510 = vpop.f32.mrb[0].mxu0
          %v2511 = vadd.f32 %v1999, %v2510
          %v2512 = vpop.f32.mrb[0].mxu0
          %2513 = vmatprep.mubr.f32.mxu0 0.0
          %2514 = vmatmul.mubr.f32.gmra.mrb[0].mxu0 %v2156
          %v2515 = vpop.f32.mrb[0].mxu0
          %v2516 = vadd.f32 %v1999, %v2515
          %v2517 = vpop.f32.mrb[0].mxu0
          %2518 = vmatprep.mubr.f32.mxu0 0.0
          %2519 = vmatmul.mubr.f32.gmra.mrb[0].mxu0 %v2159
          %v2520 = vpop.f32.mrb[0].mxu0
          %v2521 = vadd.f32 %v1999, %v2520
          %v2522 = vpop.f32.mrb[0].mxu0
          %2523 = vmatprep.mubr.f32.mxu0 0.0
          %2524 = vmatmul.mubr.f32.gmra.mrb[0].mxu0 %v2162
          %v2525 = vpop.f32.mrb[0].mxu0
          %v2526 = vadd.f32 %v1999, %v2525
          %v2527 = vpop.f32.mrb[0].mxu0
          %2528 = vmatprep.mubr.f32.mxu0 0.0
          %2529 = vmatmul.mubr.f32.gmra.mrb[0].mxu0 %v2165
          %v2530 = vpop.f32.mrb[0].mxu0
          %v2531 = vadd.f32 %v1999, %v2530
          %v2532 = vpop.f32.mrb[0].mxu0
          %2533 = vmatprep.mubr.f32.mxu0 0.0
          %2534 = vmatmul.mubr.f32.gmra.mrb[0].mxu0 %v2168
          %v2535 = vpop.f32.mrb[0].mxu0
          %v2536 = vadd.f32 %v1999, %v2535
          %v2537 = vpop.f32.mrb[0].mxu0
          %2538 = vmatprep.mubr.f32.mxu0 0.0
          %2539 = vmatmul.mubr.f32.gmra.mrb[0].mxu0 %v2171
          %v2540 = vpop.f32.mrb[0].mxu0
          %v2541 = vadd.f32 %v1999, %v2540
          %v2542 = vpop.f32.mrb[0].mxu0
          %2543 = vmatprep.mubr.f32.mxu0 0.0
          %2544 = vmatmul.mubr.f32.gmra.mrb[0].mxu0 %v2174
          %v2545 = vpop.f32.mrb[0].mxu0
          %v2546 = vadd.f32 %v1999, %v2545
          %v2547 = vpop.f32.mrb[0].mxu0
          %2548 = vmatprep.mubr.f32.mxu0 0.0
          %2549 = vmatmul.mubr.f32.gmra.mrb[0].mxu0 %v2177
          %v2550 = vpop.f32.mrb[0].mxu0
          %v2551 = vadd.f32 %v1999, %v2550
          %v2552 = vpop.f32.mrb[0].mxu0
          %2553 = vmatprep.mubr.f32.mxu0 0.0
          %2554 = vmatmul.mubr.f32.gmra.mrb[0].mxu0 %v2180
          %v2555 = vpop.f32.mrb[0].mxu0
          %v2556 = vadd.f32 %v1999, %v2555
          %v2557 = vpop.f32.mrb[0].mxu0
          %2558 = vmatprep.mubr.f32.mxu0 0.0
          %2559 = vmatmul.mubr.f32.gmra.mrb[0].mxu0 %v2183
          %v2560 = vpop.f32.mrb[0].mxu0
          %v2561 = vadd.f32 %v1999, %v2560
          %v2562 = vpop.f32.mrb[0].mxu0
          %2563 = vmatprep.mubr.f32.mxu0 0.0
          %2564 = vmatmul.mubr.f32.gmra.mrb[0].mxu0 %v2186
          %v2565 = vpop.f32.mrb[0].mxu0
          %v2566 = vadd.f32 %v1999, %v2565
          %v2567 = vpop.f32.mrb[0].mxu0
          %2568 = vmatprep.mubr.f32.mxu0 0.0
          %2569 = vmatmul.mubr.f32.gmra.mrb[0].mxu0 %v2189
          %v2570 = vpop.f32.mrb[0].mxu0
          %v2571 = vadd.f32 %v1999, %v2570
          %v2572 = vpop.f32.mrb[0].mxu0
          %2573 = vmatprep.mubr.f32.mxu0 0.0
          %2574 = vmatmul.mubr.f32.gmra.mrb[0].mxu0 %v2192
          %v2575 = vpop.f32.mrb[0].mxu0
          %v2576 = vadd.f32 %v1999, %v2575
          %v2577 = vpop.f32.mrb[0].mxu0
          %2578 = vdwg.mxu0
          %v2579 = vmax.f32 %v2261, 0.0
          %v2580 = vmax.f32 %v2266, 0.0
          %v2581 = vmax.f32 %v2271, 0.0
          %v2582 = vmax.f32 %v2276, 0.0
          %v2583 = vmax.f32 %v2281, 0.0
          %v2584 = vmax.f32 %v2286, 0.0
          %v2585 = vmax.f32 %v2291, 0.0
          %v2586 = vmax.f32 %v2296, 0.0
          %v2587 = vmax.f32 %v2301, 0.0
          %v2588 = vmax.f32 %v2306, 0.0
          %v2589 = vmax.f32 %v2311, 0.0
          %v2590 = vmax.f32 %v2316, 0.0
          %v2591 = vmax.f32 %v2321, 0.0
          %v2592 = vmax.f32 %v2326, 0.0
          %v2593 = vmax.f32 %v2331, 0.0
          %v2594 = vmax.f32 %v2336, 0.0
          %v2595 = vmax.f32 %v2341, 0.0
          %v2596 = vmax.f32 %v2346, 0.0
          %v2597 = vmax.f32 %v2351, 0.0
          %v2598 = vmax.f32 %v2356, 0.0
          %v2599 = vmax.f32 %v2361, 0.0
          %v2600 = vmax.f32 %v2366, 0.0
          %v2601 = vmax.f32 %v2371, 0.0
          %v2602 = vmax.f32 %v2376, 0.0
          %v2603 = vmax.f32 %v2381, 0.0
          %v2604 = vmax.f32 %v2386, 0.0
          %v2605 = vmax.f32 %v2391, 0.0
          %v2606 = vmax.f32 %v2396, 0.0
          %v2607 = vmax.f32 %v2401, 0.0
          %v2608 = vmax.f32 %v2406, 0.0
          %v2609 = vmax.f32 %v2411, 0.0
          %v2610 = vmax.f32 %v2416, 0.0
          %v2611 = vmax.f32 %v2421, 0.0
          %v2612 = vmax.f32 %v2426, 0.0
          %v2613 = vmax.f32 %v2431, 0.0
          %v2614 = vmax.f32 %v2436, 0.0
          %v2615 = vmax.f32 %v2441, 0.0
          %v2616 = vmax.f32 %v2446, 0.0
          %v2617 = vmax.f32 %v2451, 0.0
          %v2618 = vmax.f32 %v2456, 0.0
          %v2619 = vmax.f32 %v2461, 0.0
          %v2620 = vmax.f32 %v2466, 0.0
          %v2621 = vmax.f32 %v2471, 0.0
          %v2622 = vmax.f32 %v2476, 0.0
          %v2623 = vmax.f32 %v2481, 0.0
          %v2624 = vmax.f32 %v2486, 0.0
          %v2625 = vmax.f32 %v2491, 0.0
          %v2626 = vmax.f32 %v2496, 0.0
          %v2627 = vmax.f32 %v2501, 0.0
          %v2628 = vmax.f32 %v2506, 0.0
          %v2629 = vmax.f32 %v2511, 0.0
          %v2630 = vmax.f32 %v2516, 0.0
          %v2631 = vmax.f32 %v2521, 0.0
          %v2632 = vmax.f32 %v2526, 0.0
          %v2633 = vmax.f32 %v2531, 0.0
          %v2634 = vmax.f32 %v2536, 0.0
          %v2635 = vmax.f32 %v2541, 0.0
          %v2636 = vmax.f32 %v2546, 0.0
          %v2637 = vmax.f32 %v2551, 0.0
          %v2638 = vmax.f32 %v2556, 0.0
          %v2639 = vmax.f32 %v2561, 0.0
          %v2640 = vmax.f32 %v2566, 0.0
          %v2641 = vmax.f32 %v2571, 0.0
          %v2642 = vmax.f32 %v2576, 0.0
          %v2643 = vld [vmem:[#allocation14] sm:$0xff]
          %v2644 = vld [vmem:[#allocation14 + $0x8] sm:$0xff]
          %v2645 = vld [vmem:[#allocation14 + $0x10] sm:$0xff]
          %v2646 = vld [vmem:[#allocation14 + $0x18] sm:$0xff]
          %v2647 = vld [vmem:[#allocation14 + $0x20] sm:$0xff]
          %v2648 = vld [vmem:[#allocation14 + $0x28] sm:$0xff]
          %v2649 = vld [vmem:[#allocation14 + $0x30] sm:$0xff]
          %v2650 = vld [vmem:[#allocation14 + $0x38] sm:$0xff]
          %v2651 = vld [vmem:[#allocation15] sm:$0x1]
          %v2653 = vlaneseq
          %v2654 = vshrl.u32 %v2653, 7
          %v2655 = vsub.s32 0, %v2654
          %v2656 = vrot.slane %v2651, %v2655
          %vm2658 = vcmask 523264
          %v2660 = vsel %vm2658, %v2579, 0
          %v2663 = vsel %vm2658, %v2580, 0
          %v2666 = vsel %vm2658, %v2581, 0
          %v2669 = vsel %vm2658, %v2582, 0
          %v2672 = vsel %vm2658, %v2583, 0
          %v2675 = vsel %vm2658, %v2584, 0
          %v2678 = vsel %vm2658, %v2585, 0
          %v2681 = vsel %vm2658, %v2586, 0
          %v2684 = vsel %vm2658, %v2587, 0
          %v2687 = vsel %vm2658, %v2588, 0
          %v2690 = vsel %vm2658, %v2589, 0
          %v2693 = vsel %vm2658, %v2590, 0
          %v2696 = vsel %vm2658, %v2591, 0
          %v2699 = vsel %vm2658, %v2592, 0
          %v2702 = vsel %vm2658, %v2593, 0
          %v2705 = vsel %vm2658, %v2594, 0
          %v2708 = vsel %vm2658, %v2595, 0
          %v2711 = vsel %vm2658, %v2596, 0
          %v2714 = vsel %vm2658, %v2597, 0
          %v2717 = vsel %vm2658, %v2598, 0
          %v2720 = vsel %vm2658, %v2599, 0
          %v2723 = vsel %vm2658, %v2600, 0
          %v2726 = vsel %vm2658, %v2601, 0
          %v2729 = vsel %vm2658, %v2602, 0
          %v2732 = vsel %vm2658, %v2603, 0
          %v2735 = vsel %vm2658, %v2604, 0
          %v2738 = vsel %vm2658, %v2605, 0
          %v2741 = vsel %vm2658, %v2606, 0
          %v2744 = vsel %vm2658, %v2607, 0
          %v2747 = vsel %vm2658, %v2608, 0
          %v2750 = vsel %vm2658, %v2609, 0
          %v2753 = vsel %vm2658, %v2610, 0
          %v2756 = vsel %vm2658, %v2611, 0
          %v2759 = vsel %vm2658, %v2612, 0
          %v2762 = vsel %vm2658, %v2613, 0
          %v2765 = vsel %vm2658, %v2614, 0
          %v2768 = vsel %vm2658, %v2615, 0
          %v2771 = vsel %vm2658, %v2616, 0
          %v2774 = vsel %vm2658, %v2617, 0
          %v2777 = vsel %vm2658, %v2618, 0
          %v2780 = vsel %vm2658, %v2619, 0
          %v2783 = vsel %vm2658, %v2620, 0
          %v2786 = vsel %vm2658, %v2621, 0
          %v2789 = vsel %vm2658, %v2622, 0
          %v2792 = vsel %vm2658, %v2623, 0
          %v2795 = vsel %vm2658, %v2624, 0
          %v2798 = vsel %vm2658, %v2625, 0
          %v2801 = vsel %vm2658, %v2626, 0
          %v2804 = vsel %vm2658, %v2627, 0
          %v2807 = vsel %vm2658, %v2628, 0
          %v2810 = vsel %vm2658, %v2629, 0
          %v2813 = vsel %vm2658, %v2630, 0
          %v2816 = vsel %vm2658, %v2631, 0
          %v2819 = vsel %vm2658, %v2632, 0
          %v2822 = vsel %vm2658, %v2633, 0
          %v2825 = vsel %vm2658, %v2634, 0
          %v2828 = vsel %vm2658, %v2635, 0
          %v2831 = vsel %vm2658, %v2636, 0
          %v2834 = vsel %vm2658, %v2637, 0
          %v2837 = vsel %vm2658, %v2638, 0
          %v2840 = vsel %vm2658, %v2639, 0
          %v2843 = vsel %vm2658, %v2640, 0
          %v2846 = vsel %vm2658, %v2641, 0
          %v2849 = vsel %vm2658, %v2642, 0
          %2851 = vmatprep.subr.mxu0 0.0
          %2852 = vmatpush1.msra.mxu0 %v2643
          %2853 = vmatprep.subr.mxu0 0.0
          %2854 = vmatpush1.msra.mxu0 %v2644
          %2855 = vmatprep.subr.mxu0 0.0
          %2856 = vmatpush1.msra.mxu0 %v2645
          %2857 = vmatprep.subr.mxu0 0.0
          %2858 = vmatpush1.msra.mxu0 %v2646
          %2859 = vmatprep.subr.mxu0 0.0
          %2860 = vmatpush1.msra.mxu0 %v2647
          %2861 = vmatprep.subr.mxu0 0.0
          %2862 = vmatpush1.msra.mxu0 %v2648
          %2863 = vmatprep.subr.mxu0 0.0
          %2864 = vmatpush1.msra.mxu0 %v2649
          %2865 = vmatprep.subr.mxu0 0.0
          %2866 = vmatpush1.msra.mxu0 %v2650
          %2867 = vmatprep.subr.mxu0 0.0
          %2868 = vmatpush1.msra.mxu0 0.0
          %2869 = vmatprep.subr.mxu0 0.0
          %2870 = vmatpush1.msra.mxu0 0.0
          %2871 = vmatprep.subr.mxu0 0.0
          %2872 = vmatpush1.msra.mxu0 0.0
          %2873 = vmatprep.subr.mxu0 0.0
          %2874 = vmatpush1.msra.mxu0 0.0
          %2875 = vmatprep.subr.mxu0 0.0
          %2876 = vmatpush1.msra.mxu0 0.0
          %2877 = vmatprep.subr.mxu0 0.0
          %2878 = vmatpush1.msra.mxu0 0.0
          %2879 = vmatprep.subr.mxu0 0.0
          %2880 = vmatpush1.msra.mxu0 0.0
          %2881 = vmatprep.subr.mxu0 0.0
          %2882 = vmatpush1.msra.mxu0 0.0
          %2883 = vmatprep.subr.mxu0 0.0
          %2884 = vmatpush1.msra.mxu0 0.0
          %2885 = vmatprep.subr.mxu0 0.0
          %2886 = vmatpush1.msra.mxu0 0.0
          %2887 = vmatprep.subr.mxu0 0.0
          %2888 = vmatpush1.msra.mxu0 0.0
          %2889 = vmatprep.subr.mxu0 0.0
          %2890 = vmatpush1.msra.mxu0 0.0
          %2891 = vmatprep.subr.mxu0 0.0
          %2892 = vmatpush1.msra.mxu0 0.0
          %2893 = vmatprep.subr.mxu0 0.0
          %2894 = vmatpush1.msra.mxu0 0.0
          %2895 = vmatprep.subr.mxu0 0.0
          %2896 = vmatpush1.msra.mxu0 0.0
          %2897 = vmatprep.subr.mxu0 0.0
          %2898 = vmatpush1.msra.mxu0 0.0
          %2899 = vmatprep.subr.mxu0 0.0
          %2900 = vmatpush1.msra.mxu0 0.0
          %2901 = vmatprep.subr.mxu0 0.0
          %2902 = vmatpush1.msra.mxu0 0.0
          %2903 = vmatprep.subr.mxu0 0.0
          %2904 = vmatpush1.msra.mxu0 0.0
          %2905 = vmatprep.subr.mxu0 0.0
          %2906 = vmatpush1.msra.mxu0 0.0
          %2907 = vmatprep.subr.mxu0 0.0
          %2908 = vmatpush1.msra.mxu0 0.0
          %2909 = vmatprep.subr.mxu0 0.0
          %2910 = vmatpush1.msra.mxu0 0.0
          %2911 = vmatprep.subr.mxu0 0.0
          %2912 = vmatpush1.msra.mxu0 0.0
          %2913 = vmatprep.subr.mxu0 0.0
          %2914 = vmatpush1.msra.mxu0 0.0
          %2915 = vmatprep.mubr.f32.mxu0 0.0
          %2916 = vmatmul.mubr.f32.gmra.mrb[0].mxu0 %v2660
          %v2917 = vpop.f32.mrb[0].mxu0
          %v2918 = vadd.f32 %v2656, %v2917
          %v2919 = vpop.f32.mrb[0].mxu0
          %2920 = vmatprep.mubr.f32.mxu0 0.0
          %2921 = vmatmul.mubr.f32.gmra.mrb[0].mxu0 %v2663
          %v2922 = vpop.f32.mrb[0].mxu0
          %v2923 = vadd.f32 %v2656, %v2922
          %v2924 = vpop.f32.mrb[0].mxu0
          %2925 = vmatprep.mubr.f32.mxu0 0.0
          %2926 = vmatmul.mubr.f32.gmra.mrb[0].mxu0 %v2666
          %v2927 = vpop.f32.mrb[0].mxu0
          %v2928 = vadd.f32 %v2656, %v2927
          %v2929 = vpop.f32.mrb[0].mxu0
          %2930 = vmatprep.mubr.f32.mxu0 0.0
          %2931 = vmatmul.mubr.f32.gmra.mrb[0].mxu0 %v2669
          %v2932 = vpop.f32.mrb[0].mxu0
          %v2933 = vadd.f32 %v2656, %v2932
          %v2934 = vpop.f32.mrb[0].mxu0
          %2935 = vmatprep.mubr.f32.mxu0 0.0
          %2936 = vmatmul.mubr.f32.gmra.mrb[0].mxu0 %v2672
          %v2937 = vpop.f32.mrb[0].mxu0
          %v2938 = vadd.f32 %v2656, %v2937
          %v2939 = vpop.f32.mrb[0].mxu0
          %2940 = vmatprep.mubr.f32.mxu0 0.0
          %2941 = vmatmul.mubr.f32.gmra.mrb[0].mxu0 %v2675
          %v2942 = vpop.f32.mrb[0].mxu0
          %v2943 = vadd.f32 %v2656, %v2942
          %v2944 = vpop.f32.mrb[0].mxu0
          %2945 = vmatprep.mubr.f32.mxu0 0.0
          %2946 = vmatmul.mubr.f32.gmra.mrb[0].mxu0 %v2678
          %v2947 = vpop.f32.mrb[0].mxu0
          %v2948 = vadd.f32 %v2656, %v2947
          %v2949 = vpop.f32.mrb[0].mxu0
          %2950 = vmatprep.mubr.f32.mxu0 0.0
          %2951 = vmatmul.mubr.f32.gmra.mrb[0].mxu0 %v2681
          %v2952 = vpop.f32.mrb[0].mxu0
          %v2953 = vadd.f32 %v2656, %v2952
          %v2954 = vpop.f32.mrb[0].mxu0
          %2955 = vmatprep.mubr.f32.mxu0 0.0
          %2956 = vmatmul.mubr.f32.gmra.mrb[0].mxu0 %v2684
          %v2957 = vpop.f32.mrb[0].mxu0
          %v2958 = vadd.f32 %v2656, %v2957
          %v2959 = vpop.f32.mrb[0].mxu0
          %2960 = vmatprep.mubr.f32.mxu0 0.0
          %2961 = vmatmul.mubr.f32.gmra.mrb[0].mxu0 %v2687
          %v2962 = vpop.f32.mrb[0].mxu0
          %v2963 = vadd.f32 %v2656, %v2962
          %v2964 = vpop.f32.mrb[0].mxu0
          %2965 = vmatprep.mubr.f32.mxu0 0.0
          %2966 = vmatmul.mubr.f32.gmra.mrb[0].mxu0 %v2690
          %v2967 = vpop.f32.mrb[0].mxu0
          %v2968 = vadd.f32 %v2656, %v2967
          %v2969 = vpop.f32.mrb[0].mxu0
          %2970 = vmatprep.mubr.f32.mxu0 0.0
          %2971 = vmatmul.mubr.f32.gmra.mrb[0].mxu0 %v2693
          %v2972 = vpop.f32.mrb[0].mxu0
          %v2973 = vadd.f32 %v2656, %v2972
          %v2974 = vpop.f32.mrb[0].mxu0
          %2975 = vmatprep.mubr.f32.mxu0 0.0
          %2976 = vmatmul.mubr.f32.gmra.mrb[0].mxu0 %v2696
          %v2977 = vpop.f32.mrb[0].mxu0
          %v2978 = vadd.f32 %v2656, %v2977
          %v2979 = vpop.f32.mrb[0].mxu0
          %2980 = vmatprep.mubr.f32.mxu0 0.0
          %2981 = vmatmul.mubr.f32.gmra.mrb[0].mxu0 %v2699
          %v2982 = vpop.f32.mrb[0].mxu0
          %v2983 = vadd.f32 %v2656, %v2982
          %v2984 = vpop.f32.mrb[0].mxu0
          %2985 = vmatprep.mubr.f32.mxu0 0.0
          %2986 = vmatmul.mubr.f32.gmra.mrb[0].mxu0 %v2702
          %v2987 = vpop.f32.mrb[0].mxu0
          %v2988 = vadd.f32 %v2656, %v2987
          %v2989 = vpop.f32.mrb[0].mxu0
          %2990 = vmatprep.mubr.f32.mxu0 0.0
          %2991 = vmatmul.mubr.f32.gmra.mrb[0].mxu0 %v2705
          %v2992 = vpop.f32.mrb[0].mxu0
          %v2993 = vadd.f32 %v2656, %v2992
          %v2994 = vpop.f32.mrb[0].mxu0
          %2995 = vmatprep.mubr.f32.mxu0 0.0
          %2996 = vmatmul.mubr.f32.gmra.mrb[0].mxu0 %v2708
          %v2997 = vpop.f32.mrb[0].mxu0
          %v2998 = vadd.f32 %v2656, %v2997
          %v2999 = vpop.f32.mrb[0].mxu0
          %3000 = vmatprep.mubr.f32.mxu0 0.0
          %3001 = vmatmul.mubr.f32.gmra.mrb[0].mxu0 %v2711
          %v3002 = vpop.f32.mrb[0].mxu0
          %v3003 = vadd.f32 %v2656, %v3002
          %v3004 = vpop.f32.mrb[0].mxu0
          %3005 = vmatprep.mubr.f32.mxu0 0.0
          %3006 = vmatmul.mubr.f32.gmra.mrb[0].mxu0 %v2714
          %v3007 = vpop.f32.mrb[0].mxu0
          %v3008 = vadd.f32 %v2656, %v3007
          %v3009 = vpop.f32.mrb[0].mxu0
          %3010 = vmatprep.mubr.f32.mxu0 0.0
          %3011 = vmatmul.mubr.f32.gmra.mrb[0].mxu0 %v2717
          %v3012 = vpop.f32.mrb[0].mxu0
          %v3013 = vadd.f32 %v2656, %v3012
          %v3014 = vpop.f32.mrb[0].mxu0
          %3015 = vmatprep.mubr.f32.mxu0 0.0
          %3016 = vmatmul.mubr.f32.gmra.mrb[0].mxu0 %v2720
          %v3017 = vpop.f32.mrb[0].mxu0
          %v3018 = vadd.f32 %v2656, %v3017
          %v3019 = vpop.f32.mrb[0].mxu0
          %3020 = vmatprep.mubr.f32.mxu0 0.0
          %3021 = vmatmul.mubr.f32.gmra.mrb[0].mxu0 %v2723
          %v3022 = vpop.f32.mrb[0].mxu0
          %v3023 = vadd.f32 %v2656, %v3022
          %v3024 = vpop.f32.mrb[0].mxu0
          %3025 = vmatprep.mubr.f32.mxu0 0.0
          %3026 = vmatmul.mubr.f32.gmra.mrb[0].mxu0 %v2726
          %v3027 = vpop.f32.mrb[0].mxu0
          %v3028 = vadd.f32 %v2656, %v3027
          %v3029 = vpop.f32.mrb[0].mxu0
          %3030 = vmatprep.mubr.f32.mxu0 0.0
          %3031 = vmatmul.mubr.f32.gmra.mrb[0].mxu0 %v2729
          %v3032 = vpop.f32.mrb[0].mxu0
          %v3033 = vadd.f32 %v2656, %v3032
          %v3034 = vpop.f32.mrb[0].mxu0
          %3035 = vmatprep.mubr.f32.mxu0 0.0
          %3036 = vmatmul.mubr.f32.gmra.mrb[0].mxu0 %v2732
          %v3037 = vpop.f32.mrb[0].mxu0
          %v3038 = vadd.f32 %v2656, %v3037
          %v3039 = vpop.f32.mrb[0].mxu0
          %3040 = vmatprep.mubr.f32.mxu0 0.0
          %3041 = vmatmul.mubr.f32.gmra.mrb[0].mxu0 %v2735
          %v3042 = vpop.f32.mrb[0].mxu0
          %v3043 = vadd.f32 %v2656, %v3042
          %v3044 = vpop.f32.mrb[0].mxu0
          %3045 = vmatprep.mubr.f32.mxu0 0.0
          %3046 = vmatmul.mubr.f32.gmra.mrb[0].mxu0 %v2738
          %v3047 = vpop.f32.mrb[0].mxu0
          %v3048 = vadd.f32 %v2656, %v3047
          %v3049 = vpop.f32.mrb[0].mxu0
          %3050 = vmatprep.mubr.f32.mxu0 0.0
          %3051 = vmatmul.mubr.f32.gmra.mrb[0].mxu0 %v2741
          %v3052 = vpop.f32.mrb[0].mxu0
          %v3053 = vadd.f32 %v2656, %v3052
          %v3054 = vpop.f32.mrb[0].mxu0
          %3055 = vmatprep.mubr.f32.mxu0 0.0
          %3056 = vmatmul.mubr.f32.gmra.mrb[0].mxu0 %v2744
          %v3057 = vpop.f32.mrb[0].mxu0
          %v3058 = vadd.f32 %v2656, %v3057
          %v3059 = vpop.f32.mrb[0].mxu0
          %3060 = vmatprep.mubr.f32.mxu0 0.0
          %3061 = vmatmul.mubr.f32.gmra.mrb[0].mxu0 %v2747
          %v3062 = vpop.f32.mrb[0].mxu0
          %v3063 = vadd.f32 %v2656, %v3062
          %v3064 = vpop.f32.mrb[0].mxu0
          %3065 = vmatprep.mubr.f32.mxu0 0.0
          %3066 = vmatmul.mubr.f32.gmra.mrb[0].mxu0 %v2750
          %v3067 = vpop.f32.mrb[0].mxu0
          %v3068 = vadd.f32 %v2656, %v3067
          %v3069 = vpop.f32.mrb[0].mxu0
          %3070 = vmatprep.mubr.f32.mxu0 0.0
          %3071 = vmatmul.mubr.f32.gmra.mrb[0].mxu0 %v2753
          %v3072 = vpop.f32.mrb[0].mxu0
          %v3073 = vadd.f32 %v2656, %v3072
          %v3074 = vpop.f32.mrb[0].mxu0
          %3075 = vmatprep.mubr.f32.mxu0 0.0
          %3076 = vmatmul.mubr.f32.gmra.mrb[0].mxu0 %v2756
          %v3077 = vpop.f32.mrb[0].mxu0
          %v3078 = vadd.f32 %v2656, %v3077
          %v3079 = vpop.f32.mrb[0].mxu0
          %3080 = vmatprep.mubr.f32.mxu0 0.0
          %3081 = vmatmul.mubr.f32.gmra.mrb[0].mxu0 %v2759
          %v3082 = vpop.f32.mrb[0].mxu0
          %v3083 = vadd.f32 %v2656, %v3082
          %v3084 = vpop.f32.mrb[0].mxu0
          %3085 = vmatprep.mubr.f32.mxu0 0.0
          %3086 = vmatmul.mubr.f32.gmra.mrb[0].mxu0 %v2762
          %v3087 = vpop.f32.mrb[0].mxu0
          %v3088 = vadd.f32 %v2656, %v3087
          %v3089 = vpop.f32.mrb[0].mxu0
          %3090 = vmatprep.mubr.f32.mxu0 0.0
          %3091 = vmatmul.mubr.f32.gmra.mrb[0].mxu0 %v2765
          %v3092 = vpop.f32.mrb[0].mxu0
          %v3093 = vadd.f32 %v2656, %v3092
          %v3094 = vpop.f32.mrb[0].mxu0
          %3095 = vmatprep.mubr.f32.mxu0 0.0
          %3096 = vmatmul.mubr.f32.gmra.mrb[0].mxu0 %v2768
          %v3097 = vpop.f32.mrb[0].mxu0
          %v3098 = vadd.f32 %v2656, %v3097
          %v3099 = vpop.f32.mrb[0].mxu0
          %3100 = vmatprep.mubr.f32.mxu0 0.0
          %3101 = vmatmul.mubr.f32.gmra.mrb[0].mxu0 %v2771
          %v3102 = vpop.f32.mrb[0].mxu0
          %v3103 = vadd.f32 %v2656, %v3102
          %v3104 = vpop.f32.mrb[0].mxu0
          %3105 = vmatprep.mubr.f32.mxu0 0.0
          %3106 = vmatmul.mubr.f32.gmra.mrb[0].mxu0 %v2774
          %v3107 = vpop.f32.mrb[0].mxu0
          %v3108 = vadd.f32 %v2656, %v3107
          %v3109 = vpop.f32.mrb[0].mxu0
          %3110 = vmatprep.mubr.f32.mxu0 0.0
          %3111 = vmatmul.mubr.f32.gmra.mrb[0].mxu0 %v2777
          %v3112 = vpop.f32.mrb[0].mxu0
          %v3113 = vadd.f32 %v2656, %v3112
          %v3114 = vpop.f32.mrb[0].mxu0
          %3115 = vmatprep.mubr.f32.mxu0 0.0
          %3116 = vmatmul.mubr.f32.gmra.mrb[0].mxu0 %v2780
          %v3117 = vpop.f32.mrb[0].mxu0
          %v3118 = vadd.f32 %v2656, %v3117
          %v3119 = vpop.f32.mrb[0].mxu0
          %3120 = vmatprep.mubr.f32.mxu0 0.0
          %3121 = vmatmul.mubr.f32.gmra.mrb[0].mxu0 %v2783
          %v3122 = vpop.f32.mrb[0].mxu0
          %v3123 = vadd.f32 %v2656, %v3122
          %v3124 = vpop.f32.mrb[0].mxu0
          %3125 = vmatprep.mubr.f32.mxu0 0.0
          %3126 = vmatmul.mubr.f32.gmra.mrb[0].mxu0 %v2786
          %v3127 = vpop.f32.mrb[0].mxu0
          %v3128 = vadd.f32 %v2656, %v3127
          %v3129 = vpop.f32.mrb[0].mxu0
          %3130 = vmatprep.mubr.f32.mxu0 0.0
          %3131 = vmatmul.mubr.f32.gmra.mrb[0].mxu0 %v2789
          %v3132 = vpop.f32.mrb[0].mxu0
          %v3133 = vadd.f32 %v2656, %v3132
          %v3134 = vpop.f32.mrb[0].mxu0
          %3135 = vmatprep.mubr.f32.mxu0 0.0
          %3136 = vmatmul.mubr.f32.gmra.mrb[0].mxu0 %v2792
          %v3137 = vpop.f32.mrb[0].mxu0
          %v3138 = vadd.f32 %v2656, %v3137
          %v3139 = vpop.f32.mrb[0].mxu0
          %3140 = vmatprep.mubr.f32.mxu0 0.0
          %3141 = vmatmul.mubr.f32.gmra.mrb[0].mxu0 %v2795
          %v3142 = vpop.f32.mrb[0].mxu0
          %v3143 = vadd.f32 %v2656, %v3142
          %v3144 = vpop.f32.mrb[0].mxu0
          %3145 = vmatprep.mubr.f32.mxu0 0.0
          %3146 = vmatmul.mubr.f32.gmra.mrb[0].mxu0 %v2798
          %v3147 = vpop.f32.mrb[0].mxu0
          %v3148 = vadd.f32 %v2656, %v3147
          %v3149 = vpop.f32.mrb[0].mxu0
          %3150 = vmatprep.mubr.f32.mxu0 0.0
          %3151 = vmatmul.mubr.f32.gmra.mrb[0].mxu0 %v2801
          %v3152 = vpop.f32.mrb[0].mxu0
          %v3153 = vadd.f32 %v2656, %v3152
          %v3154 = vpop.f32.mrb[0].mxu0
          %3155 = vmatprep.mubr.f32.mxu0 0.0
          %3156 = vmatmul.mubr.f32.gmra.mrb[0].mxu0 %v2804
          %v3157 = vpop.f32.mrb[0].mxu0
          %v3158 = vadd.f32 %v2656, %v3157
          %v3159 = vpop.f32.mrb[0].mxu0
          %3160 = vmatprep.mubr.f32.mxu0 0.0
          %3161 = vmatmul.mubr.f32.gmra.mrb[0].mxu0 %v2807
          %v3162 = vpop.f32.mrb[0].mxu0
          %v3163 = vadd.f32 %v2656, %v3162
          %v3164 = vpop.f32.mrb[0].mxu0
          %3165 = vmatprep.mubr.f32.mxu0 0.0
          %3166 = vmatmul.mubr.f32.gmra.mrb[0].mxu0 %v2810
          %v3167 = vpop.f32.mrb[0].mxu0
          %v3168 = vadd.f32 %v2656, %v3167
          %v3169 = vpop.f32.mrb[0].mxu0
          %3170 = vmatprep.mubr.f32.mxu0 0.0
          %3171 = vmatmul.mubr.f32.gmra.mrb[0].mxu0 %v2813
          %v3172 = vpop.f32.mrb[0].mxu0
          %v3173 = vadd.f32 %v2656, %v3172
          %v3174 = vpop.f32.mrb[0].mxu0
          %3175 = vmatprep.mubr.f32.mxu0 0.0
          %3176 = vmatmul.mubr.f32.gmra.mrb[0].mxu0 %v2816
          %v3177 = vpop.f32.mrb[0].mxu0
          %v3178 = vadd.f32 %v2656, %v3177
          %v3179 = vpop.f32.mrb[0].mxu0
          %3180 = vmatprep.mubr.f32.mxu0 0.0
          %3181 = vmatmul.mubr.f32.gmra.mrb[0].mxu0 %v2819
          %v3182 = vpop.f32.mrb[0].mxu0
          %v3183 = vadd.f32 %v2656, %v3182
          %v3184 = vpop.f32.mrb[0].mxu0
          %3185 = vmatprep.mubr.f32.mxu0 0.0
          %3186 = vmatmul.mubr.f32.gmra.mrb[0].mxu0 %v2822
          %v3187 = vpop.f32.mrb[0].mxu0
          %v3188 = vadd.f32 %v2656, %v3187
          %v3189 = vpop.f32.mrb[0].mxu0
          %3190 = vmatprep.mubr.f32.mxu0 0.0
          %3191 = vmatmul.mubr.f32.gmra.mrb[0].mxu0 %v2825
          %v3192 = vpop.f32.mrb[0].mxu0
          %v3193 = vadd.f32 %v2656, %v3192
          %v3194 = vpop.f32.mrb[0].mxu0
          %3195 = vmatprep.mubr.f32.mxu0 0.0
          %3196 = vmatmul.mubr.f32.gmra.mrb[0].mxu0 %v2828
          %v3197 = vpop.f32.mrb[0].mxu0
          %v3198 = vadd.f32 %v2656, %v3197
          %v3199 = vpop.f32.mrb[0].mxu0
          %3200 = vmatprep.mubr.f32.mxu0 0.0
          %3201 = vmatmul.mubr.f32.gmra.mrb[0].mxu0 %v2831
          %v3202 = vpop.f32.mrb[0].mxu0
          %v3203 = vadd.f32 %v2656, %v3202
          %v3204 = vpop.f32.mrb[0].mxu0
          %3205 = vmatprep.mubr.f32.mxu0 0.0
          %3206 = vmatmul.mubr.f32.gmra.mrb[0].mxu0 %v2834
          %v3207 = vpop.f32.mrb[0].mxu0
          %v3208 = vadd.f32 %v2656, %v3207
          %v3209 = vpop.f32.mrb[0].mxu0
          %3210 = vmatprep.mubr.f32.mxu0 0.0
          %3211 = vmatmul.mubr.f32.gmra.mrb[0].mxu0 %v2837
          %v3212 = vpop.f32.mrb[0].mxu0
          %v3213 = vadd.f32 %v2656, %v3212
          %v3214 = vpop.f32.mrb[0].mxu0
          %3215 = vmatprep.mubr.f32.mxu0 0.0
          %3216 = vmatmul.mubr.f32.gmra.mrb[0].mxu0 %v2840
          %v3217 = vpop.f32.mrb[0].mxu0
          %v3218 = vadd.f32 %v2656, %v3217
          %v3219 = vpop.f32.mrb[0].mxu0
          %3220 = vmatprep.mubr.f32.mxu0 0.0
          %3221 = vmatmul.mubr.f32.gmra.mrb[0].mxu0 %v2843
          %v3222 = vpop.f32.mrb[0].mxu0
          %v3223 = vadd.f32 %v2656, %v3222
          %v3224 = vpop.f32.mrb[0].mxu0
          %3225 = vmatprep.mubr.f32.mxu0 0.0
          %3226 = vmatmul.mubr.f32.gmra.mrb[0].mxu0 %v2846
          %v3227 = vpop.f32.mrb[0].mxu0
          %v3228 = vadd.f32 %v2656, %v3227
          %v3229 = vpop.f32.mrb[0].mxu0
          %3230 = vmatprep.mubr.f32.mxu0 0.0
          %3231 = vmatmul.mubr.f32.gmra.mrb[0].mxu0 %v2849
          %v3232 = vpop.f32.mrb[0].mxu0
          %v3233 = vadd.f32 %v2656, %v3232
          %v3234 = vpop.f32.mrb[0].mxu0
          %3235 = vdwg.mxu0
          %v3236 = vmax.f32 %v2918, 0.0
          %v3237 = vmax.f32 %v2923, 0.0
          %v3238 = vmax.f32 %v2928, 0.0
          %v3239 = vmax.f32 %v2933, 0.0
          %v3240 = vmax.f32 %v2938, 0.0
          %v3241 = vmax.f32 %v2943, 0.0
          %v3242 = vmax.f32 %v2948, 0.0
          %v3243 = vmax.f32 %v2953, 0.0
          %v3244 = vmax.f32 %v2958, 0.0
          %v3245 = vmax.f32 %v2963, 0.0
          %v3246 = vmax.f32 %v2968, 0.0
          %v3247 = vmax.f32 %v2973, 0.0
          %v3248 = vmax.f32 %v2978, 0.0
          %v3249 = vmax.f32 %v2983, 0.0
          %v3250 = vmax.f32 %v2988, 0.0
          %v3251 = vmax.f32 %v2993, 0.0
          %v3252 = vmax.f32 %v2998, 0.0
          %v3253 = vmax.f32 %v3003, 0.0
          %v3254 = vmax.f32 %v3008, 0.0
          %v3255 = vmax.f32 %v3013, 0.0
          %v3256 = vmax.f32 %v3018, 0.0
          %v3257 = vmax.f32 %v3023, 0.0
          %v3258 = vmax.f32 %v3028, 0.0
          %v3259 = vmax.f32 %v3033, 0.0
          %v3260 = vmax.f32 %v3038, 0.0
          %v3261 = vmax.f32 %v3043, 0.0
          %v3262 = vmax.f32 %v3048, 0.0
          %v3263 = vmax.f32 %v3053, 0.0
          %v3264 = vmax.f32 %v3058, 0.0
          %v3265 = vmax.f32 %v3063, 0.0
          %v3266 = vmax.f32 %v3068, 0.0
          %v3267 = vmax.f32 %v3073, 0.0
          %v3268 = vmax.f32 %v3078, 0.0
          %v3269 = vmax.f32 %v3083, 0.0
          %v3270 = vmax.f32 %v3088, 0.0
          %v3271 = vmax.f32 %v3093, 0.0
          %v3272 = vmax.f32 %v3098, 0.0
          %v3273 = vmax.f32 %v3103, 0.0
          %v3274 = vmax.f32 %v3108, 0.0
          %v3275 = vmax.f32 %v3113, 0.0
          %v3276 = vmax.f32 %v3118, 0.0
          %v3277 = vmax.f32 %v3123, 0.0
          %v3278 = vmax.f32 %v3128, 0.0
          %v3279 = vmax.f32 %v3133, 0.0
          %v3280 = vmax.f32 %v3138, 0.0
          %v3281 = vmax.f32 %v3143, 0.0
          %v3282 = vmax.f32 %v3148, 0.0
          %v3283 = vmax.f32 %v3153, 0.0
          %v3284 = vmax.f32 %v3158, 0.0
          %v3285 = vmax.f32 %v3163, 0.0
          %v3286 = vmax.f32 %v3168, 0.0
          %v3287 = vmax.f32 %v3173, 0.0
          %v3288 = vmax.f32 %v3178, 0.0
          %v3289 = vmax.f32 %v3183, 0.0
          %v3290 = vmax.f32 %v3188, 0.0
          %v3291 = vmax.f32 %v3193, 0.0
          %v3292 = vmax.f32 %v3198, 0.0
          %v3293 = vmax.f32 %v3203, 0.0
          %v3294 = vmax.f32 %v3208, 0.0
          %v3295 = vmax.f32 %v3213, 0.0
          %v3296 = vmax.f32 %v3218, 0.0
          %v3297 = vmax.f32 %v3223, 0.0
          %v3298 = vmax.f32 %v3228, 0.0
          %v3299 = vmax.f32 %v3233, 0.0
          %3300 = vst.msk [vmem:[%s591] sm:$0xff] %vm2658, %v3236
          %3301 = vst.msk [vmem:[%s591 + $0x8] sm:$0xff] %vm2658, %v3237
          %3302 = vst.msk [vmem:[%s591 + $0x10] sm:$0xff] %vm2658, %v3238
          %3303 = vst.msk [vmem:[%s591 + $0x18] sm:$0xff] %vm2658, %v3239
          %3304 = vst.msk [vmem:[%s591 + $0x20] sm:$0xff] %vm2658, %v3240
          %3305 = vst.msk [vmem:[%s591 + $0x28] sm:$0xff] %vm2658, %v3241
          %3306 = vst.msk [vmem:[%s591 + $0x30] sm:$0xff] %vm2658, %v3242
          %3307 = vst.msk [vmem:[%s591 + $0x38] sm:$0xff] %vm2658, %v3243
          %3308 = vst.msk [vmem:[%s591 + $0x40] sm:$0xff] %vm2658, %v3244
          %3309 = vst.msk [vmem:[%s591 + $0x48] sm:$0xff] %vm2658, %v3245
          %3310 = vst.msk [vmem:[%s591 + $0x50] sm:$0xff] %vm2658, %v3246
          %3311 = vst.msk [vmem:[%s591 + $0x58] sm:$0xff] %vm2658, %v3247
          %3312 = vst.msk [vmem:[%s591 + $0x60] sm:$0xff] %vm2658, %v3248
          %3313 = vst.msk [vmem:[%s591 + $0x68] sm:$0xff] %vm2658, %v3249
          %3314 = vst.msk [vmem:[%s591 + $0x70] sm:$0xff] %vm2658, %v3250
          %3315 = vst.msk [vmem:[%s591 + $0x78] sm:$0xff] %vm2658, %v3251
          %3316 = vst.msk [vmem:[%s591 + $0x80] sm:$0xff] %vm2658, %v3252
          %3317 = vst.msk [vmem:[%s591 + $0x88] sm:$0xff] %vm2658, %v3253
          %3318 = vst.msk [vmem:[%s591 + $0x90] sm:$0xff] %vm2658, %v3254
          %3319 = vst.msk [vmem:[%s591 + $0x98] sm:$0xff] %vm2658, %v3255
          %3320 = vst.msk [vmem:[%s591 + $0xa0] sm:$0xff] %vm2658, %v3256
          %3321 = vst.msk [vmem:[%s591 + $0xa8] sm:$0xff] %vm2658, %v3257
          %3322 = vst.msk [vmem:[%s591 + $0xb0] sm:$0xff] %vm2658, %v3258
          %3323 = vst.msk [vmem:[%s591 + $0xb8] sm:$0xff] %vm2658, %v3259
          %3324 = vst.msk [vmem:[%s591 + $0xc0] sm:$0xff] %vm2658, %v3260
          %3325 = vst.msk [vmem:[%s591 + $0xc8] sm:$0xff] %vm2658, %v3261
          %3326 = vst.msk [vmem:[%s591 + $0xd0] sm:$0xff] %vm2658, %v3262
          %3327 = vst.msk [vmem:[%s591 + $0xd8] sm:$0xff] %vm2658, %v3263
          %3328 = vst.msk [vmem:[%s591 + $0xe0] sm:$0xff] %vm2658, %v3264
          %3329 = vst.msk [vmem:[%s591 + $0xe8] sm:$0xff] %vm2658, %v3265
          %3330 = vst.msk [vmem:[%s591 + $0xf0] sm:$0xff] %vm2658, %v3266
          %3331 = vst.msk [vmem:[%s591 + $0xf8] sm:$0xff] %vm2658, %v3267
          %3332 = vst.msk [vmem:[%s591 + $0x100] sm:$0xff] %vm2658, %v3268
          %3333 = vst.msk [vmem:[%s591 + $0x108] sm:$0xff] %vm2658, %v3269
          %3334 = vst.msk [vmem:[%s591 + $0x110] sm:$0xff] %vm2658, %v3270
          %3335 = vst.msk [vmem:[%s591 + $0x118] sm:$0xff] %vm2658, %v3271
          %3336 = vst.msk [vmem:[%s591 + $0x120] sm:$0xff] %vm2658, %v3272
          %3337 = vst.msk [vmem:[%s591 + $0x128] sm:$0xff] %vm2658, %v3273
          %3338 = vst.msk [vmem:[%s591 + $0x130] sm:$0xff] %vm2658, %v3274
          %3339 = vst.msk [vmem:[%s591 + $0x138] sm:$0xff] %vm2658, %v3275
          %3340 = vst.msk [vmem:[%s591 + $0x140] sm:$0xff] %vm2658, %v3276
          %3341 = vst.msk [vmem:[%s591 + $0x148] sm:$0xff] %vm2658, %v3277
          %3342 = vst.msk [vmem:[%s591 + $0x150] sm:$0xff] %vm2658, %v3278
          %3343 = vst.msk [vmem:[%s591 + $0x158] sm:$0xff] %vm2658, %v3279
          %3344 = vst.msk [vmem:[%s591 + $0x160] sm:$0xff] %vm2658, %v3280
          %3345 = vst.msk [vmem:[%s591 + $0x168] sm:$0xff] %vm2658, %v3281
          %3346 = vst.msk [vmem:[%s591 + $0x170] sm:$0xff] %vm2658, %v3282
          %3347 = vst.msk [vmem:[%s591 + $0x178] sm:$0xff] %vm2658, %v3283
          %3348 = vst.msk [vmem:[%s591 + $0x180] sm:$0xff] %vm2658, %v3284
          %3349 = vst.msk [vmem:[%s591 + $0x188] sm:$0xff] %vm2658, %v3285
          %3350 = vst.msk [vmem:[%s591 + $0x190] sm:$0xff] %vm2658, %v3286
          %3351 = vst.msk [vmem:[%s591 + $0x198] sm:$0xff] %vm2658, %v3287
          %3352 = vst.msk [vmem:[%s591 + $0x1a0] sm:$0xff] %vm2658, %v3288
          %3353 = vst.msk [vmem:[%s591 + $0x1a8] sm:$0xff] %vm2658, %v3289
          %3354 = vst.msk [vmem:[%s591 + $0x1b0] sm:$0xff] %vm2658, %v3290
          %3355 = vst.msk [vmem:[%s591 + $0x1b8] sm:$0xff] %vm2658, %v3291
          %3356 = vst.msk [vmem:[%s591 + $0x1c0] sm:$0xff] %vm2658, %v3292
          %3357 = vst.msk [vmem:[%s591 + $0x1c8] sm:$0xff] %vm2658, %v3293
          %3358 = vst.msk [vmem:[%s591 + $0x1d0] sm:$0xff] %vm2658, %v3294
          %3359 = vst.msk [vmem:[%s591 + $0x1d8] sm:$0xff] %vm2658, %v3295
          %3360 = vst.msk [vmem:[%s591 + $0x1e0] sm:$0xff] %vm2658, %v3296
          %3361 = vst.msk [vmem:[%s591 + $0x1e8] sm:$0xff] %vm2658, %v3297
          %3362 = vst.msk [vmem:[%s591 + $0x1f0] sm:$0xff] %vm2658, %v3298
          %3363 = vst.msk [vmem:[%s591 + $0x1f8] sm:$0xff] %vm2658, %v3299
          %v3364 = vsel %vm2658, %v3236, 0.0
          %v3365 = vsel %vm2658, %v3237, 0.0
          %v3366 = vadd.f32 %v3364, %v3365
          %v3367 = vsel %vm2658, %v3238, 0.0
          %v3368 = vadd.f32 %v3366, %v3367
          %v3369 = vsel %vm2658, %v3239, 0.0
          %v3370 = vadd.f32 %v3368, %v3369
          %v3371 = vsel %vm2658, %v3240, 0.0
          %v3372 = vadd.f32 %v3370, %v3371
          %v3373 = vsel %vm2658, %v3241, 0.0
          %v3374 = vadd.f32 %v3372, %v3373
          %v3375 = vsel %vm2658, %v3242, 0.0
          %v3376 = vadd.f32 %v3374, %v3375
          %v3377 = vsel %vm2658, %v3243, 0.0
          %v3378 = vadd.f32 %v3376, %v3377
          %v3379 = vsel %vm2658, %v3244, 0.0
          %v3380 = vadd.f32 %v3378, %v3379
          %v3381 = vsel %vm2658, %v3245, 0.0
          %v3382 = vadd.f32 %v3380, %v3381
          %v3383 = vsel %vm2658, %v3246, 0.0
          %v3384 = vadd.f32 %v3382, %v3383
          %v3385 = vsel %vm2658, %v3247, 0.0
          %v3386 = vadd.f32 %v3384, %v3385
          %v3387 = vsel %vm2658, %v3248, 0.0
          %v3388 = vadd.f32 %v3386, %v3387
          %v3389 = vsel %vm2658, %v3249, 0.0
          %v3390 = vadd.f32 %v3388, %v3389
          %v3391 = vsel %vm2658, %v3250, 0.0
          %v3392 = vadd.f32 %v3390, %v3391
          %v3393 = vsel %vm2658, %v3251, 0.0
          %v3394 = vadd.f32 %v3392, %v3393
          %v3395 = vsel %vm2658, %v3252, 0.0
          %v3396 = vadd.f32 %v3394, %v3395
          %v3397 = vsel %vm2658, %v3253, 0.0
          %v3398 = vadd.f32 %v3396, %v3397
          %v3399 = vsel %vm2658, %v3254, 0.0
          %v3400 = vadd.f32 %v3398, %v3399
          %v3401 = vsel %vm2658, %v3255, 0.0
          %v3402 = vadd.f32 %v3400, %v3401
          %v3403 = vsel %vm2658, %v3256, 0.0
          %v3404 = vadd.f32 %v3402, %v3403
          %v3405 = vsel %vm2658, %v3257, 0.0
          %v3406 = vadd.f32 %v3404, %v3405
          %v3407 = vsel %vm2658, %v3258, 0.0
          %v3408 = vadd.f32 %v3406, %v3407
          %v3409 = vsel %vm2658, %v3259, 0.0
          %v3410 = vadd.f32 %v3408, %v3409
          %v3411 = vsel %vm2658, %v3260, 0.0
          %v3412 = vadd.f32 %v3410, %v3411
          %v3413 = vsel %vm2658, %v3261, 0.0
          %v3414 = vadd.f32 %v3412, %v3413
          %v3415 = vsel %vm2658, %v3262, 0.0
          %v3416 = vadd.f32 %v3414, %v3415
          %v3417 = vsel %vm2658, %v3263, 0.0
          %v3418 = vadd.f32 %v3416, %v3417
          %v3419 = vsel %vm2658, %v3264, 0.0
          %v3420 = vadd.f32 %v3418, %v3419
          %v3421 = vsel %vm2658, %v3265, 0.0
          %v3422 = vadd.f32 %v3420, %v3421
          %v3423 = vsel %vm2658, %v3266, 0.0
          %v3424 = vadd.f32 %v3422, %v3423
          %v3425 = vsel %vm2658, %v3267, 0.0
          %v3426 = vadd.f32 %v3424, %v3425
          %v3427 = vsel %vm2658, %v3268, 0.0
          %v3428 = vadd.f32 %v3426, %v3427
          %v3429 = vsel %vm2658, %v3269, 0.0
          %v3430 = vadd.f32 %v3428, %v3429
          %v3431 = vsel %vm2658, %v3270, 0.0
          %v3432 = vadd.f32 %v3430, %v3431
          %v3433 = vsel %vm2658, %v3271, 0.0
          %v3434 = vadd.f32 %v3432, %v3433
          %v3435 = vsel %vm2658, %v3272, 0.0
          %v3436 = vadd.f32 %v3434, %v3435
          %v3437 = vsel %vm2658, %v3273, 0.0
          %v3438 = vadd.f32 %v3436, %v3437
          %v3439 = vsel %vm2658, %v3274, 0.0
          %v3440 = vadd.f32 %v3438, %v3439
          %v3441 = vsel %vm2658, %v3275, 0.0
          %v3442 = vadd.f32 %v3440, %v3441
          %v3443 = vsel %vm2658, %v3276, 0.0
          %v3444 = vadd.f32 %v3442, %v3443
          %v3445 = vsel %vm2658, %v3277, 0.0
          %v3446 = vadd.f32 %v3444, %v3445
          %v3447 = vsel %vm2658, %v3278, 0.0
          %v3448 = vadd.f32 %v3446, %v3447
          %v3449 = vsel %vm2658, %v3279, 0.0
          %v3450 = vadd.f32 %v3448, %v3449
          %v3451 = vsel %vm2658, %v3280, 0.0
          %v3452 = vadd.f32 %v3450, %v3451
          %v3453 = vsel %vm2658, %v3281, 0.0
          %v3454 = vadd.f32 %v3452, %v3453
          %v3455 = vsel %vm2658, %v3282, 0.0
          %v3456 = vadd.f32 %v3454, %v3455
          %v3457 = vsel %vm2658, %v3283, 0.0
          %v3458 = vadd.f32 %v3456, %v3457
          %v3459 = vsel %vm2658, %v3284, 0.0
          %v3460 = vadd.f32 %v3458, %v3459
          %v3461 = vsel %vm2658, %v3285, 0.0
          %v3462 = vadd.f32 %v3460, %v3461
          %v3463 = vsel %vm2658, %v3286, 0.0
          %v3464 = vadd.f32 %v3462, %v3463
          %v3465 = vsel %vm2658, %v3287, 0.0
          %v3466 = vadd.f32 %v3464, %v3465
          %v3467 = vsel %vm2658, %v3288, 0.0
          %v3468 = vadd.f32 %v3466, %v3467
          %v3469 = vsel %vm2658, %v3289, 0.0
          %v3470 = vadd.f32 %v3468, %v3469
          %v3471 = vsel %vm2658, %v3290, 0.0
          %v3472 = vadd.f32 %v3470, %v3471
          %v3473 = vsel %vm2658, %v3291, 0.0
          %v3474 = vadd.f32 %v3472, %v3473
          %v3475 = vsel %vm2658, %v3292, 0.0
          %v3476 = vadd.f32 %v3474, %v3475
          %v3477 = vsel %vm2658, %v3293, 0.0
          %v3478 = vadd.f32 %v3476, %v3477
          %v3479 = vsel %vm2658, %v3294, 0.0
          %v3480 = vadd.f32 %v3478, %v3479
          %v3481 = vsel %vm2658, %v3295, 0.0
          %v3482 = vadd.f32 %v3480, %v3481
          %v3483 = vsel %vm2658, %v3296, 0.0
          %v3484 = vadd.f32 %v3482, %v3483
          %v3485 = vsel %vm2658, %v3297, 0.0
          %v3486 = vadd.f32 %v3484, %v3485
          %v3487 = vsel %vm2658, %v3298, 0.0
          %v3488 = vadd.f32 %v3486, %v3487
          %v3489 = vsel %vm2658, %v3299, 0.0
          %v3490 = vadd.f32 %v3488, %v3489
          %v3491 = vrot.slane %v3490, 4
          %v3492 = vadd.f32 %v3490, %v3491
          %v3493 = vrot.slane %v3492, 2
          %v3494 = vadd.f32 %v3492, %v3493
          %v3495 = vrot.slane %v3494, 1
          %v3496 = vadd.f32 %v3494, %v3495
          %v3497 = vmul.f32 %v3236, %v3236
          %v3498 = vmul.f32 %v3237, %v3237
          %v3499 = vmul.f32 %v3238, %v3238
          %v3500 = vmul.f32 %v3239, %v3239
          %v3501 = vmul.f32 %v3240, %v3240
          %v3502 = vmul.f32 %v3241, %v3241
          %v3503 = vmul.f32 %v3242, %v3242
          %v3504 = vmul.f32 %v3243, %v3243
          %v3505 = vmul.f32 %v3244, %v3244
          %v3506 = vmul.f32 %v3245, %v3245
          %v3507 = vmul.f32 %v3246, %v3246
          %v3508 = vmul.f32 %v3247, %v3247
          %v3509 = vmul.f32 %v3248, %v3248
          %v3510 = vmul.f32 %v3249, %v3249
          %v3511 = vmul.f32 %v3250, %v3250
          %v3512 = vmul.f32 %v3251, %v3251
          %v3513 = vmul.f32 %v3252, %v3252
          %v3514 = vmul.f32 %v3253, %v3253
          %v3515 = vmul.f32 %v3254, %v3254
          %v3516 = vmul.f32 %v3255, %v3255
          %v3517 = vmul.f32 %v3256, %v3256
          %v3518 = vmul.f32 %v3257, %v3257
          %v3519 = vmul.f32 %v3258, %v3258
          %v3520 = vmul.f32 %v3259, %v3259
          %v3521 = vmul.f32 %v3260, %v3260
          %v3522 = vmul.f32 %v3261, %v3261
          %v3523 = vmul.f32 %v3262, %v3262
          %v3524 = vmul.f32 %v3263, %v3263
          %v3525 = vmul.f32 %v3264, %v3264
          %v3526 = vmul.f32 %v3265, %v3265
          %v3527 = vmul.f32 %v3266, %v3266
          %v3528 = vmul.f32 %v3267, %v3267
          %v3529 = vmul.f32 %v3268, %v3268
          %v3530 = vmul.f32 %v3269, %v3269
          %v3531 = vmul.f32 %v3270, %v3270
          %v3532 = vmul.f32 %v3271, %v3271
          %v3533 = vmul.f32 %v3272, %v3272
          %v3534 = vmul.f32 %v3273, %v3273
          %v3535 = vmul.f32 %v3274, %v3274
          %v3536 = vmul.f32 %v3275, %v3275
          %v3537 = vmul.f32 %v3276, %v3276
          %v3538 = vmul.f32 %v3277, %v3277
          %v3539 = vmul.f32 %v3278, %v3278
          %v3540 = vmul.f32 %v3279, %v3279
          %v3541 = vmul.f32 %v3280, %v3280
          %v3542 = vmul.f32 %v3281, %v3281
          %v3543 = vmul.f32 %v3282, %v3282
          %v3544 = vmul.f32 %v3283, %v3283
          %v3545 = vmul.f32 %v3284, %v3284
          %v3546 = vmul.f32 %v3285, %v3285
          %v3547 = vmul.f32 %v3286, %v3286
          %v3548 = vmul.f32 %v3287, %v3287
          %v3549 = vmul.f32 %v3288, %v3288
          %v3550 = vmul.f32 %v3289, %v3289
          %v3551 = vmul.f32 %v3290, %v3290
          %v3552 = vmul.f32 %v3291, %v3291
          %v3553 = vmul.f32 %v3292, %v3292
          %v3554 = vmul.f32 %v3293, %v3293
          %v3555 = vmul.f32 %v3294, %v3294
          %v3556 = vmul.f32 %v3295, %v3295
          %v3557 = vmul.f32 %v3296, %v3296
          %v3558 = vmul.f32 %v3297, %v3297
          %v3559 = vmul.f32 %v3298, %v3298
          %v3560 = vmul.f32 %v3299, %v3299
          %v3561 = vsel %vm2658, %v3497, 0.0
          %v3562 = vsel %vm2658, %v3498, 0.0
          %v3563 = vadd.f32 %v3561, %v3562
          %v3564 = vsel %vm2658, %v3499, 0.0
          %v3565 = vadd.f32 %v3563, %v3564
          %v3566 = vsel %vm2658, %v3500, 0.0
          %v3567 = vadd.f32 %v3565, %v3566
          %v3568 = vsel %vm2658, %v3501, 0.0
          %v3569 = vadd.f32 %v3567, %v3568
          %v3570 = vsel %vm2658, %v3502, 0.0
          %v3571 = vadd.f32 %v3569, %v3570
          %v3572 = vsel %vm2658, %v3503, 0.0
          %v3573 = vadd.f32 %v3571, %v3572
          %v3574 = vsel %vm2658, %v3504, 0.0
          %v3575 = vadd.f32 %v3573, %v3574
          %v3576 = vsel %vm2658, %v3505, 0.0
          %v3577 = vadd.f32 %v3575, %v3576
          %v3578 = vsel %vm2658, %v3506, 0.0
          %v3579 = vadd.f32 %v3577, %v3578
          %v3580 = vsel %vm2658, %v3507, 0.0
          %v3581 = vadd.f32 %v3579, %v3580
          %v3582 = vsel %vm2658, %v3508, 0.0
          %v3583 = vadd.f32 %v3581, %v3582
          %v3584 = vsel %vm2658, %v3509, 0.0
          %v3585 = vadd.f32 %v3583, %v3584
          %v3586 = vsel %vm2658, %v3510, 0.0
          %v3587 = vadd.f32 %v3585, %v3586
          %v3588 = vsel %vm2658, %v3511, 0.0
          %v3589 = vadd.f32 %v3587, %v3588
          %v3590 = vsel %vm2658, %v3512, 0.0
          %v3591 = vadd.f32 %v3589, %v3590
          %v3592 = vsel %vm2658, %v3513, 0.0
          %v3593 = vadd.f32 %v3591, %v3592
          %v3594 = vsel %vm2658, %v3514, 0.0
          %v3595 = vadd.f32 %v3593, %v3594
          %v3596 = vsel %vm2658, %v3515, 0.0
          %v3597 = vadd.f32 %v3595, %v3596
          %v3598 = vsel %vm2658, %v3516, 0.0
          %v3599 = vadd.f32 %v3597, %v3598
          %v3600 = vsel %vm2658, %v3517, 0.0
          %v3601 = vadd.f32 %v3599, %v3600
          %v3602 = vsel %vm2658, %v3518, 0.0
          %v3603 = vadd.f32 %v3601, %v3602
          %v3604 = vsel %vm2658, %v3519, 0.0
          %v3605 = vadd.f32 %v3603, %v3604
          %v3606 = vsel %vm2658, %v3520, 0.0
          %v3607 = vadd.f32 %v3605, %v3606
          %v3608 = vsel %vm2658, %v3521, 0.0
          %v3609 = vadd.f32 %v3607, %v3608
          %v3610 = vsel %vm2658, %v3522, 0.0
          %v3611 = vadd.f32 %v3609, %v3610
          %v3612 = vsel %vm2658, %v3523, 0.0
          %v3613 = vadd.f32 %v3611, %v3612
          %v3614 = vsel %vm2658, %v3524, 0.0
          %v3615 = vadd.f32 %v3613, %v3614
          %v3616 = vsel %vm2658, %v3525, 0.0
          %v3617 = vadd.f32 %v3615, %v3616
          %v3618 = vsel %vm2658, %v3526, 0.0
          %v3619 = vadd.f32 %v3617, %v3618
          %v3620 = vsel %vm2658, %v3527, 0.0
          %v3621 = vadd.f32 %v3619, %v3620
          %v3622 = vsel %vm2658, %v3528, 0.0
          %v3623 = vadd.f32 %v3621, %v3622
          %v3624 = vsel %vm2658, %v3529, 0.0
          %v3625 = vadd.f32 %v3623, %v3624
          %v3626 = vsel %vm2658, %v3530, 0.0
          %v3627 = vadd.f32 %v3625, %v3626
          %v3628 = vsel %vm2658, %v3531, 0.0
          %v3629 = vadd.f32 %v3627, %v3628
          %v3630 = vsel %vm2658, %v3532, 0.0
          %v3631 = vadd.f32 %v3629, %v3630
          %v3632 = vsel %vm2658, %v3533, 0.0
          %v3633 = vadd.f32 %v3631, %v3632
          %v3634 = vsel %vm2658, %v3534, 0.0
          %v3635 = vadd.f32 %v3633, %v3634
          %v3636 = vsel %vm2658, %v3535, 0.0
          %v3637 = vadd.f32 %v3635, %v3636
          %v3638 = vsel %vm2658, %v3536, 0.0
          %v3639 = vadd.f32 %v3637, %v3638
          %v3640 = vsel %vm2658, %v3537, 0.0
          %v3641 = vadd.f32 %v3639, %v3640
          %v3642 = vsel %vm2658, %v3538, 0.0
          %v3643 = vadd.f32 %v3641, %v3642
          %v3644 = vsel %vm2658, %v3539, 0.0
          %v3645 = vadd.f32 %v3643, %v3644
          %v3646 = vsel %vm2658, %v3540, 0.0
          %v3647 = vadd.f32 %v3645, %v3646
          %v3648 = vsel %vm2658, %v3541, 0.0
          %v3649 = vadd.f32 %v3647, %v3648
          %v3650 = vsel %vm2658, %v3542, 0.0
          %v3651 = vadd.f32 %v3649, %v3650
          %v3652 = vsel %vm2658, %v3543, 0.0
          %v3653 = vadd.f32 %v3651, %v3652
          %v3654 = vsel %vm2658, %v3544, 0.0
          %v3655 = vadd.f32 %v3653, %v3654
          %v3656 = vsel %vm2658, %v3545, 0.0
          %v3657 = vadd.f32 %v3655, %v3656
          %v3658 = vsel %vm2658, %v3546, 0.0
          %v3659 = vadd.f32 %v3657, %v3658
          %v3660 = vsel %vm2658, %v3547, 0.0
          %v3661 = vadd.f32 %v3659, %v3660
          %v3662 = vsel %vm2658, %v3548, 0.0
          %v3663 = vadd.f32 %v3661, %v3662
          %v3664 = vsel %vm2658, %v3549, 0.0
          %v3665 = vadd.f32 %v3663, %v3664
          %v3666 = vsel %vm2658, %v3550, 0.0
          %v3667 = vadd.f32 %v3665, %v3666
          %v3668 = vsel %vm2658, %v3551, 0.0
          %v3669 = vadd.f32 %v3667, %v3668
          %v3670 = vsel %vm2658, %v3552, 0.0
          %v3671 = vadd.f32 %v3669, %v3670
          %v3672 = vsel %vm2658, %v3553, 0.0
          %v3673 = vadd.f32 %v3671, %v3672
          %v3674 = vsel %vm2658, %v3554, 0.0
          %v3675 = vadd.f32 %v3673, %v3674
          %v3676 = vsel %vm2658, %v3555, 0.0
          %v3677 = vadd.f32 %v3675, %v3676
          %v3678 = vsel %vm2658, %v3556, 0.0
          %v3679 = vadd.f32 %v3677, %v3678
          %v3680 = vsel %vm2658, %v3557, 0.0
          %v3681 = vadd.f32 %v3679, %v3680
          %v3682 = vsel %vm2658, %v3558, 0.0
          %v3683 = vadd.f32 %v3681, %v3682
          %v3684 = vsel %vm2658, %v3559, 0.0
          %v3685 = vadd.f32 %v3683, %v3684
          %v3686 = vsel %vm2658, %v3560, 0.0
          %v3687 = vadd.f32 %v3685, %v3686
          %v3688 = vrot.slane %v3687, 4
          %v3689 = vadd.f32 %v3687, %v3688
          %v3690 = vrot.slane %v3689, 2
          %v3691 = vadd.f32 %v3689, %v3690
          %v3692 = vrot.slane %v3691, 1
          %v3693 = vadd.f32 %v3691, %v3692
          %vm3694 = vcmask 1040384
          %v3695 = vsel %vm3694, %v3496, %v3693
          %vm3696 = vcmask 517120
          %3697 = vst.msk [vmem:[%s548] sm:$0x3] %vm3696, %v3695
        $region88: #{tpu_custom_call.1} parent=51 // pred_fallthru
          _
        %s3698 = smul.u32 64, %s44
        %p3699 = scmp.lt.s32.totalorder %s3698, 191
        %s3700 = scalar_select %p3699, %s3698, 191
        %s3701 = smul.addr %s3700, 8
        %s3702 = scalar_lea.vmem %s10, %s3701
        %s3703 = sand.u32 %s303, 1
        %s3704 = scalar_lea.sflag [#allocation8], %s3703
        %s3705 = sand.u32 %s303, 1
        %s3706 = smul.addr %s3705, 2
        %s3707 = scalar_lea.vmem [#allocation17], %s3706
        // Predicated region
        $region89: #{tpu_custom_call.1} parent=51 // pred_check
          %p3708 = pneg %p287
        $region90: #{tpu_custom_call.1} parent=51 // pred_check_branch
          %3710 = sbr.rel (%p3708) target = $region92
        $region91: #{tpu_custom_call.1} parent=51 // pred_region
          %s3711 = smul.u32 64, %s44
        $region92: #{tpu_custom_call.1} parent=51 // pred_fallthru
          _
        // Predicated region
        $region93: #{tpu_custom_call.1} parent=51 // pred_check
          %p3712 = pneg %p313
        $region94: #{tpu_custom_call.1} parent=51 // pred_check_branch
          %3714 = sbr.rel (%p3712) target = $region96
        $region95: #{tpu_custom_call.1} parent=51 // pred_region
          %s3716 = ssub.s32 32, 32
          %3717 = vsyncadd %s3704, %s3716
          %s3718 = smul.addr %s44, 32
          %s3719 = scalar_lea.hbm %s11, %s3718
          %s3721 = sshll.u32 %s3707, 4
          %s3722 = int_to_ptr.vmem [resolvable:$true] %s3721
          %3724 = dma.vmem_to_hbm [thread:$0]  %s3722, 32, %s3719, %s3704
        $region96: #{tpu_custom_call.1} parent=51 // pred_fallthru
          _
      $region52: #{tpu_custom_call.1} parent=5 // pred_fallthru
        _
      %p3725 = scmp.le.s32.totalorder 2, %s35
      // Predicated region
      $region97: #{tpu_custom_call.1} parent=5 // pred_check
        %p3726 = pneg %p3725
      $region98: #{tpu_custom_call.1} parent=5 // pred_check_branch
        %3728 = sbr.rel (%p3726) target = $region100
      $region99: #{tpu_custom_call.1} parent=5 // pred_region
        %s3729 = ssub.s32 %s35, 2
        // Predicated region
        $region101: #{tpu_custom_call.1} parent=99 // pred_check
          %p3730 = pneg %p293
        $region102: #{tpu_custom_call.1} parent=99 // pred_check_branch
          %3732 = sbr.rel (%p3730) target = $region104
        $region103: #{tpu_custom_call.1} parent=99 // pred_region
          %s3733 = smul.u32 64, %s46
          %p3734 = scmp.lt.s32.totalorder %s3733, 191
          %s3735 = scalar_select %p3734, %s3733, 191
          %s3736 = smul.addr %s3735, 8
          %s3737 = scalar_lea.vmem %s10, %s3736
        $region104: #{tpu_custom_call.1} parent=99 // pred_fallthru
          _
        // Predicated region
        $region105: #{tpu_custom_call.1} parent=99 // pred_check
          %p3738 = pneg %p319
        $region106: #{tpu_custom_call.1} parent=99 // pred_check_branch
          %3740 = sbr.rel (%p3738) target = $region108
        $region107: #{tpu_custom_call.1} parent=99 // pred_region
          %s3741 = sand.u32 %s304, 1
          %s3742 = scalar_lea.sflag [#allocation8], %s3741
          %s3743 = sand.u32 %s304, 1
          %s3744 = smul.addr %s3743, 2
          %s3745 = scalar_lea.vmem [#allocation17], %s3744
          %3746 = dma.done %s3742, 32
        $region108: #{tpu_custom_call.1} parent=99 // pred_fallthru
          _
      $region100: #{tpu_custom_call.1} parent=5 // pred_fallthru
        _
    $region6: #{tpu_custom_call.1} parent=1 // loop_footer
      %s39 = sadd.s32 1, %s35
    $region7: #{tpu_custom_call.1} parent=1 // loop_footer_branch
      %34 = sbr.rel target = $region3
    $region8: #{tpu_custom_call.1} parent=1 // loop_exit
      _
    %3747 = vsyncpa [#allocation7], 1
    %s3748 = scalar_lea.sflag [#allocation7], 1
    %3749 = vsyncpa %s3748, 1
    %3750 = vsyncpa [#allocation10], 1
    %3751 = vsyncpa [#allocation13], 1
    %3752 = vsyncpa [#allocation16], 1
    %3753 = vsyncpa [#allocation8], 1
    %s3754 = scalar_lea.sflag [#allocation8], 1
    %3755 = vsyncpa %s3754, 1

</llo_original>
